<compile_context>
chip_gen: v7x
topology: tpu7x:2x2x1
jax: 0.10.0
libtpu: 0.0.40
codegen_flags: <defaults>
</compile_context>

<pallas_src>
import jax
import jax.numpy as jnp
from jax.experimental import pallas as pl
from jax.experimental.pallas import tpu as pltpu

BN_EPS = 1e-5
LANES = 128
VMEM_LIMIT = 32 * 1024 * 1024


def _round_up(x, m):
    return ((x + m - 1) // m) * m


# ---------------------------------------------------------------------------
# Plain-JAX glue: ternary quantization + weight / activation layout prep
# ---------------------------------------------------------------------------
def ternary_quantize(w):
    """bw = w - mean(w); ternarize by global [min, max] thirds (TernaryQuantize)."""
    w = w - jnp.mean(w)
    w_max, w_min = jnp.max(w), jnp.min(w)
    lower = w_min + (w_max - w_min) / 3.0
    higher = w_max - (w_max - w_min) / 3.0
    out = jnp.where(w < lower, -1.0, w)
    out = jnp.where(w > higher, 1.0, out)
    out = jnp.where((w >= lower) & (w <= higher), 0.0, out)
    return out.astype(jnp.float32)


def weight_to_taps(w, cp):
    """(Cout, Cin, 3, 3) -> (9, Cp, Cp) bf16 taps; tap k = kh*3+kw, laid out [ci, co]."""
    cout, cin = w.shape[0], w.shape[1]
    wk = jnp.transpose(w, (2, 3, 1, 0)).reshape(9, cin, cout)     # (9, ci, co)
    wk = jnp.pad(wk, ((0, 0), (0, cp - cin), (0, cp - cout)))     # zero-pad channels
    return wk.astype(jnp.bfloat16)


# ---------------------------------------------------------------------------
# Kernel 1: 3x3 conv (pad=1) + per-image partial BN statistics
# ---------------------------------------------------------------------------
def _conv3x3_stats_kernel(xpad_ref, w_ref, y_ref, stats_ref):
    # xpad_ref : (1, H+2, W+2, Cp) bf16   (spatially zero-padded NHWC image)
    # w_ref    : (9, Cp, Cp)       bf16   (resident across the grid)
    # y_ref    : (1, H,   W,   Cp) f32    (raw conv output)
    # stats_ref: (1, 2,   Cp)      f32    (per-image [sum, sum_sq] per channel)
    _, hp, wp, cp = xpad_ref.shape
    h, iw = hp - 2, wp - 2

    acc = jnp.zeros((h * iw, cp), jnp.float32)
    for k in range(9):                       # unrolled: 9 shifted MXU matmuls
        kh, kw = k // 3, k % 3
        patch = xpad_ref[0, kh:kh + h, kw:kw + iw, :].reshape(h * iw, cp)
        acc = acc + jnp.dot(patch, w_ref[k], preferred_element_type=jnp.float32)

    y_ref[0] = acc.reshape(h, iw, cp)
    stats_ref[0] = jnp.concatenate(
        [jnp.sum(acc, axis=0, keepdims=True),
         jnp.sum(acc * acc, axis=0, keepdims=True)], axis=0)


def conv3x3_stats(xpad, w_taps):
    n, hp, wp, cp = xpad.shape
    h, iw = hp - 2, wp - 2
    flops = 2 * n * h * iw * (9 * cp) * cp
    bytes_accessed = (xpad.size * 2 + w_taps.size * 2
                      + n * h * iw * cp * 4 + n * 2 * cp * 4)
    return pl.pallas_call(
        _conv3x3_stats_kernel,
        out_shape=(jax.ShapeDtypeStruct((n, h, iw, cp), jnp.float32),
                   jax.ShapeDtypeStruct((n, 2, cp), jnp.float32)),
        grid=(n,),
        in_specs=[pl.BlockSpec((1, hp, wp, cp), lambda i: (i, 0, 0, 0)),
                  pl.BlockSpec((9, cp, cp), lambda i: (0, 0, 0))],
        out_specs=(pl.BlockSpec((1, h, iw, cp), lambda i: (i, 0, 0, 0)),
                   pl.BlockSpec((1, 2, cp), lambda i: (i, 0, 0))),
        compiler_params=pltpu.CompilerParams(
            dimension_semantics=("parallel",),
            vmem_limit_bytes=VMEM_LIMIT),
        cost_estimate=pl.CostEstimate(flops=flops, transcendentals=0,
                                      bytes_accessed=bytes_accessed),
    )(xpad, w_taps)


# ---------------------------------------------------------------------------
# Kernel 2: out_1 = relu(bn1(y1)), written as a spatially zero-padded bf16 slab
# (ready to be the conv2 input, so no extra pad pass / im2col in HBM)
# ---------------------------------------------------------------------------
def _bn_relu_pad_kernel(y_ref, s_ref, b_ref, o_ref):
    # y_ref: (1, H, W, Cp) f32; s_ref/b_ref: (1, 1, Cp) f32
    # o_ref: (1, H+2, W+2, Cp) bf16
    _, h, iw, cp = y_ref.shape
    act = jnp.maximum(y_ref[0] * s_ref[0] + b_ref[0], 0.0)
    o_ref[0] = jnp.zeros((h + 2, iw + 2, cp), jnp.bfloat16)       # zero border
    o_ref[0, 1:h + 1, 1:iw + 1, :] = act.astype(jnp.bfloat16)     # interior


def bn_relu_pad(y, scale, bias):
    n, h, iw, cp = y.shape
    return pl.pallas_call(
        _bn_relu_pad_kernel,
        out_shape=jax.ShapeDtypeStruct((n, h + 2, iw + 2, cp), jnp.bfloat16),
        grid=(n,),
        in_specs=[pl.BlockSpec((1, h, iw, cp), lambda i: (i, 0, 0, 0)),
                  pl.BlockSpec((1, 1, cp), lambda i: (0, 0, 0)),
                  pl.BlockSpec((1, 1, cp), lambda i: (0, 0, 0))],
        out_specs=pl.BlockSpec((1, h + 2, iw + 2, cp), lambda i: (i, 0, 0, 0)),
        compiler_params=pltpu.CompilerParams(
            dimension_semantics=("parallel",),
            vmem_limit_bytes=VMEM_LIMIT),
    )(y, scale, bias)


# ---------------------------------------------------------------------------
# Kernel 3: out = relu(out_1 + bn2(y2))   (residual is out_1, as in the module)
# ---------------------------------------------------------------------------
def _bn_residual_relu_kernel(o1p_ref, y2_ref, s_ref, b_ref, out_ref):
    # o1p_ref: (1, H+2, W+2, Cp) bf16 (padded out_1); y2_ref: (1, H, W, Cp) f32
    _, h, iw, cp = y2_ref.shape
    out1 = o1p_ref[0, 1:h + 1, 1:iw + 1, :].astype(jnp.float32)
    out2 = y2_ref[0] * s_ref[0] + b_ref[0]
    out_ref[0] = jnp.maximum(out1 + out2, 0.0)


def bn_residual_relu(out1_pad, y2, scale, bias):
    n, h, iw, cp = y2.shape
    return pl.pallas_call(
        _bn_residual_relu_kernel,
        out_shape=jax.ShapeDtypeStruct((n, h, iw, cp), jnp.float32),
        grid=(n,),
        in_specs=[pl.BlockSpec((1, h + 2, iw + 2, cp), lambda i: (i, 0, 0, 0)),
                  pl.BlockSpec((1, h, iw, cp), lambda i: (i, 0, 0, 0)),
                  pl.BlockSpec((1, 1, cp), lambda i: (0, 0, 0)),
                  pl.BlockSpec((1, 1, cp), lambda i: (0, 0, 0))],
        out_specs=pl.BlockSpec((1, h, iw, cp), lambda i: (i, 0, 0, 0)),
        compiler_params=pltpu.CompilerParams(
            dimension_semantics=("parallel",),
            vmem_limit_bytes=VMEM_LIMIT),
    )(out1_pad, y2, scale, bias)


# ---------------------------------------------------------------------------
# BN finalize (tiny, plain JAX): batch scale/bias from accumulated sums
# ---------------------------------------------------------------------------
def bn_scale_bias(stats, gamma_p, beta_p, count):
    s = jnp.sum(stats, axis=0)                         # (2, Cp)
    mean = s[0] / count
    var = jnp.maximum(s[1] / count - mean * mean, 0.0)  # biased var (train-mode BN)
    scale = gamma_p * jax.lax.rsqrt(var + BN_EPS)
    bias = beta_p - mean * scale
    return scale.reshape(1, 1, -1), bias.reshape(1, 1, -1)


# ---------------------------------------------------------------------------
# BasicBlock forward
# ---------------------------------------------------------------------------
def basic_block_forward(x_nchw, params):
    n, c, h, w = x_nchw.shape
    cp = _round_up(c, LANES)
    count = jnp.float32(n * h * w)

    # Ternarize weights on every forward (as TriConv2d does) and lay out as taps.
    w1 = weight_to_taps(ternary_quantize(params["w1"]), cp)
    w2 = weight_to_taps(ternary_quantize(params["w2"]), cp)

    # Pad BN affine params with zeros so padded channels stay exactly zero.
    gamma1 = jnp.pad(params["bn1_gamma"], (0, cp - c))
    beta1 = jnp.pad(params["bn1_beta"], (0, cp - c))
    gamma2 = jnp.pad(params["bn2_gamma"], (0, cp - c))
    beta2 = jnp.pad(params["bn2_beta"], (0, cp - c))

    # Single boundary relayout: NCHW -> spatially+channel padded NHWC bf16.
    x_pad = jnp.pad(jnp.transpose(x_nchw, (0, 2, 3, 1)),
                    ((0, 0), (1, 1), (1, 1), (0, cp - c))).astype(jnp.bfloat16)

    # conv1 (+ partial BN stats), then BN finalize in JAX.
    y1, st1 = conv3x3_stats(x_pad, w1)
    s1, b1 = bn_scale_bias(st1, gamma1, beta1, count)

    # out_1 = relu(bn1(y1)), produced directly as a padded bf16 NHWC slab.
    out1_pad = bn_relu_pad(y1, s1, b1)

    # conv2 on out_1 (+ partial BN stats).
    y2, st2 = conv3x3_stats(out1_pad, w2)
    s2, b2 = bn_scale_bias(st2, gamma2, beta2, count)

    # out = relu(out_1 + bn2(y2)).
    out = bn_residual_relu(out1_pad, y2, s2, b2)

    # Back to the module's NCHW interface, dropping channel padding.
    return jnp.transpose(out[..., :c], (0, 3, 1, 2))


def init_params(key, channels):
    k1, k2 = jax.random.split(key)
    fan_in = channels * 9
    std = (2.0 / fan_in) ** 0.5
    return {
        "w1": jax.random.normal(k1, (channels, channels, 3, 3), jnp.float32) * std,
        "w2": jax.random.normal(k2, (channels, channels, 3, 3), jnp.float32) * std,
        "bn1_gamma": jnp.ones((channels,), jnp.float32),
        "bn1_beta": jnp.zeros((channels,), jnp.float32),
        "bn2_gamma": jnp.ones((channels,), jnp.float32),
        "bn2_beta": jnp.zeros((channels,), jnp.float32),
    }


# ---------------------------------------------------------------------------
# Pure-JAX reference (f32) for a sanity check against the PyTorch semantics.
# ---------------------------------------------------------------------------
def _reference_forward(x, params):
    def conv(z, wt):
        return jax.lax.conv_general_dilated(
            z, ternary_quantize(wt), window_strides=(1, 1), padding="SAME",
            dimension_numbers=("NCHW", "OIHW", "NCHW"))

    def bn(y, gamma, beta):
        mean = jnp.mean(y, axis=(0, 2, 3), keepdims=True)
        var = jnp.mean((y - mean) ** 2, axis=(0, 2, 3), keepdims=True)
        return (gamma.reshape(1, -1, 1, 1) * (y - mean) * jax.lax.rsqrt(var + BN_EPS)
                + beta.reshape(1, -1, 1, 1))

    out1 = jnp.maximum(bn(conv(x, params["w1"]),
                          params["bn1_gamma"], params["bn1_beta"]), 0.0)
    out2 = bn(conv(out1, params["w2"]), params["bn2_gamma"], params["bn2_beta"])
    return jnp.maximum(out1 + out2, 0.0)


if __name__ == "__main__":
    key = jax.random.PRNGKey(0)
    kx, kp = jax.random.split(key)

    N, C, H, W = 2, 4, 16, 16
    x = jax.random.normal(kx, (N, C, H, W), jnp.float32)
    params = init_params(kp, C)

    out = jax.jit(basic_block_forward)(x, params)
    jax.block_until_ready(out)

    assert out.shape == (N, C, H, W)
    assert bool(jnp.all(out >= 0.0))          # final ReLU

    # Loose tolerance: kernels use bf16 activations/weights on the MXU.
    ref = _reference_forward(x, params)
    err = float(jnp.max(jnp.abs(out - ref)))
    tol = 5e-2 * (1.0 + float(jnp.max(jnp.abs(ref))))
    assert err < tol, f"max |out - ref| = {err:.4f} exceeds tol {tol:.4f}"

    print("KERNEL_OK")
</pallas_src>

<mosaic_0001>
module attributes {stable_mosaic.version = 11 : i64} {
  func.func @_conv3x3_stats_kernel(%arg0: i32, %arg1: memref<1x18x18x128xbf16, #tpu.memory_space<vmem>>, %arg2: memref<9x128x128xbf16, #tpu.memory_space<vmem>>, %arg3: memref<1x16x16x128xf32, #tpu.memory_space<vmem>>, %arg4: memref<1x2x128xf32, #tpu.memory_space<vmem>>) attributes {dimension_semantics = [#tpu.dimension_semantics<parallel>], iteration_bounds = array<i64: 2>, scalar_prefetch = 0 : i64, scratch_operands = 0 : i64, tpu.core_type = #tpu.core_type<tc>, window_params = [{transform_indices = @transform_0, window_bounds = array<i64: 1, 18, 18, 128>}, {pipeline_mode = #tpu.pipeline_mode<synchronous>, transform_indices = @transform_1, window_bounds = array<i64: 9, 128, 128>}, {transform_indices = @transform_2, window_bounds = array<i64: 1, 16, 16, 128>}, {transform_indices = @transform_3, window_bounds = array<i64: 1, 2, 128>}]} {
    %cst = arith.constant 0.000000e+00 : f32
    %0 = vector.broadcast %cst : f32 to vector<256x128xf32>
    %c0 = arith.constant 0 : index
    %c0_0 = arith.constant 0 : index
    %c0_1 = arith.constant 0 : index
    %c0_2 = arith.constant 0 : index
    %1 = vector.load %arg1[%c0, %c0_0, %c0_1, %c0_2] : memref<1x18x18x128xbf16, #tpu.memory_space<vmem>>, vector<1x16x16x128xbf16>
    %2 = vector.shape_cast %1 : vector<1x16x16x128xbf16> to vector<16x16x128xbf16>
    %3 = vector.shape_cast %2 : vector<16x16x128xbf16> to vector<256x128xbf16>
    %c0_3 = arith.constant 0 : index
    %c0_4 = arith.constant 0 : index
    %c0_5 = arith.constant 0 : index
    %4 = vector.load %arg2[%c0_3, %c0_4, %c0_5] : memref<9x128x128xbf16, #tpu.memory_space<vmem>>, vector<1x128x128xbf16>
    %5 = vector.shape_cast %4 : vector<1x128x128xbf16> to vector<128x128xbf16>
    %cst_6 = arith.constant dense<0.000000e+00> : vector<256x128xf32>
    %6 = tpu.matmul %3, %5, %cst_6 {dimension_numbers = #tpu.dot_dimension_numbers<[1], [0], [0], [1], [0, 0, 1, 1], [], []>} : vector<256x128xbf16>, vector<128x128xbf16>, vector<256x128xf32> -> vector<256x128xf32>
    %7 = arith.addf %0, %6 : vector<256x128xf32>
    %c0_7 = arith.constant 0 : index
    %c0_8 = arith.constant 0 : index
    %c1 = arith.constant 1 : index
    %c0_9 = arith.constant 0 : index
    %8 = vector.load %arg1[%c0_7, %c0_8, %c1, %c0_9] : memref<1x18x18x128xbf16, #tpu.memory_space<vmem>>, vector<1x16x16x128xbf16>
    %9 = vector.shape_cast %8 : vector<1x16x16x128xbf16> to vector<16x16x128xbf16>
    %10 = vector.shape_cast %9 : vector<16x16x128xbf16> to vector<256x128xbf16>
    %c1_10 = arith.constant 1 : index
    %c0_11 = arith.constant 0 : index
    %c0_12 = arith.constant 0 : index
    %11 = vector.load %arg2[%c1_10, %c0_11, %c0_12] : memref<9x128x128xbf16, #tpu.memory_space<vmem>>, vector<1x128x128xbf16>
    %12 = vector.shape_cast %11 : vector<1x128x128xbf16> to vector<128x128xbf16>
    %cst_13 = arith.constant dense<0.000000e+00> : vector<256x128xf32>
    %13 = tpu.matmul %10, %12, %cst_13 {dimension_numbers = #tpu.dot_dimension_numbers<[1], [0], [0], [1], [0, 0, 1, 1], [], []>} : vector<256x128xbf16>, vector<128x128xbf16>, vector<256x128xf32> -> vector<256x128xf32>
    %14 = arith.addf %7, %13 : vector<256x128xf32>
    %c0_14 = arith.constant 0 : index
    %c0_15 = arith.constant 0 : index
    %c2 = arith.constant 2 : index
    %c0_16 = arith.constant 0 : index
    %15 = vector.load %arg1[%c0_14, %c0_15, %c2, %c0_16] : memref<1x18x18x128xbf16, #tpu.memory_space<vmem>>, vector<1x16x16x128xbf16>
    %16 = vector.shape_cast %15 : vector<1x16x16x128xbf16> to vector<16x16x128xbf16>
    %17 = vector.shape_cast %16 : vector<16x16x128xbf16> to vector<256x128xbf16>
    %c2_17 = arith.constant 2 : index
    %c0_18 = arith.constant 0 : index
    %c0_19 = arith.constant 0 : index
    %18 = vector.load %arg2[%c2_17, %c0_18, %c0_19] : memref<9x128x128xbf16, #tpu.memory_space<vmem>>, vector<1x128x128xbf16>
    %19 = vector.shape_cast %18 : vector<1x128x128xbf16> to vector<128x128xbf16>
    %cst_20 = arith.constant dense<0.000000e+00> : vector<256x128xf32>
    %20 = tpu.matmul %17, %19, %cst_20 {dimension_numbers = #tpu.dot_dimension_numbers<[1], [0], [0], [1], [0, 0, 1, 1], [], []>} : vector<256x128xbf16>, vector<128x128xbf16>, vector<256x128xf32> -> vector<256x128xf32>
    %21 = arith.addf %14, %20 : vector<256x128xf32>
    %c0_21 = arith.constant 0 : index
    %c1_22 = arith.constant 1 : index
    %c0_23 = arith.constant 0 : index
    %c0_24 = arith.constant 0 : index
    %22 = vector.load %arg1[%c0_21, %c1_22, %c0_23, %c0_24] : memref<1x18x18x128xbf16, #tpu.memory_space<vmem>>, vector<1x16x16x128xbf16>
    %23 = vector.shape_cast %22 : vector<1x16x16x128xbf16> to vector<16x16x128xbf16>
    %24 = vector.shape_cast %23 : vector<16x16x128xbf16> to vector<256x128xbf16>
    %c3 = arith.constant 3 : index
    %c0_25 = arith.constant 0 : index
    %c0_26 = arith.constant 0 : index
    %25 = vector.load %arg2[%c3, %c0_25, %c0_26] : memref<9x128x128xbf16, #tpu.memory_space<vmem>>, vector<1x128x128xbf16>
    %26 = vector.shape_cast %25 : vector<1x128x128xbf16> to vector<128x128xbf16>
    %cst_27 = arith.constant dense<0.000000e+00> : vector<256x128xf32>
    %27 = tpu.matmul %24, %26, %cst_27 {dimension_numbers = #tpu.dot_dimension_numbers<[1], [0], [0], [1], [0, 0, 1, 1], [], []>} : vector<256x128xbf16>, vector<128x128xbf16>, vector<256x128xf32> -> vector<256x128xf32>
    %28 = arith.addf %21, %27 : vector<256x128xf32>
    %c0_28 = arith.constant 0 : index
    %c1_29 = arith.constant 1 : index
    %c1_30 = arith.constant 1 : index
    %c0_31 = arith.constant 0 : index
    %29 = vector.load %arg1[%c0_28, %c1_29, %c1_30, %c0_31] : memref<1x18x18x128xbf16, #tpu.memory_space<vmem>>, vector<1x16x16x128xbf16>
    %30 = vector.shape_cast %29 : vector<1x16x16x128xbf16> to vector<16x16x128xbf16>
    %31 = vector.shape_cast %30 : vector<16x16x128xbf16> to vector<256x128xbf16>
    %c4 = arith.constant 4 : index
    %c0_32 = arith.constant 0 : index
    %c0_33 = arith.constant 0 : index
    %32 = vector.load %arg2[%c4, %c0_32, %c0_33] : memref<9x128x128xbf16, #tpu.memory_space<vmem>>, vector<1x128x128xbf16>
    %33 = vector.shape_cast %32 : vector<1x128x128xbf16> to vector<128x128xbf16>
    %cst_34 = arith.constant dense<0.000000e+00> : vector<256x128xf32>
    %34 = tpu.matmul %31, %33, %cst_34 {dimension_numbers = #tpu.dot_dimension_numbers<[1], [0], [0], [1], [0, 0, 1, 1], [], []>} : vector<256x128xbf16>, vector<128x128xbf16>, vector<256x128xf32> -> vector<256x128xf32>
    %35 = arith.addf %28, %34 : vector<256x128xf32>
    %c0_35 = arith.constant 0 : index
    %c1_36 = arith.constant 1 : index
    %c2_37 = arith.constant 2 : index
    %c0_38 = arith.constant 0 : index
    %36 = vector.load %arg1[%c0_35, %c1_36, %c2_37, %c0_38] : memref<1x18x18x128xbf16, #tpu.memory_space<vmem>>, vector<1x16x16x128xbf16>
    %37 = vector.shape_cast %36 : vector<1x16x16x128xbf16> to vector<16x16x128xbf16>
    %38 = vector.shape_cast %37 : vector<16x16x128xbf16> to vector<256x128xbf16>
    %c5 = arith.constant 5 : index
    %c0_39 = arith.constant 0 : index
    %c0_40 = arith.constant 0 : index
    %39 = vector.load %arg2[%c5, %c0_39, %c0_40] : memref<9x128x128xbf16, #tpu.memory_space<vmem>>, vector<1x128x128xbf16>
    %40 = vector.shape_cast %39 : vector<1x128x128xbf16> to vector<128x128xbf16>
    %cst_41 = arith.constant dense<0.000000e+00> : vector<256x128xf32>
    %41 = tpu.matmul %38, %40, %cst_41 {dimension_numbers = #tpu.dot_dimension_numbers<[1], [0], [0], [1], [0, 0, 1, 1], [], []>} : vector<256x128xbf16>, vector<128x128xbf16>, vector<256x128xf32> -> vector<256x128xf32>
    %42 = arith.addf %35, %41 : vector<256x128xf32>
    %c0_42 = arith.constant 0 : index
    %c2_43 = arith.constant 2 : index
    %c0_44 = arith.constant 0 : index
    %c0_45 = arith.constant 0 : index
    %43 = vector.load %arg1[%c0_42, %c2_43, %c0_44, %c0_45] : memref<1x18x18x128xbf16, #tpu.memory_space<vmem>>, vector<1x16x16x128xbf16>
    %44 = vector.shape_cast %43 : vector<1x16x16x128xbf16> to vector<16x16x128xbf16>
    %45 = vector.shape_cast %44 : vector<16x16x128xbf16> to vector<256x128xbf16>
    %c6 = arith.constant 6 : index
    %c0_46 = arith.constant 0 : index
    %c0_47 = arith.constant 0 : index
    %46 = vector.load %arg2[%c6, %c0_46, %c0_47] : memref<9x128x128xbf16, #tpu.memory_space<vmem>>, vector<1x128x128xbf16>
    %47 = vector.shape_cast %46 : vector<1x128x128xbf16> to vector<128x128xbf16>
    %cst_48 = arith.constant dense<0.000000e+00> : vector<256x128xf32>
    %48 = tpu.matmul %45, %47, %cst_48 {dimension_numbers = #tpu.dot_dimension_numbers<[1], [0], [0], [1], [0, 0, 1, 1], [], []>} : vector<256x128xbf16>, vector<128x128xbf16>, vector<256x128xf32> -> vector<256x128xf32>
    %49 = arith.addf %42, %48 : vector<256x128xf32>
    %c0_49 = arith.constant 0 : index
    %c2_50 = arith.constant 2 : index
    %c1_51 = arith.constant 1 : index
    %c0_52 = arith.constant 0 : index
    %50 = vector.load %arg1[%c0_49, %c2_50, %c1_51, %c0_52] : memref<1x18x18x128xbf16, #tpu.memory_space<vmem>>, vector<1x16x16x128xbf16>
    %51 = vector.shape_cast %50 : vector<1x16x16x128xbf16> to vector<16x16x128xbf16>
    %52 = vector.shape_cast %51 : vector<16x16x128xbf16> to vector<256x128xbf16>
    %c7 = arith.constant 7 : index
    %c0_53 = arith.constant 0 : index
    %c0_54 = arith.constant 0 : index
    %53 = vector.load %arg2[%c7, %c0_53, %c0_54] : memref<9x128x128xbf16, #tpu.memory_space<vmem>>, vector<1x128x128xbf16>
    %54 = vector.shape_cast %53 : vector<1x128x128xbf16> to vector<128x128xbf16>
    %cst_55 = arith.constant dense<0.000000e+00> : vector<256x128xf32>
    %55 = tpu.matmul %52, %54, %cst_55 {dimension_numbers = #tpu.dot_dimension_numbers<[1], [0], [0], [1], [0, 0, 1, 1], [], []>} : vector<256x128xbf16>, vector<128x128xbf16>, vector<256x128xf32> -> vector<256x128xf32>
    %56 = arith.addf %49, %55 : vector<256x128xf32>
    %c0_56 = arith.constant 0 : index
    %c2_57 = arith.constant 2 : index
    %c2_58 = arith.constant 2 : index
    %c0_59 = arith.constant 0 : index
    %57 = vector.load %arg1[%c0_56, %c2_57, %c2_58, %c0_59] : memref<1x18x18x128xbf16, #tpu.memory_space<vmem>>, vector<1x16x16x128xbf16>
    %58 = vector.shape_cast %57 : vector<1x16x16x128xbf16> to vector<16x16x128xbf16>
    %59 = vector.shape_cast %58 : vector<16x16x128xbf16> to vector<256x128xbf16>
    %c8 = arith.constant 8 : index
    %c0_60 = arith.constant 0 : index
    %c0_61 = arith.constant 0 : index
    %60 = vector.load %arg2[%c8, %c0_60, %c0_61] : memref<9x128x128xbf16, #tpu.memory_space<vmem>>, vector<1x128x128xbf16>
    %61 = vector.shape_cast %60 : vector<1x128x128xbf16> to vector<128x128xbf16>
    %cst_62 = arith.constant dense<0.000000e+00> : vector<256x128xf32>
    %62 = tpu.matmul %59, %61, %cst_62 {dimension_numbers = #tpu.dot_dimension_numbers<[1], [0], [0], [1], [0, 0, 1, 1], [], []>} : vector<256x128xbf16>, vector<128x128xbf16>, vector<256x128xf32> -> vector<256x128xf32>
    %63 = arith.addf %56, %62 : vector<256x128xf32>
    %64 = vector.shape_cast %63 : vector<256x128xf32> to vector<16x16x128xf32>
    %c0_63 = arith.constant 0 : index
    %c0_64 = arith.constant 0 : index
    %c0_65 = arith.constant 0 : index
    %c0_66 = arith.constant 0 : index
    %65 = vector.load %arg3[%c0_63, %c0_64, %c0_65, %c0_66] : memref<1x16x16x128xf32, #tpu.memory_space<vmem>>, vector<1x16x16x128xf32>
    %66 = vector.shape_cast %65 : vector<1x16x16x128xf32> to vector<16x16x128xf32>
    %67 = vector.shape_cast %64 : vector<16x16x128xf32> to vector<1x16x16x128xf32>
    tpu.vector_store %arg3[%c0_63, %c0_64, %c0_65, %c0_66], %67 {strides = array<i32>} : memref<1x16x16x128xf32, #tpu.memory_space<vmem>>, vector<1x16x16x128xf32>,
    %cst_67 = arith.constant dense<0.000000e+00> : vector<128xf32>
    %68 = vector.multi_reduction <add>, %63, %cst_67 [0] : vector<256x128xf32> to vector<128xf32>
    %69 = vector.shape_cast %68 : vector<128xf32> to vector<1x128xf32>
    %70 = arith.mulf %63, %63 : vector<256x128xf32>
    %cst_68 = arith.constant dense<0.000000e+00> : vector<128xf32>
    %71 = vector.multi_reduction <add>, %70, %cst_68 [0] : vector<256x128xf32> to vector<128xf32>
    %72 = vector.shape_cast %71 : vector<128xf32> to vector<1x128xf32>
    %73 = tpu.concatenate %69, %72 in 0 : vector<1x128xf32>, vector<1x128xf32> -> vector<2x128xf32>
    %c0_69 = arith.constant 0 : index
    %c0_70 = arith.constant 0 : index
    %c0_71 = arith.constant 0 : index
    %74 = vector.load %arg4[%c0_69, %c0_70, %c0_71] : memref<1x2x128xf32, #tpu.memory_space<vmem>>, vector<1x2x128xf32>
    %75 = vector.shape_cast %74 : vector<1x2x128xf32> to vector<2x128xf32>
    %76 = vector.shape_cast %73 : vector<2x128xf32> to vector<1x2x128xf32>
    tpu.vector_store %arg4[%c0_69, %c0_70, %c0_71], %76 {strides = array<i32>} : memref<1x2x128xf32, #tpu.memory_space<vmem>>, vector<1x2x128xf32>,
    return
  }
  func.func @transform_0(%arg0: i32) -> (i32, i32, i32, i32) {
    %c0_i32 = arith.constant 0 : i32
    %c0_i32_0 = arith.constant 0 : i32
    %c0_i32_1 = arith.constant 0 : i32
    %c0_i32_2 = arith.constant 0 : i32
    return %arg0, %c0_i32, %c0_i32_0, %c0_i32_1 : i32, i32, i32, i32
  }
  func.func @transform_1(%arg0: i32) -> (i32, i32, i32) {
    %c0_i32 = arith.constant 0 : i32
    %c0_i32_0 = arith.constant 0 : i32
    %c0_i32_1 = arith.constant 0 : i32
    %c0_i32_2 = arith.constant 0 : i32
    return %c0_i32, %c0_i32_0, %c0_i32_1 : i32, i32, i32
  }
  func.func @transform_2(%arg0: i32) -> (i32, i32, i32, i32) {
    %c0_i32 = arith.constant 0 : i32
    %c0_i32_0 = arith.constant 0 : i32
    %c0_i32_1 = arith.constant 0 : i32
    %c0_i32_2 = arith.constant 0 : i32
    return %arg0, %c0_i32, %c0_i32_0, %c0_i32_1 : i32, i32, i32, i32
  }
  func.func @transform_3(%arg0: i32) -> (i32, i32, i32) {
    %c0_i32 = arith.constant 0 : i32
    %c0_i32_0 = arith.constant 0 : i32
    %c0_i32_1 = arith.constant 0 : i32
    return %arg0, %c0_i32, %c0_i32_0 : i32, i32, i32
  }
}

module attributes {stable_mosaic.version = 11 : i64} {
  func.func @_bn_relu_pad_kernel(%arg0: i32, %arg1: memref<1x16x16x128xf32, #tpu.memory_space<vmem>>, %arg2: memref<1x1x128xf32, #tpu.memory_space<vmem>>, %arg3: memref<1x1x128xf32, #tpu.memory_space<vmem>>, %arg4: memref<1x18x18x128xbf16, #tpu.memory_space<vmem>>) attributes {dimension_semantics = [#tpu.dimension_semantics<parallel>], iteration_bounds = array<i64: 2>, scalar_prefetch = 0 : i64, scratch_operands = 0 : i64, tpu.core_type = #tpu.core_type<tc>, window_params = [{transform_indices = @transform_0, window_bounds = array<i64: 1, 16, 16, 128>}, {pipeline_mode = #tpu.pipeline_mode<synchronous>, transform_indices = @transform_1, window_bounds = array<i64: 1, 1, 128>}, {pipeline_mode = #tpu.pipeline_mode<synchronous>, transform_indices = @transform_2, window_bounds = array<i64: 1, 1, 128>}, {transform_indices = @transform_3, window_bounds = array<i64: 1, 18, 18, 128>}]} {
    %c0 = arith.constant 0 : index
    %c0_0 = arith.constant 0 : index
    %c0_1 = arith.constant 0 : index
    %c0_2 = arith.constant 0 : index
    %0 = vector.load %arg1[%c0, %c0_0, %c0_1, %c0_2] : memref<1x16x16x128xf32, #tpu.memory_space<vmem>>, vector<1x16x16x128xf32>
    %1 = vector.shape_cast %0 : vector<1x16x16x128xf32> to vector<16x16x128xf32>
    %c0_3 = arith.constant 0 : index
    %c0_4 = arith.constant 0 : index
    %c0_5 = arith.constant 0 : index
    %2 = vector.load %arg2[%c0_3, %c0_4, %c0_5] : memref<1x1x128xf32, #tpu.memory_space<vmem>>, vector<1x1x128xf32>
    %3 = vector.shape_cast %2 : vector<1x1x128xf32> to vector<1x128xf32>
    %4 = vector.shape_cast %3 : vector<1x128xf32> to vector<1x1x128xf32>
    %5 = vector.broadcast %4 : vector<1x1x128xf32> to vector<16x16x128xf32>
    %6 = arith.mulf %1, %5 : vector<16x16x128xf32>
    %c0_6 = arith.constant 0 : index
    %c0_7 = arith.constant 0 : index
    %c0_8 = arith.constant 0 : index
    %7 = vector.load %arg3[%c0_6, %c0_7, %c0_8] : memref<1x1x128xf32, #tpu.memory_space<vmem>>, vector<1x1x128xf32>
    %8 = vector.shape_cast %7 : vector<1x1x128xf32> to vector<1x128xf32>
    %9 = vector.shape_cast %8 : vector<1x128xf32> to vector<1x1x128xf32>
    %10 = vector.broadcast %9 : vector<1x1x128xf32> to vector<16x16x128xf32>
    %11 = arith.addf %6, %10 : vector<16x16x128xf32>
    %cst = arith.constant 0.000000e+00 : f32
    %12 = vector.broadcast %cst : f32 to vector<16x16x128xf32>
    %13 = arith.maximumf %11, %12 : vector<16x16x128xf32>
    %cst_9 = arith.constant 0.000000e+00 : bf16
    %14 = vector.broadcast %cst_9 : bf16 to vector<18x18x128xbf16>
    %c0_10 = arith.constant 0 : index
    %c0_11 = arith.constant 0 : index
    %c0_12 = arith.constant 0 : index
    %c0_13 = arith.constant 0 : index
    %15 = vector.load %arg4[%c0_10, %c0_11, %c0_12, %c0_13] : memref<1x18x18x128xbf16, #tpu.memory_space<vmem>>, vector<1x18x18x128xbf16>
    %16 = vector.shape_cast %15 : vector<1x18x18x128xbf16> to vector<18x18x128xbf16>
    %17 = vector.shape_cast %14 : vector<18x18x128xbf16> to vector<1x18x18x128xbf16>
    tpu.vector_store %arg4[%c0_10, %c0_11, %c0_12, %c0_13], %17 {strides = array<i32>} : memref<1x18x18x128xbf16, #tpu.memory_space<vmem>>, vector<1x18x18x128xbf16>,
    %18 = arith.truncf %13 : vector<16x16x128xf32> to vector<16x16x128xbf16>
    %c0_14 = arith.constant 0 : index
    %c1 = arith.constant 1 : index
    %c1_15 = arith.constant 1 : index
    %c0_16 = arith.constant 0 : index
    %19 = vector.load %arg4[%c0_14, %c1, %c1_15, %c0_16] : memref<1x18x18x128xbf16, #tpu.memory_space<vmem>>, vector<1x16x16x128xbf16>
    %20 = vector.shape_cast %19 : vector<1x16x16x128xbf16> to vector<16x16x128xbf16>
    %21 = vector.shape_cast %18 : vector<16x16x128xbf16> to vector<1x16x16x128xbf16>
    tpu.vector_store %arg4[%c0_14, %c1, %c1_15, %c0_16], %21 {strides = array<i32>} : memref<1x18x18x128xbf16, #tpu.memory_space<vmem>>, vector<1x16x16x128xbf16>,
    return
  }
  func.func @transform_0(%arg0: i32) -> (i32, i32, i32, i32) {
    %c0_i32 = arith.constant 0 : i32
    %c0_i32_0 = arith.constant 0 : i32
    %c0_i32_1 = arith.constant 0 : i32
    %c0_i32_2 = arith.constant 0 : i32
    return %arg0, %c0_i32, %c0_i32_0, %c0_i32_1 : i32, i32, i32, i32
  }
  func.func @transform_1(%arg0: i32) -> (i32, i32, i32) {
    %c0_i32 = arith.constant 0 : i32
    %c0_i32_0 = arith.constant 0 : i32
    %c0_i32_1 = arith.constant 0 : i32
    %c0_i32_2 = arith.constant 0 : i32
    return %c0_i32, %c0_i32_0, %c0_i32_1 : i32, i32, i32
  }
  func.func @transform_2(%arg0: i32) -> (i32, i32, i32) {
    %c0_i32 = arith.constant 0 : i32
    %c0_i32_0 = arith.constant 0 : i32
    %c0_i32_1 = arith.constant 0 : i32
    %c0_i32_2 = arith.constant 0 : i32
    return %c0_i32, %c0_i32_0, %c0_i32_1 : i32, i32, i32
  }
  func.func @transform_3(%arg0: i32) -> (i32, i32, i32, i32) {
    %c0_i32 = arith.constant 0 : i32
    %c0_i32_0 = arith.constant 0 : i32
    %c0_i32_1 = arith.constant 0 : i32
    %c0_i32_2 = arith.constant 0 : i32
    return %arg0, %c0_i32, %c0_i32_0, %c0_i32_1 : i32, i32, i32, i32
  }
}

module attributes {stable_mosaic.version = 11 : i64} {
  func.func @_bn_residual_relu_kernel(%arg0: i32, %arg1: memref<1x18x18x128xbf16, #tpu.memory_space<vmem>>, %arg2: memref<1x16x16x128xf32, #tpu.memory_space<vmem>>, %arg3: memref<1x1x128xf32, #tpu.memory_space<vmem>>, %arg4: memref<1x1x128xf32, #tpu.memory_space<vmem>>, %arg5: memref<1x16x16x128xf32, #tpu.memory_space<vmem>>) attributes {dimension_semantics = [#tpu.dimension_semantics<parallel>], iteration_bounds = array<i64: 2>, scalar_prefetch = 0 : i64, scratch_operands = 0 : i64, tpu.core_type = #tpu.core_type<tc>, window_params = [{transform_indices = @transform_0, window_bounds = array<i64: 1, 18, 18, 128>}, {transform_indices = @transform_1, window_bounds = array<i64: 1, 16, 16, 128>}, {pipeline_mode = #tpu.pipeline_mode<synchronous>, transform_indices = @transform_2, window_bounds = array<i64: 1, 1, 128>}, {pipeline_mode = #tpu.pipeline_mode<synchronous>, transform_indices = @transform_3, window_bounds = array<i64: 1, 1, 128>}, {transform_indices = @transform_4, window_bounds = array<i64: 1, 16, 16, 128>}]} {
    %c0 = arith.constant 0 : index
    %c1 = arith.constant 1 : index
    %c1_0 = arith.constant 1 : index
    %c0_1 = arith.constant 0 : index
    %0 = vector.load %arg1[%c0, %c1, %c1_0, %c0_1] : memref<1x18x18x128xbf16, #tpu.memory_space<vmem>>, vector<1x16x16x128xbf16>
    %1 = vector.shape_cast %0 : vector<1x16x16x128xbf16> to vector<16x16x128xbf16>
    %2 = arith.extf %1 : vector<16x16x128xbf16> to vector<16x16x128xf32>
    %c0_2 = arith.constant 0 : index
    %c0_3 = arith.constant 0 : index
    %c0_4 = arith.constant 0 : index
    %c0_5 = arith.constant 0 : index
    %3 = vector.load %arg2[%c0_2, %c0_3, %c0_4, %c0_5] : memref<1x16x16x128xf32, #tpu.memory_space<vmem>>, vector<1x16x16x128xf32>
    %4 = vector.shape_cast %3 : vector<1x16x16x128xf32> to vector<16x16x128xf32>
    %c0_6 = arith.constant 0 : index
    %c0_7 = arith.constant 0 : index
    %c0_8 = arith.constant 0 : index
    %5 = vector.load %arg3[%c0_6, %c0_7, %c0_8] : memref<1x1x128xf32, #tpu.memory_space<vmem>>, vector<1x1x128xf32>
    %6 = vector.shape_cast %5 : vector<1x1x128xf32> to vector<1x128xf32>
    %7 = vector.shape_cast %6 : vector<1x128xf32> to vector<1x1x128xf32>
    %8 = vector.broadcast %7 : vector<1x1x128xf32> to vector<16x16x128xf32>
    %9 = arith.mulf %4, %8 : vector<16x16x128xf32>
    %c0_9 = arith.constant 0 : index
    %c0_10 = arith.constant 0 : index
    %c0_11 = arith.constant 0 : index
    %10 = vector.load %arg4[%c0_9, %c0_10, %c0_11] : memref<1x1x128xf32, #tpu.memory_space<vmem>>, vector<1x1x128xf32>
    %11 = vector.shape_cast %10 : vector<1x1x128xf32> to vector<1x128xf32>
    %12 = vector.shape_cast %11 : vector<1x128xf32> to vector<1x1x128xf32>
    %13 = vector.broadcast %12 : vector<1x1x128xf32> to vector<16x16x128xf32>
    %14 = arith.addf %9, %13 : vector<16x16x128xf32>
    %15 = arith.addf %2, %14 : vector<16x16x128xf32>
    %cst = arith.constant 0.000000e+00 : f32
    %16 = vector.broadcast %cst : f32 to vector<16x16x128xf32>
    %17 = arith.maximumf %15, %16 : vector<16x16x128xf32>
    %c0_12 = arith.constant 0 : index
    %c0_13 = arith.constant 0 : index
    %c0_14 = arith.constant 0 : index
    %c0_15 = arith.constant 0 : index
    %18 = vector.load %arg5[%c0_12, %c0_13, %c0_14, %c0_15] : memref<1x16x16x128xf32, #tpu.memory_space<vmem>>, vector<1x16x16x128xf32>
    %19 = vector.shape_cast %18 : vector<1x16x16x128xf32> to vector<16x16x128xf32>
    %20 = vector.shape_cast %17 : vector<16x16x128xf32> to vector<1x16x16x128xf32>
    tpu.vector_store %arg5[%c0_12, %c0_13, %c0_14, %c0_15], %20 {strides = array<i32>} : memref<1x16x16x128xf32, #tpu.memory_space<vmem>>, vector<1x16x16x128xf32>,
    return
  }
  func.func @transform_0(%arg0: i32) -> (i32, i32, i32, i32) {
    %c0_i32 = arith.constant 0 : i32
    %c0_i32_0 = arith.constant 0 : i32
    %c0_i32_1 = arith.constant 0 : i32
    %c0_i32_2 = arith.constant 0 : i32
    return %arg0, %c0_i32, %c0_i32_0, %c0_i32_1 : i32, i32, i32, i32
  }
  func.func @transform_1(%arg0: i32) -> (i32, i32, i32, i32) {
    %c0_i32 = arith.constant 0 : i32
    %c0_i32_0 = arith.constant 0 : i32
    %c0_i32_1 = arith.constant 0 : i32
    %c0_i32_2 = arith.constant 0 : i32
    return %arg0, %c0_i32, %c0_i32_0, %c0_i32_1 : i32, i32, i32, i32
  }
  func.func @transform_2(%arg0: i32) -> (i32, i32, i32) {
    %c0_i32 = arith.constant 0 : i32
    %c0_i32_0 = arith.constant 0 : i32
    %c0_i32_1 = arith.constant 0 : i32
    %c0_i32_2 = arith.constant 0 : i32
    return %c0_i32, %c0_i32_0, %c0_i32_1 : i32, i32, i32
  }
  func.func @transform_3(%arg0: i32) -> (i32, i32, i32) {
    %c0_i32 = arith.constant 0 : i32
    %c0_i32_0 = arith.constant 0 : i32
    %c0_i32_1 = arith.constant 0 : i32
    %c0_i32_2 = arith.constant 0 : i32
    return %c0_i32, %c0_i32_0, %c0_i32_1 : i32, i32, i32
  }
  func.func @transform_4(%arg0: i32) -> (i32, i32, i32, i32) {
    %c0_i32 = arith.constant 0 : i32
    %c0_i32_0 = arith.constant 0 : i32
    %c0_i32_1 = arith.constant 0 : i32
    %c0_i32_2 = arith.constant 0 : i32
    return %arg0, %c0_i32, %c0_i32_0, %c0_i32_1 : i32, i32, i32, i32
  }
}

</mosaic_0001>

<llo_original>
// kernel: basic_block_forward.5
$region0: #{basic_block_forward.5}
  #allocation0 [shape = 'u32[]', space=smem, size = 0x4, offset = 0x4, fixed_abs, tag = 'smem constant byte address 0x4 - core index']
  #allocation1 [shape = 'u32[144,128]{1,0:T(1,128)}', space=vmem, size = 0x12000, scoped, tag = 'internal scratch']
  %s0 = inlined_call_operand.vmem [shape: f32[2,16,16,128], index: 0, kind: input, shape index: {}]
  %s1 = inlined_call_operand.vmem [shape: f32[1,1,128], index: 1, kind: input, shape index: {}]
  %s2 = inlined_call_operand.vmem [shape: f32[1,1,128], index: 2, kind: input, shape index: {}]
  %s3 = inlined_call_operand.vmem [shape: bf16[2,18,18,128], index: 3, kind: output, shape index: {}]
  %s4 = sld [smem:[#allocation0]]
  $region45: #{basic_block_forward.5} parent=0
    _
  %s6 = ssub.s32 1, %s4
  %s7 = scalar_select 0, %s6, %s4
  loop: start=0, step=1, limit=4
  $region2: #{basic_block_forward.5} parent=0 // loop_pre_header
    _
  $region3: #{basic_block_forward.5} parent=0 // loop_header
    %s9 = sphi 0, %s13
    %p10 = scmp.ge.s32.totalorder %s9, 4
    %s19 = sphi 0, %s21
    %s22 = sphi 0, %s19
    %s23 = sphi 0, %s22
    %s39 = sphi 0, %s23
    %s43 = sphi 0, %s43
    %s45 = sphi 0, %s43
    %s46 = sphi 0, %s45
    %s60 = sphi 0, %s46
    %s64 = sphi 0, %s64
    %s66 = sphi 0, %s64
    %s67 = sphi 0, %s66
    %s81 = sphi 0, %s67
    %s87 = sphi 0, %s89
    %s90 = sphi 0, %s87
    %s91 = sphi 0, %s90
    %s107 = sphi 0, %s91
  $region4: #{basic_block_forward.5} parent=0 // loop_header_branch
    %12 = sbr.rel (%p10) target = $region8
  $region5: #{basic_block_forward.5} parent=0 // loop_body
    %s14 = ssub.s32 %s9, 1
    %s15 = ssub.s32 %s9, 2
    %s16 = sadd.s32 %s9, 1
    %s17 = ssub.s32 %s9, %s16
    %p18 = scmp.eq.s32.totalorder %s17, 0
    %s20 = sadd.s32 %s19, 1
    %s21 = scalar_select %p18, %s19, %s20
    %p24 = pneg %p18
    %p25 = scmp.eq.s32.totalorder %s9, 1
    %p26 = por %p24, %p25
    %p27 = scmp.ne.s32.totalorder %s19, %s22
    %p28 = scmp.eq.s32.totalorder %s9, 0
    %p29 = por %p27, %p28
    %p30 = scmp.ne.s32.totalorder %s19, %s22
    %p31 = scmp.eq.s32.totalorder %s14, 1
    %p32 = por %p30, %p31
    %p33 = scmp.ne.s32.totalorder %s22, %s23
    %p34 = scmp.eq.s32.totalorder %s14, 0
    %p35 = por %p33, %p34
    %p36 = scmp.ne.s32.totalorder %s22, %s23
    %p37 = scmp.eq.s32.totalorder %s15, 1
    %p38 = por %p36, %p37
    %p40 = scmp.ne.s32.totalorder %s23, %s39
    %p41 = scmp.eq.s32.totalorder %s15, 0
    %p42 = por %p40, %p41
    %s44 = sadd.s32 %s43, 1
    %p47 = scmp.eq.s32.totalorder %s9, 1
    %p48 = scmp.ne.s32.totalorder %s43, %s45
    %p49 = scmp.eq.s32.totalorder %s9, 0
    %p50 = por %p48, %p49
    %p51 = scmp.ne.s32.totalorder %s43, %s45
    %p52 = scmp.eq.s32.totalorder %s14, 1
    %p53 = por %p51, %p52
    %p54 = scmp.ne.s32.totalorder %s45, %s46
    %p55 = scmp.eq.s32.totalorder %s14, 0
    %p56 = por %p54, %p55
    %p57 = scmp.ne.s32.totalorder %s45, %s46
    %p58 = scmp.eq.s32.totalorder %s15, 1
    %p59 = por %p57, %p58
    %p61 = scmp.ne.s32.totalorder %s46, %s60
    %p62 = scmp.eq.s32.totalorder %s15, 0
    %p63 = por %p61, %p62
    %s65 = sadd.s32 %s64, 1
    %p68 = scmp.eq.s32.totalorder %s9, 1
    %p69 = scmp.ne.s32.totalorder %s64, %s66
    %p70 = scmp.eq.s32.totalorder %s9, 0
    %p71 = por %p69, %p70
    %p72 = scmp.ne.s32.totalorder %s64, %s66
    %p73 = scmp.eq.s32.totalorder %s14, 1
    %p74 = por %p72, %p73
    %p75 = scmp.ne.s32.totalorder %s66, %s67
    %p76 = scmp.eq.s32.totalorder %s14, 0
    %p77 = por %p75, %p76
    %p78 = scmp.ne.s32.totalorder %s66, %s67
    %p79 = scmp.eq.s32.totalorder %s15, 1
    %p80 = por %p78, %p79
    %p82 = scmp.ne.s32.totalorder %s67, %s81
    %p83 = scmp.eq.s32.totalorder %s15, 0
    %p84 = por %p82, %p83
    %s85 = ssub.s32 %s9, %s16
    %p86 = scmp.eq.s32.totalorder %s85, 0
    %s88 = sadd.s32 %s87, 1
    %s89 = scalar_select %p86, %s87, %s88
    %p92 = pneg %p86
    %p93 = scmp.eq.s32.totalorder %s9, 1
    %p94 = por %p92, %p93
    %p95 = scmp.ne.s32.totalorder %s87, %s90
    %p96 = scmp.eq.s32.totalorder %s9, 0
    %p97 = por %p95, %p96
    %p98 = scmp.ne.s32.totalorder %s87, %s90
    %p99 = scmp.eq.s32.totalorder %s14, 1
    %p100 = por %p98, %p99
    %p101 = scmp.ne.s32.totalorder %s90, %s91
    %p102 = scmp.eq.s32.totalorder %s14, 0
    %p103 = por %p101, %p102
    %p104 = scmp.ne.s32.totalorder %s90, %s91
    %p105 = scmp.eq.s32.totalorder %s15, 1
    %p106 = por %p104, %p105
    %p108 = scmp.ne.s32.totalorder %s91, %s107
    %p109 = scmp.eq.s32.totalorder %s15, 0
    %p110 = por %p108, %p109
    %p111 = scmp.le.s32.totalorder 1, %s9
    %p112 = scmp.lt.s32.totalorder %s9, 3
    %p113 = pnand %p111, %p112
    %p114 = pneg %p113
    // Predicated region
    $region9: #{basic_block_forward.5} parent=5 // pred_check
      _
    $region10: #{basic_block_forward.5} parent=5 // pred_check_branch
      %116 = sbr.rel (%p113) target = $region12
    $region11: #{basic_block_forward.5} parent=5 // pred_region
      %s117 = ssub.s32 %s9, 1
      // Predicated region
      $region13: #{basic_block_forward.5} parent=11 // pred_check
        %p118 = pneg %p56
      $region14: #{basic_block_forward.5} parent=11 // pred_check_branch
        %120 = sbr.rel (%p118) target = $region16
      $region15: #{basic_block_forward.5} parent=11 // pred_region
        _
      $region16: #{basic_block_forward.5} parent=11 // pred_fallthru
        _
      // Predicated region
      $region17: #{basic_block_forward.5} parent=11 // pred_check
        %p121 = pneg %p77
      $region18: #{basic_block_forward.5} parent=11 // pred_check_branch
        %123 = sbr.rel (%p121) target = $region20
      $region19: #{basic_block_forward.5} parent=11 // pred_region
        _
      $region20: #{basic_block_forward.5} parent=11 // pred_fallthru
        _
    $region12: #{basic_block_forward.5} parent=5 // pred_fallthru
      _
    %p124 = scmp.lt.s32.totalorder %s9, 2
    // Predicated region
    $region21: #{basic_block_forward.5} parent=5 // pred_check
      %p125 = pneg %p124
    $region22: #{basic_block_forward.5} parent=5 // pred_check_branch
      %127 = sbr.rel (%p125) target = $region24
    $region23: #{basic_block_forward.5} parent=5 // pred_region
      // Predicated region
      $region25: #{basic_block_forward.5} parent=23 // pred_check
        %p128 = pneg %p29
      $region26: #{basic_block_forward.5} parent=23 // pred_check_branch
        %130 = sbr.rel (%p128) target = $region28
      $region27: #{basic_block_forward.5} parent=23 // pred_region
        %p131 = scmp.lt.s32.totalorder %s9, 1
        %s132 = scalar_select %p131, %s9, 1
        %s133 = smul.addr %s132, 32
        %s134 = smul.addr %s133, 8
        %s135 = scalar_lea.vmem %s0, %s134
      $region28: #{basic_block_forward.5} parent=23 // pred_fallthru
        _
    $region24: #{basic_block_forward.5} parent=5 // pred_fallthru
      _
    %p136 = scmp.le.s32.totalorder 1, %s9
    %p137 = scmp.lt.s32.totalorder %s9, 3
    %p138 = pnand %p136, %p137
    %p139 = pneg %p138
    // Predicated region
    $region29: #{basic_block_forward.5} parent=5 // pred_check
      _
    $region30: #{basic_block_forward.5} parent=5 // pred_check_branch
      %141 = sbr.rel (%p138) target = $region32
    $region31: #{basic_block_forward.5} parent=5 // pred_region
      %s142 = ssub.s32 %s9, 1
      %p143 = scmp.lt.s32.totalorder %s14, 1
      %s144 = scalar_select %p143, %s14, 1
      %s145 = smul.addr %s144, 32
      %s146 = smul.addr %s145, 8
      %s147 = scalar_lea.vmem %s0, %s146
      %p148 = pneg %p35
      %p149 = pneg %p32
      %p150 = pneg %p56
      %p151 = pneg %p53
      %p152 = pneg %p77
      %p153 = pneg %p74
      %p154 = pneg %p103
      %p155 = pneg %p100
      %p156 = scmp.lt.s32.totalorder %s14, 1
      %s157 = scalar_select %p156, %s14, 1
      %s158 = smul.addr %s157, 54
      %s159 = smul.addr %s158, 4
      %s160 = scalar_lea.vmem %s3, %s159
      %p161 = scmp.lt.s32.totalorder %s14, 1
      %s162 = scalar_select %p161, %s14, 1
      %s163 = smul.addr %s162, 32
      %s164 = smul.addr %s163, 8
      %s165 = scalar_lea.vmem %s0, %s164
      %p166 = scmp.lt.s32.totalorder %s14, 1
      %s167 = scalar_select %p166, %s14, 1
      %s168 = smul.addr %s167, 54
      %s169 = smul.addr %s168, 4
      %s170 = scalar_lea.vmem %s3, %s169
      %v172 = vld [vmem:[%s165] sm:$0xff]
      %v173 = vld [vmem:[%s165 + $0x8] sm:$0xff]
      %v174 = vld [vmem:[%s165 + $0x10] sm:$0xff]
      %v175 = vld [vmem:[%s165 + $0x18] sm:$0xff]
      %v176 = vld [vmem:[%s165 + $0x20] sm:$0xff]
      %v177 = vld [vmem:[%s165 + $0x28] sm:$0xff]
      %v178 = vld [vmem:[%s165 + $0x30] sm:$0xff]
      %v179 = vld [vmem:[%s165 + $0x38] sm:$0xff]
      %v180 = vld [vmem:[%s165 + $0x40] sm:$0xff]
      %v181 = vld [vmem:[%s165 + $0x48] sm:$0xff]
      %v182 = vld [vmem:[%s165 + $0x50] sm:$0xff]
      %v183 = vld [vmem:[%s165 + $0x58] sm:$0xff]
      %v184 = vld [vmem:[%s165 + $0x60] sm:$0xff]
      %v185 = vld [vmem:[%s165 + $0x68] sm:$0xff]
      %v186 = vld [vmem:[%s165 + $0x70] sm:$0xff]
      %v187 = vld [vmem:[%s165 + $0x78] sm:$0xff]
      %v188 = vld [vmem:[%s165 + $0x80] sm:$0xff]
      %v189 = vld [vmem:[%s165 + $0x88] sm:$0xff]
      %v190 = vld [vmem:[%s165 + $0x90] sm:$0xff]
      %v191 = vld [vmem:[%s165 + $0x98] sm:$0xff]
      %v192 = vld [vmem:[%s165 + $0xa0] sm:$0xff]
      %v193 = vld [vmem:[%s165 + $0xa8] sm:$0xff]
      %v194 = vld [vmem:[%s165 + $0xb0] sm:$0xff]
      %v195 = vld [vmem:[%s165 + $0xb8] sm:$0xff]
      %v196 = vld [vmem:[%s165 + $0xc0] sm:$0xff]
      %v197 = vld [vmem:[%s165 + $0xc8] sm:$0xff]
      %v198 = vld [vmem:[%s165 + $0xd0] sm:$0xff]
      %v199 = vld [vmem:[%s165 + $0xd8] sm:$0xff]
      %v200 = vld [vmem:[%s165 + $0xe0] sm:$0xff]
      %v201 = vld [vmem:[%s165 + $0xe8] sm:$0xff]
      %v202 = vld [vmem:[%s165 + $0xf0] sm:$0xff]
      %v203 = vld [vmem:[%s165 + $0xf8] sm:$0xff]
      %v204 = vld [vmem:[%s1] sm:$0x1]
      %v206 = vlaneseq
      %v207 = vshrl.u32 %v206, 7
      %v208 = vsub.s32 0, %v207
      %v209 = vrot.slane %v204, %v208
      %v211 = vmul.f32 %v172, %v209
      %v212 = vmul.f32 %v173, %v209
      %v213 = vmul.f32 %v174, %v209
      %v214 = vmul.f32 %v175, %v209
      %v215 = vmul.f32 %v176, %v209
      %v216 = vmul.f32 %v177, %v209
      %v217 = vmul.f32 %v178, %v209
      %v218 = vmul.f32 %v179, %v209
      %v219 = vmul.f32 %v180, %v209
      %v220 = vmul.f32 %v181, %v209
      %v221 = vmul.f32 %v182, %v209
      %v222 = vmul.f32 %v183, %v209
      %v223 = vmul.f32 %v184, %v209
      %v224 = vmul.f32 %v185, %v209
      %v225 = vmul.f32 %v186, %v209
      %v226 = vmul.f32 %v187, %v209
      %v227 = vmul.f32 %v188, %v209
      %v228 = vmul.f32 %v189, %v209
      %v229 = vmul.f32 %v190, %v209
      %v230 = vmul.f32 %v191, %v209
      %v231 = vmul.f32 %v192, %v209
      %v232 = vmul.f32 %v193, %v209
      %v233 = vmul.f32 %v194, %v209
      %v234 = vmul.f32 %v195, %v209
      %v235 = vmul.f32 %v196, %v209
      %v236 = vmul.f32 %v197, %v209
      %v237 = vmul.f32 %v198, %v209
      %v238 = vmul.f32 %v199, %v209
      %v239 = vmul.f32 %v200, %v209
      %v240 = vmul.f32 %v201, %v209
      %v241 = vmul.f32 %v202, %v209
      %v242 = vmul.f32 %v203, %v209
      %v243 = vld [vmem:[%s2] sm:$0x1]
      %v245 = vlaneseq
      %v246 = vshrl.u32 %v245, 7
      %v247 = vsub.s32 0, %v246
      %v248 = vrot.slane %v243, %v247
      %v250 = vadd.f32 %v211, %v248
      %v251 = vadd.f32 %v212, %v248
      %v252 = vadd.f32 %v213, %v248
      %v253 = vadd.f32 %v214, %v248
      %v254 = vadd.f32 %v215, %v248
      %v255 = vadd.f32 %v216, %v248
      %v256 = vadd.f32 %v217, %v248
      %v257 = vadd.f32 %v218, %v248
      %v258 = vadd.f32 %v219, %v248
      %v259 = vadd.f32 %v220, %v248
      %v260 = vadd.f32 %v221, %v248
      %v261 = vadd.f32 %v222, %v248
      %v262 = vadd.f32 %v223, %v248
      %v263 = vadd.f32 %v224, %v248
      %v264 = vadd.f32 %v225, %v248
      %v265 = vadd.f32 %v226, %v248
      %v266 = vadd.f32 %v227, %v248
      %v267 = vadd.f32 %v228, %v248
      %v268 = vadd.f32 %v229, %v248
      %v269 = vadd.f32 %v230, %v248
      %v270 = vadd.f32 %v231, %v248
      %v271 = vadd.f32 %v232, %v248
      %v272 = vadd.f32 %v233, %v248
      %v273 = vadd.f32 %v234, %v248
      %v274 = vadd.f32 %v235, %v248
      %v275 = vadd.f32 %v236, %v248
      %v276 = vadd.f32 %v237, %v248
      %v277 = vadd.f32 %v238, %v248
      %v278 = vadd.f32 %v239, %v248
      %v279 = vadd.f32 %v240, %v248
      %v280 = vadd.f32 %v241, %v248
      %v281 = vadd.f32 %v242, %v248
      %v282 = vmax.f32 %v250, 0.0
      %v283 = vmax.f32 %v251, 0.0
      %v284 = vmax.f32 %v252, 0.0
      %v285 = vmax.f32 %v253, 0.0
      %v286 = vmax.f32 %v254, 0.0
      %v287 = vmax.f32 %v255, 0.0
      %v288 = vmax.f32 %v256, 0.0
      %v289 = vmax.f32 %v257, 0.0
      %v290 = vmax.f32 %v258, 0.0
      %v291 = vmax.f32 %v259, 0.0
      %v292 = vmax.f32 %v260, 0.0
      %v293 = vmax.f32 %v261, 0.0
      %v294 = vmax.f32 %v262, 0.0
      %v295 = vmax.f32 %v263, 0.0
      %v296 = vmax.f32 %v264, 0.0
      %v297 = vmax.f32 %v265, 0.0
      %v298 = vmax.f32 %v266, 0.0
      %v299 = vmax.f32 %v267, 0.0
      %v300 = vmax.f32 %v268, 0.0
      %v301 = vmax.f32 %v269, 0.0
      %v302 = vmax.f32 %v270, 0.0
      %v303 = vmax.f32 %v271, 0.0
      %v304 = vmax.f32 %v272, 0.0
      %v305 = vmax.f32 %v273, 0.0
      %v306 = vmax.f32 %v274, 0.0
      %v307 = vmax.f32 %v275, 0.0
      %v308 = vmax.f32 %v276, 0.0
      %v309 = vmax.f32 %v277, 0.0
      %v310 = vmax.f32 %v278, 0.0
      %v311 = vmax.f32 %v279, 0.0
      %v312 = vmax.f32 %v280, 0.0
      %v313 = vmax.f32 %v281, 0.0
      %314 = vst [vmem:[%s170] sm:$0xf] 0
      %315 = vst [vmem:[%s170 + $0x4] sm:$0xf] 0
      %316 = vst [vmem:[%s170 + $0x8] sm:$0x1] 0
      %317 = vst [vmem:[%s170 + $0xc] sm:$0xf] 0
      %318 = vst [vmem:[%s170 + $0x10] sm:$0xf] 0
      %319 = vst [vmem:[%s170 + $0x14] sm:$0x1] 0
      %320 = vst [vmem:[%s170 + $0x18] sm:$0xf] 0
      %321 = vst [vmem:[%s170 + $0x1c] sm:$0xf] 0
      %322 = vst [vmem:[%s170 + $0x20] sm:$0x1] 0
      %323 = vst [vmem:[%s170 + $0x24] sm:$0xf] 0
      %324 = vst [vmem:[%s170 + $0x28] sm:$0xf] 0
      %325 = vst [vmem:[%s170 + $0x2c] sm:$0x1] 0
      %326 = vst [vmem:[%s170 + $0x30] sm:$0xf] 0
      %327 = vst [vmem:[%s170 + $0x34] sm:$0xf] 0
      %328 = vst [vmem:[%s170 + $0x38] sm:$0x1] 0
      %329 = vst [vmem:[%s170 + $0x3c] sm:$0xf] 0
      %330 = vst [vmem:[%s170 + $0x40] sm:$0xf] 0
      %331 = vst [vmem:[%s170 + $0x44] sm:$0x1] 0
      %332 = vst [vmem:[%s170 + $0x48] sm:$0xf] 0
      %333 = vst [vmem:[%s170 + $0x4c] sm:$0xf] 0
      %334 = vst [vmem:[%s170 + $0x50] sm:$0x1] 0
      %335 = vst [vmem:[%s170 + $0x54] sm:$0xf] 0
      %336 = vst [vmem:[%s170 + $0x58] sm:$0xf] 0
      %337 = vst [vmem:[%s170 + $0x5c] sm:$0x1] 0
      %338 = vst [vmem:[%s170 + $0x60] sm:$0xf] 0
      %339 = vst [vmem:[%s170 + $0x64] sm:$0xf] 0
      %340 = vst [vmem:[%s170 + $0x68] sm:$0x1] 0
      %341 = vst [vmem:[%s170 + $0x6c] sm:$0xf] 0
      %342 = vst [vmem:[%s170 + $0x70] sm:$0xf] 0
      %343 = vst [vmem:[%s170 + $0x74] sm:$0x1] 0
      %344 = vst [vmem:[%s170 + $0x78] sm:$0xf] 0
      %345 = vst [vmem:[%s170 + $0x7c] sm:$0xf] 0
      %346 = vst [vmem:[%s170 + $0x80] sm:$0x1] 0
      %347 = vst [vmem:[%s170 + $0x84] sm:$0xf] 0
      %348 = vst [vmem:[%s170 + $0x88] sm:$0xf] 0
      %349 = vst [vmem:[%s170 + $0x8c] sm:$0x1] 0
      %350 = vst [vmem:[%s170 + $0x90] sm:$0xf] 0
      %351 = vst [vmem:[%s170 + $0x94] sm:$0xf] 0
      %352 = vst [vmem:[%s170 + $0x98] sm:$0x1] 0
      %353 = vst [vmem:[%s170 + $0x9c] sm:$0xf] 0
      %354 = vst [vmem:[%s170 + $0xa0] sm:$0xf] 0
      %355 = vst [vmem:[%s170 + $0xa4] sm:$0x1] 0
      %356 = vst [vmem:[%s170 + $0xa8] sm:$0xf] 0
      %357 = vst [vmem:[%s170 + $0xac] sm:$0xf] 0
      %358 = vst [vmem:[%s170 + $0xb0] sm:$0x1] 0
      %359 = vst [vmem:[%s170 + $0xb4] sm:$0xf] 0
      %360 = vst [vmem:[%s170 + $0xb8] sm:$0xf] 0
      %361 = vst [vmem:[%s170 + $0xbc] sm:$0x1] 0
      %362 = vst [vmem:[%s170 + $0xc0] sm:$0xf] 0
      %363 = vst [vmem:[%s170 + $0xc4] sm:$0xf] 0
      %364 = vst [vmem:[%s170 + $0xc8] sm:$0x1] 0
      %365 = vst [vmem:[%s170 + $0xcc] sm:$0xf] 0
      %366 = vst [vmem:[%s170 + $0xd0] sm:$0xf] 0
      %367 = vst [vmem:[%s170 + $0xd4] sm:$0x1] 0
      %v368 = vpack.c.bf16 %v283, %v282
      %v369 = vpack.c.bf16 %v285, %v284
      %v370 = vpack.c.bf16 %v287, %v286
      %v371 = vpack.c.bf16 %v289, %v288
      %v372 = vpack.c.bf16 %v291, %v290
      %v373 = vpack.c.bf16 %v293, %v292
      %v374 = vpack.c.bf16 %v295, %v294
      %v375 = vpack.c.bf16 %v297, %v296
      %v376 = vpack.c.bf16 %v299, %v298
      %v377 = vpack.c.bf16 %v301, %v300
      %v378 = vpack.c.bf16 %v303, %v302
      %v379 = vpack.c.bf16 %v305, %v304
      %v380 = vpack.c.bf16 %v307, %v306
      %v381 = vpack.c.bf16 %v309, %v308
      %v382 = vpack.c.bf16 %v311, %v310
      %v383 = vpack.c.bf16 %v313, %v312
      %v400 = vunpack.c.l.b16 %v368
      %v401 = vunpack.c.h.b16 %v368
      %v402 = vunpack.c.l.b16 %v369
      %v403 = vunpack.c.h.b16 %v369
      %v404 = vunpack.c.l.b16 %v370
      %v405 = vunpack.c.h.b16 %v370
      %v406 = vunpack.c.l.b16 %v371
      %v407 = vunpack.c.h.b16 %v371
      %v408 = vunpack.c.l.b16 %v372
      %v409 = vunpack.c.h.b16 %v372
      %v410 = vunpack.c.l.b16 %v373
      %v411 = vunpack.c.h.b16 %v373
      %v412 = vunpack.c.l.b16 %v374
      %v413 = vunpack.c.h.b16 %v374
      %v414 = vunpack.c.l.b16 %v375
      %v415 = vunpack.c.h.b16 %v375
      %v416 = vunpack.c.l.b16 %v376
      %v417 = vunpack.c.h.b16 %v376
      %v418 = vunpack.c.l.b16 %v377
      %v419 = vunpack.c.h.b16 %v377
      %v420 = vunpack.c.l.b16 %v378
      %v421 = vunpack.c.h.b16 %v378
      %v422 = vunpack.c.l.b16 %v379
      %v423 = vunpack.c.h.b16 %v379
      %v424 = vunpack.c.l.b16 %v380
      %v425 = vunpack.c.h.b16 %v380
      %v426 = vunpack.c.l.b16 %v381
      %v427 = vunpack.c.h.b16 %v381
      %v428 = vunpack.c.l.b16 %v382
      %v429 = vunpack.c.h.b16 %v382
      %v430 = vunpack.c.l.b16 %v383
      %v431 = vunpack.c.h.b16 %v383
      %v432 = vpack.c.b16 %v400, %v400
      %v433 = vpack.c.b16 %v401, %v401
      %v434 = vpack.c.b16 %v402, %v402
      %v435 = vpack.c.b16 %v403, %v403
      %v436 = vpack.c.b16 %v404, %v404
      %v437 = vpack.c.b16 %v405, %v405
      %v438 = vpack.c.b16 %v406, %v406
      %v439 = vpack.c.b16 %v407, %v407
      %v440 = vpack.c.b16 %v408, %v408
      %v441 = vpack.c.b16 %v409, %v409
      %v442 = vpack.c.b16 %v410, %v410
      %v443 = vpack.c.b16 %v411, %v411
      %v444 = vpack.c.b16 %v412, %v412
      %v445 = vpack.c.b16 %v413, %v413
      %v446 = vpack.c.b16 %v414, %v414
      %v447 = vpack.c.b16 %v415, %v415
      %v448 = vpack.c.b16 %v416, %v416
      %v449 = vpack.c.b16 %v417, %v417
      %v450 = vpack.c.b16 %v418, %v418
      %v451 = vpack.c.b16 %v419, %v419
      %v452 = vpack.c.b16 %v420, %v420
      %v453 = vpack.c.b16 %v421, %v421
      %v454 = vpack.c.b16 %v422, %v422
      %v455 = vpack.c.b16 %v423, %v423
      %v456 = vpack.c.b16 %v424, %v424
      %v457 = vpack.c.b16 %v425, %v425
      %v458 = vpack.c.b16 %v426, %v426
      %v459 = vpack.c.b16 %v427, %v427
      %v460 = vpack.c.b16 %v428, %v428
      %v461 = vpack.c.b16 %v429, %v429
      %v462 = vpack.c.b16 %v430, %v430
      %v463 = vpack.c.b16 %v431, %v431
      %vm464 = vsmask.f32 256
      %vm465 = vsmask.f32 4368
      %vm466 = vmor %vm464, %vm465
      %v468 = vshrl.u32 %v432, 16
      %v470 = vrot.slane %v468, 7
      %v471 = vshll.u32 %v432, 16
      %v473 = vor.u32 %v470, %v471
      %v474 = vrot.slane %v470, 4
      %v476 = vshrl.u32 %v433, 16
      %v478 = vrot.slane %v476, 7
      %v479 = vshll.u32 %v433, 16
      %v481 = vor.u32 %v478, %v479
      %v482 = vsel %vm466, %v474, %v481
      %v483 = vrot.slane %v478, 4
      %v485 = vshrl.u32 %v434, 16
      %v487 = vrot.slane %v485, 7
      %v488 = vshll.u32 %v434, 16
      %v490 = vor.u32 %v487, %v488
      %v491 = vrot.slane %v487, 4
      %v493 = vshrl.u32 %v435, 16
      %v495 = vrot.slane %v493, 7
      %v496 = vshll.u32 %v435, 16
      %v498 = vor.u32 %v495, %v496
      %v499 = vsel %vm466, %v491, %v498
      %v500 = vrot.slane %v495, 4
      %v502 = vshrl.u32 %v436, 16
      %v504 = vrot.slane %v502, 7
      %v505 = vshll.u32 %v436, 16
      %v507 = vor.u32 %v504, %v505
      %v508 = vrot.slane %v504, 4
      %v510 = vshrl.u32 %v437, 16
      %v512 = vrot.slane %v510, 7
      %v513 = vshll.u32 %v437, 16
      %v515 = vor.u32 %v512, %v513
      %v516 = vsel %vm466, %v508, %v515
      %v517 = vrot.slane %v512, 4
      %v519 = vshrl.u32 %v438, 16
      %v521 = vrot.slane %v519, 7
      %v522 = vshll.u32 %v438, 16
      %v524 = vor.u32 %v521, %v522
      %v525 = vrot.slane %v521, 4
      %v527 = vshrl.u32 %v439, 16
      %v529 = vrot.slane %v527, 7
      %v530 = vshll.u32 %v439, 16
      %v532 = vor.u32 %v529, %v530
      %v533 = vsel %vm466, %v525, %v532
      %v534 = vrot.slane %v529, 4
      %v536 = vshrl.u32 %v440, 16
      %v538 = vrot.slane %v536, 7
      %v539 = vshll.u32 %v440, 16
      %v541 = vor.u32 %v538, %v539
      %v542 = vrot.slane %v538, 4
      %v544 = vshrl.u32 %v441, 16
      %v546 = vrot.slane %v544, 7
      %v547 = vshll.u32 %v441, 16
      %v549 = vor.u32 %v546, %v547
      %v550 = vsel %vm466, %v542, %v549
      %v551 = vrot.slane %v546, 4
      %v553 = vshrl.u32 %v442, 16
      %v555 = vrot.slane %v553, 7
      %v556 = vshll.u32 %v442, 16
      %v558 = vor.u32 %v555, %v556
      %v559 = vrot.slane %v555, 4
      %v561 = vshrl.u32 %v443, 16
      %v563 = vrot.slane %v561, 7
      %v564 = vshll.u32 %v443, 16
      %v566 = vor.u32 %v563, %v564
      %v567 = vsel %vm466, %v559, %v566
      %v568 = vrot.slane %v563, 4
      %v570 = vshrl.u32 %v444, 16
      %v572 = vrot.slane %v570, 7
      %v573 = vshll.u32 %v444, 16
      %v575 = vor.u32 %v572, %v573
      %v576 = vrot.slane %v572, 4
      %v578 = vshrl.u32 %v445, 16
      %v580 = vrot.slane %v578, 7
      %v581 = vshll.u32 %v445, 16
      %v583 = vor.u32 %v580, %v581
      %v584 = vsel %vm466, %v576, %v583
      %v585 = vrot.slane %v580, 4
      %v587 = vshrl.u32 %v446, 16
      %v589 = vrot.slane %v587, 7
      %v590 = vshll.u32 %v446, 16
      %v592 = vor.u32 %v589, %v590
      %v593 = vrot.slane %v589, 4
      %v595 = vshrl.u32 %v447, 16
      %v597 = vrot.slane %v595, 7
      %v598 = vshll.u32 %v447, 16
      %v600 = vor.u32 %v597, %v598
      %v601 = vsel %vm466, %v593, %v600
      %v602 = vrot.slane %v597, 4
      %v604 = vshrl.u32 %v448, 16
      %v606 = vrot.slane %v604, 7
      %v607 = vshll.u32 %v448, 16
      %v609 = vor.u32 %v606, %v607
      %v610 = vrot.slane %v606, 4
      %v612 = vshrl.u32 %v449, 16
      %v614 = vrot.slane %v612, 7
      %v615 = vshll.u32 %v449, 16
      %v617 = vor.u32 %v614, %v615
      %v618 = vsel %vm466, %v610, %v617
      %v619 = vrot.slane %v614, 4
      %v621 = vshrl.u32 %v450, 16
      %v623 = vrot.slane %v621, 7
      %v624 = vshll.u32 %v450, 16
      %v626 = vor.u32 %v623, %v624
      %v627 = vrot.slane %v623, 4
      %v629 = vshrl.u32 %v451, 16
      %v631 = vrot.slane %v629, 7
      %v632 = vshll.u32 %v451, 16
      %v634 = vor.u32 %v631, %v632
      %v635 = vsel %vm466, %v627, %v634
      %v636 = vrot.slane %v631, 4
      %v638 = vshrl.u32 %v452, 16
      %v640 = vrot.slane %v638, 7
      %v641 = vshll.u32 %v452, 16
      %v643 = vor.u32 %v640, %v641
      %v644 = vrot.slane %v640, 4
      %v646 = vshrl.u32 %v453, 16
      %v648 = vrot.slane %v646, 7
      %v649 = vshll.u32 %v453, 16
      %v651 = vor.u32 %v648, %v649
      %v652 = vsel %vm466, %v644, %v651
      %v653 = vrot.slane %v648, 4
      %v655 = vshrl.u32 %v454, 16
      %v657 = vrot.slane %v655, 7
      %v658 = vshll.u32 %v454, 16
      %v660 = vor.u32 %v657, %v658
      %v661 = vrot.slane %v657, 4
      %v663 = vshrl.u32 %v455, 16
      %v665 = vrot.slane %v663, 7
      %v666 = vshll.u32 %v455, 16
      %v668 = vor.u32 %v665, %v666
      %v669 = vsel %vm466, %v661, %v668
      %v670 = vrot.slane %v665, 4
      %v672 = vshrl.u32 %v456, 16
      %v674 = vrot.slane %v672, 7
      %v675 = vshll.u32 %v456, 16
      %v677 = vor.u32 %v674, %v675
      %v678 = vrot.slane %v674, 4
      %v680 = vshrl.u32 %v457, 16
      %v682 = vrot.slane %v680, 7
      %v683 = vshll.u32 %v457, 16
      %v685 = vor.u32 %v682, %v683
      %v686 = vsel %vm466, %v678, %v685
      %v687 = vrot.slane %v682, 4
      %v689 = vshrl.u32 %v458, 16
      %v691 = vrot.slane %v689, 7
      %v692 = vshll.u32 %v458, 16
      %v694 = vor.u32 %v691, %v692
      %v695 = vrot.slane %v691, 4
      %v697 = vshrl.u32 %v459, 16
      %v699 = vrot.slane %v697, 7
      %v700 = vshll.u32 %v459, 16
      %v702 = vor.u32 %v699, %v700
      %v703 = vsel %vm466, %v695, %v702
      %v704 = vrot.slane %v699, 4
      %v706 = vshrl.u32 %v460, 16
      %v708 = vrot.slane %v706, 7
      %v709 = vshll.u32 %v460, 16
      %v711 = vor.u32 %v708, %v709
      %v712 = vrot.slane %v708, 4
      %v714 = vshrl.u32 %v461, 16
      %v716 = vrot.slane %v714, 7
      %v717 = vshll.u32 %v461, 16
      %v719 = vor.u32 %v716, %v717
      %v720 = vsel %vm466, %v712, %v719
      %v721 = vrot.slane %v716, 4
      %v723 = vshrl.u32 %v462, 16
      %v725 = vrot.slane %v723, 7
      %v726 = vshll.u32 %v462, 16
      %v728 = vor.u32 %v725, %v726
      %v729 = vrot.slane %v725, 4
      %v731 = vshrl.u32 %v463, 16
      %v733 = vrot.slane %v731, 7
      %v734 = vshll.u32 %v463, 16
      %v736 = vor.u32 %v733, %v734
      %v737 = vsel %vm466, %v729, %v736
      %v738 = vrot.slane %v733, 4
      %s787 = scalar_lea.vmem %s170, 12
      %vm788 = vcmask 1043456
      %vm789 = vsmask.f32 7938
      %vm790 = vmand %vm788, %vm789
      %v791 = vld [vmem:[%s787] sm:$0xf]
      %v792 = vsel %vm790, %v473, %v791
      %793 = vst [vmem:[%s787] sm:$0xf] %v792
      %794 = vst [vmem:[%s787 + $0x4] sm:$0xf] %v482
      %vm795 = vcmask 1040384
      %vm796 = vmand %vm795, %vm464
      %v797 = vld [vmem:[%s787 + $0x8] sm:$0x1]
      %v798 = vsel %vm796, %v483, %v797
      %799 = vst [vmem:[%s787 + $0x8] sm:$0x1] %v798
      %v800 = vld [vmem:[%s787 + $0xc] sm:$0xf]
      %v801 = vsel %vm790, %v490, %v800
      %802 = vst [vmem:[%s787 + $0xc] sm:$0xf] %v801
      %803 = vst [vmem:[%s787 + $0x10] sm:$0xf] %v499
      %v804 = vld [vmem:[%s787 + $0x14] sm:$0x1]
      %v805 = vsel %vm796, %v500, %v804
      %806 = vst [vmem:[%s787 + $0x14] sm:$0x1] %v805
      %v807 = vld [vmem:[%s787 + $0x18] sm:$0xf]
      %v808 = vsel %vm790, %v507, %v807
      %809 = vst [vmem:[%s787 + $0x18] sm:$0xf] %v808
      %810 = vst [vmem:[%s787 + $0x1c] sm:$0xf] %v516
      %v811 = vld [vmem:[%s787 + $0x20] sm:$0x1]
      %v812 = vsel %vm796, %v517, %v811
      %813 = vst [vmem:[%s787 + $0x20] sm:$0x1] %v812
      %v814 = vld [vmem:[%s787 + $0x24] sm:$0xf]
      %v815 = vsel %vm790, %v524, %v814
      %816 = vst [vmem:[%s787 + $0x24] sm:$0xf] %v815
      %817 = vst [vmem:[%s787 + $0x28] sm:$0xf] %v533
      %v818 = vld [vmem:[%s787 + $0x2c] sm:$0x1]
      %v819 = vsel %vm796, %v534, %v818
      %820 = vst [vmem:[%s787 + $0x2c] sm:$0x1] %v819
      %v821 = vld [vmem:[%s787 + $0x30] sm:$0xf]
      %v822 = vsel %vm790, %v541, %v821
      %823 = vst [vmem:[%s787 + $0x30] sm:$0xf] %v822
      %824 = vst [vmem:[%s787 + $0x34] sm:$0xf] %v550
      %v825 = vld [vmem:[%s787 + $0x38] sm:$0x1]
      %v826 = vsel %vm796, %v551, %v825
      %827 = vst [vmem:[%s787 + $0x38] sm:$0x1] %v826
      %v828 = vld [vmem:[%s787 + $0x3c] sm:$0xf]
      %v829 = vsel %vm790, %v558, %v828
      %830 = vst [vmem:[%s787 + $0x3c] sm:$0xf] %v829
      %831 = vst [vmem:[%s787 + $0x40] sm:$0xf] %v567
      %v832 = vld [vmem:[%s787 + $0x44] sm:$0x1]
      %v833 = vsel %vm796, %v568, %v832
      %834 = vst [vmem:[%s787 + $0x44] sm:$0x1] %v833
      %v835 = vld [vmem:[%s787 + $0x48] sm:$0xf]
      %v836 = vsel %vm790, %v575, %v835
      %837 = vst [vmem:[%s787 + $0x48] sm:$0xf] %v836
      %838 = vst [vmem:[%s787 + $0x4c] sm:$0xf] %v584
      %v839 = vld [vmem:[%s787 + $0x50] sm:$0x1]
      %v840 = vsel %vm796, %v585, %v839
      %841 = vst [vmem:[%s787 + $0x50] sm:$0x1] %v840
      %v842 = vld [vmem:[%s787 + $0x54] sm:$0xf]
      %v843 = vsel %vm790, %v592, %v842
      %844 = vst [vmem:[%s787 + $0x54] sm:$0xf] %v843
      %845 = vst [vmem:[%s787 + $0x58] sm:$0xf] %v601
      %v846 = vld [vmem:[%s787 + $0x5c] sm:$0x1]
      %v847 = vsel %vm796, %v602, %v846
      %848 = vst [vmem:[%s787 + $0x5c] sm:$0x1] %v847
      %v849 = vld [vmem:[%s787 + $0x60] sm:$0xf]
      %v850 = vsel %vm790, %v609, %v849
      %851 = vst [vmem:[%s787 + $0x60] sm:$0xf] %v850
      %852 = vst [vmem:[%s787 + $0x64] sm:$0xf] %v618
      %v853 = vld [vmem:[%s787 + $0x68] sm:$0x1]
      %v854 = vsel %vm796, %v619, %v853
      %855 = vst [vmem:[%s787 + $0x68] sm:$0x1] %v854
      %v856 = vld [vmem:[%s787 + $0x6c] sm:$0xf]
      %v857 = vsel %vm790, %v626, %v856
      %858 = vst [vmem:[%s787 + $0x6c] sm:$0xf] %v857
      %859 = vst [vmem:[%s787 + $0x70] sm:$0xf] %v635
      %v860 = vld [vmem:[%s787 + $0x74] sm:$0x1]
      %v861 = vsel %vm796, %v636, %v860
      %862 = vst [vmem:[%s787 + $0x74] sm:$0x1] %v861
      %v863 = vld [vmem:[%s787 + $0x78] sm:$0xf]
      %v864 = vsel %vm790, %v643, %v863
      %865 = vst [vmem:[%s787 + $0x78] sm:$0xf] %v864
      %866 = vst [vmem:[%s787 + $0x7c] sm:$0xf] %v652
      %v867 = vld [vmem:[%s787 + $0x80] sm:$0x1]
      %v868 = vsel %vm796, %v653, %v867
      %869 = vst [vmem:[%s787 + $0x80] sm:$0x1] %v868
      %v870 = vld [vmem:[%s787 + $0x84] sm:$0xf]
      %v871 = vsel %vm790, %v660, %v870
      %872 = vst [vmem:[%s787 + $0x84] sm:$0xf] %v871
      %873 = vst [vmem:[%s787 + $0x88] sm:$0xf] %v669
      %v874 = vld [vmem:[%s787 + $0x8c] sm:$0x1]
      %v875 = vsel %vm796, %v670, %v874
      %876 = vst [vmem:[%s787 + $0x8c] sm:$0x1] %v875
      %v877 = vld [vmem:[%s787 + $0x90] sm:$0xf]
      %v878 = vsel %vm790, %v677, %v877
      %879 = vst [vmem:[%s787 + $0x90] sm:$0xf] %v878
      %880 = vst [vmem:[%s787 + $0x94] sm:$0xf] %v686
      %v881 = vld [vmem:[%s787 + $0x98] sm:$0x1]
      %v882 = vsel %vm796, %v687, %v881
      %883 = vst [vmem:[%s787 + $0x98] sm:$0x1] %v882
      %v884 = vld [vmem:[%s787 + $0x9c] sm:$0xf]
      %v885 = vsel %vm790, %v694, %v884
      %886 = vst [vmem:[%s787 + $0x9c] sm:$0xf] %v885
      %887 = vst [vmem:[%s787 + $0xa0] sm:$0xf] %v703
      %v888 = vld [vmem:[%s787 + $0xa4] sm:$0x1]
      %v889 = vsel %vm796, %v704, %v888
      %890 = vst [vmem:[%s787 + $0xa4] sm:$0x1] %v889
      %v891 = vld [vmem:[%s787 + $0xa8] sm:$0xf]
      %v892 = vsel %vm790, %v711, %v891
      %893 = vst [vmem:[%s787 + $0xa8] sm:$0xf] %v892
      %894 = vst [vmem:[%s787 + $0xac] sm:$0xf] %v720
      %v895 = vld [vmem:[%s787 + $0xb0] sm:$0x1]
      %v896 = vsel %vm796, %v721, %v895
      %897 = vst [vmem:[%s787 + $0xb0] sm:$0x1] %v896
      %v898 = vld [vmem:[%s787 + $0xb4] sm:$0xf]
      %v899 = vsel %vm790, %v728, %v898
      %900 = vst [vmem:[%s787 + $0xb4] sm:$0xf] %v899
      %901 = vst [vmem:[%s787 + $0xb8] sm:$0xf] %v737
      %v902 = vld [vmem:[%s787 + $0xbc] sm:$0x1]
      %v903 = vsel %vm796, %v738, %v902
      %904 = vst [vmem:[%s787 + $0xbc] sm:$0x1] %v903
      %p905 = scmp.lt.s32.totalorder %s14, 1
      %s906 = scalar_select %p905, %s14, 1
      %s907 = smul.addr %s906, 54
      %s908 = smul.addr %s907, 4
      %s909 = scalar_lea.vmem %s3, %s908
      // Predicated region
      $region33: #{basic_block_forward.5} parent=31 // pred_check
        %p910 = pneg %p100
      $region34: #{basic_block_forward.5} parent=31 // pred_check_branch
        %912 = sbr.rel (%p910) target = $region36
      $region35: #{basic_block_forward.5} parent=31 // pred_region
        _
      $region36: #{basic_block_forward.5} parent=31 // pred_fallthru
        _
    $region32: #{basic_block_forward.5} parent=5 // pred_fallthru
      _
    %p913 = scmp.le.s32.totalorder 2, %s9
    // Predicated region
    $region37: #{basic_block_forward.5} parent=5 // pred_check
      %p914 = pneg %p913
    $region38: #{basic_block_forward.5} parent=5 // pred_check_branch
      %916 = sbr.rel (%p914) target = $region40
    $region39: #{basic_block_forward.5} parent=5 // pred_region
      %s917 = ssub.s32 %s9, 2
      // Predicated region
      $region41: #{basic_block_forward.5} parent=39 // pred_check
        %p918 = pneg %p106
      $region42: #{basic_block_forward.5} parent=39 // pred_check_branch
        %920 = sbr.rel (%p918) target = $region44
      $region43: #{basic_block_forward.5} parent=39 // pred_region
        %p921 = scmp.lt.s32.totalorder %s15, 1
        %s922 = scalar_select %p921, %s15, 1
        %s923 = smul.addr %s922, 54
        %s924 = smul.addr %s923, 4
        %s925 = scalar_lea.vmem %s3, %s924
      $region44: #{basic_block_forward.5} parent=39 // pred_fallthru
        _
    $region40: #{basic_block_forward.5} parent=5 // pred_fallthru
      _
  $region6: #{basic_block_forward.5} parent=0 // loop_footer
    %s13 = sadd.s32 1, %s9
  $region7: #{basic_block_forward.5} parent=0 // loop_footer_branch
    %8 = sbr.rel target = $region3
  $region8: #{basic_block_forward.5} parent=0 // loop_exit
    _

// kernel: basic_block_forward.7
$region0: #{basic_block_forward.7}
  #allocation0 [shape = 'u32[]', space=smem, size = 0x4, offset = 0x4, fixed_abs, tag = 'smem constant byte address 0x4 - core index']
  #allocation1 [shape = 'u32[144,128]{1,0:T(1,128)}', space=vmem, size = 0x12000, scoped, tag = 'internal scratch']
  %s0 = inlined_call_operand.vmem [shape: bf16[2,18,18,128], index: 0, kind: input, shape index: {}]
  %s1 = inlined_call_operand.vmem [shape: f32[2,16,16,128], index: 1, kind: input, shape index: {}]
  %s2 = inlined_call_operand.vmem [shape: f32[1,1,128], index: 2, kind: input, shape index: {}]
  %s3 = inlined_call_operand.vmem [shape: f32[1,1,128], index: 3, kind: input, shape index: {}]
  %s4 = inlined_call_operand.vmem [shape: f32[2,16,16,128], index: 4, kind: output, shape index: {}]
  %s5 = sld [smem:[#allocation0]]
  $region49: #{basic_block_forward.7} parent=0
    _
  %s7 = ssub.s32 1, %s5
  %s8 = scalar_select 0, %s7, %s5
  loop: start=0, step=1, limit=4
  $region2: #{basic_block_forward.7} parent=0 // loop_pre_header
    _
  $region3: #{basic_block_forward.7} parent=0 // loop_header
    %s10 = sphi 0, %s14
    %p11 = scmp.ge.s32.totalorder %s10, 4
    %s20 = sphi 0, %s22
    %s23 = sphi 0, %s20
    %s24 = sphi 0, %s23
    %s40 = sphi 0, %s24
    %s46 = sphi 0, %s48
    %s49 = sphi 0, %s46
    %s50 = sphi 0, %s49
    %s66 = sphi 0, %s50
    %s70 = sphi 0, %s70
    %s72 = sphi 0, %s70
    %s73 = sphi 0, %s72
    %s87 = sphi 0, %s73
    %s91 = sphi 0, %s91
    %s93 = sphi 0, %s91
    %s94 = sphi 0, %s93
    %s108 = sphi 0, %s94
    %s114 = sphi 0, %s116
    %s117 = sphi 0, %s114
    %s118 = sphi 0, %s117
    %s134 = sphi 0, %s118
  $region4: #{basic_block_forward.7} parent=0 // loop_header_branch
    %13 = sbr.rel (%p11) target = $region8
  $region5: #{basic_block_forward.7} parent=0 // loop_body
    %s15 = ssub.s32 %s10, 1
    %s16 = ssub.s32 %s10, 2
    %s17 = sadd.s32 %s10, 1
    %s18 = ssub.s32 %s10, %s17
    %p19 = scmp.eq.s32.totalorder %s18, 0
    %s21 = sadd.s32 %s20, 1
    %s22 = scalar_select %p19, %s20, %s21
    %p25 = pneg %p19
    %p26 = scmp.eq.s32.totalorder %s10, 1
    %p27 = por %p25, %p26
    %p28 = scmp.ne.s32.totalorder %s20, %s23
    %p29 = scmp.eq.s32.totalorder %s10, 0
    %p30 = por %p28, %p29
    %p31 = scmp.ne.s32.totalorder %s20, %s23
    %p32 = scmp.eq.s32.totalorder %s15, 1
    %p33 = por %p31, %p32
    %p34 = scmp.ne.s32.totalorder %s23, %s24
    %p35 = scmp.eq.s32.totalorder %s15, 0
    %p36 = por %p34, %p35
    %p37 = scmp.ne.s32.totalorder %s23, %s24
    %p38 = scmp.eq.s32.totalorder %s16, 1
    %p39 = por %p37, %p38
    %p41 = scmp.ne.s32.totalorder %s24, %s40
    %p42 = scmp.eq.s32.totalorder %s16, 0
    %p43 = por %p41, %p42
    %s44 = ssub.s32 %s10, %s17
    %p45 = scmp.eq.s32.totalorder %s44, 0
    %s47 = sadd.s32 %s46, 1
    %s48 = scalar_select %p45, %s46, %s47
    %p51 = pneg %p45
    %p52 = scmp.eq.s32.totalorder %s10, 1
    %p53 = por %p51, %p52
    %p54 = scmp.ne.s32.totalorder %s46, %s49
    %p55 = scmp.eq.s32.totalorder %s10, 0
    %p56 = por %p54, %p55
    %p57 = scmp.ne.s32.totalorder %s46, %s49
    %p58 = scmp.eq.s32.totalorder %s15, 1
    %p59 = por %p57, %p58
    %p60 = scmp.ne.s32.totalorder %s49, %s50
    %p61 = scmp.eq.s32.totalorder %s15, 0
    %p62 = por %p60, %p61
    %p63 = scmp.ne.s32.totalorder %s49, %s50
    %p64 = scmp.eq.s32.totalorder %s16, 1
    %p65 = por %p63, %p64
    %p67 = scmp.ne.s32.totalorder %s50, %s66
    %p68 = scmp.eq.s32.totalorder %s16, 0
    %p69 = por %p67, %p68
    %s71 = sadd.s32 %s70, 1
    %p74 = scmp.eq.s32.totalorder %s10, 1
    %p75 = scmp.ne.s32.totalorder %s70, %s72
    %p76 = scmp.eq.s32.totalorder %s10, 0
    %p77 = por %p75, %p76
    %p78 = scmp.ne.s32.totalorder %s70, %s72
    %p79 = scmp.eq.s32.totalorder %s15, 1
    %p80 = por %p78, %p79
    %p81 = scmp.ne.s32.totalorder %s72, %s73
    %p82 = scmp.eq.s32.totalorder %s15, 0
    %p83 = por %p81, %p82
    %p84 = scmp.ne.s32.totalorder %s72, %s73
    %p85 = scmp.eq.s32.totalorder %s16, 1
    %p86 = por %p84, %p85
    %p88 = scmp.ne.s32.totalorder %s73, %s87
    %p89 = scmp.eq.s32.totalorder %s16, 0
    %p90 = por %p88, %p89
    %s92 = sadd.s32 %s91, 1
    %p95 = scmp.eq.s32.totalorder %s10, 1
    %p96 = scmp.ne.s32.totalorder %s91, %s93
    %p97 = scmp.eq.s32.totalorder %s10, 0
    %p98 = por %p96, %p97
    %p99 = scmp.ne.s32.totalorder %s91, %s93
    %p100 = scmp.eq.s32.totalorder %s15, 1
    %p101 = por %p99, %p100
    %p102 = scmp.ne.s32.totalorder %s93, %s94
    %p103 = scmp.eq.s32.totalorder %s15, 0
    %p104 = por %p102, %p103
    %p105 = scmp.ne.s32.totalorder %s93, %s94
    %p106 = scmp.eq.s32.totalorder %s16, 1
    %p107 = por %p105, %p106
    %p109 = scmp.ne.s32.totalorder %s94, %s108
    %p110 = scmp.eq.s32.totalorder %s16, 0
    %p111 = por %p109, %p110
    %s112 = ssub.s32 %s10, %s17
    %p113 = scmp.eq.s32.totalorder %s112, 0
    %s115 = sadd.s32 %s114, 1
    %s116 = scalar_select %p113, %s114, %s115
    %p119 = pneg %p113
    %p120 = scmp.eq.s32.totalorder %s10, 1
    %p121 = por %p119, %p120
    %p122 = scmp.ne.s32.totalorder %s114, %s117
    %p123 = scmp.eq.s32.totalorder %s10, 0
    %p124 = por %p122, %p123
    %p125 = scmp.ne.s32.totalorder %s114, %s117
    %p126 = scmp.eq.s32.totalorder %s15, 1
    %p127 = por %p125, %p126
    %p128 = scmp.ne.s32.totalorder %s117, %s118
    %p129 = scmp.eq.s32.totalorder %s15, 0
    %p130 = por %p128, %p129
    %p131 = scmp.ne.s32.totalorder %s117, %s118
    %p132 = scmp.eq.s32.totalorder %s16, 1
    %p133 = por %p131, %p132
    %p135 = scmp.ne.s32.totalorder %s118, %s134
    %p136 = scmp.eq.s32.totalorder %s16, 0
    %p137 = por %p135, %p136
    %p138 = scmp.le.s32.totalorder 1, %s10
    %p139 = scmp.lt.s32.totalorder %s10, 3
    %p140 = pnand %p138, %p139
    %p141 = pneg %p140
    // Predicated region
    $region9: #{basic_block_forward.7} parent=5 // pred_check
      _
    $region10: #{basic_block_forward.7} parent=5 // pred_check_branch
      %143 = sbr.rel (%p140) target = $region12
    $region11: #{basic_block_forward.7} parent=5 // pred_region
      %s144 = ssub.s32 %s10, 1
      // Predicated region
      $region13: #{basic_block_forward.7} parent=11 // pred_check
        %p145 = pneg %p83
      $region14: #{basic_block_forward.7} parent=11 // pred_check_branch
        %147 = sbr.rel (%p145) target = $region16
      $region15: #{basic_block_forward.7} parent=11 // pred_region
        _
      $region16: #{basic_block_forward.7} parent=11 // pred_fallthru
        _
      // Predicated region
      $region17: #{basic_block_forward.7} parent=11 // pred_check
        %p148 = pneg %p104
      $region18: #{basic_block_forward.7} parent=11 // pred_check_branch
        %150 = sbr.rel (%p148) target = $region20
      $region19: #{basic_block_forward.7} parent=11 // pred_region
        _
      $region20: #{basic_block_forward.7} parent=11 // pred_fallthru
        _
    $region12: #{basic_block_forward.7} parent=5 // pred_fallthru
      _
    %p151 = scmp.lt.s32.totalorder %s10, 2
    // Predicated region
    $region21: #{basic_block_forward.7} parent=5 // pred_check
      %p152 = pneg %p151
    $region22: #{basic_block_forward.7} parent=5 // pred_check_branch
      %154 = sbr.rel (%p152) target = $region24
    $region23: #{basic_block_forward.7} parent=5 // pred_region
      // Predicated region
      $region25: #{basic_block_forward.7} parent=23 // pred_check
        %p155 = pneg %p30
      $region26: #{basic_block_forward.7} parent=23 // pred_check_branch
        %157 = sbr.rel (%p155) target = $region28
      $region27: #{basic_block_forward.7} parent=23 // pred_region
        %p158 = scmp.lt.s32.totalorder %s10, 1
        %s159 = scalar_select %p158, %s10, 1
        %s160 = smul.addr %s159, 54
        %s161 = smul.addr %s160, 4
        %s162 = scalar_lea.vmem %s0, %s161
      $region28: #{basic_block_forward.7} parent=23 // pred_fallthru
        _
      // Predicated region
      $region29: #{basic_block_forward.7} parent=23 // pred_check
        %p163 = pneg %p56
      $region30: #{basic_block_forward.7} parent=23 // pred_check_branch
        %165 = sbr.rel (%p163) target = $region32
      $region31: #{basic_block_forward.7} parent=23 // pred_region
        %p166 = scmp.lt.s32.totalorder %s10, 1
        %s167 = scalar_select %p166, %s10, 1
        %s168 = smul.addr %s167, 32
        %s169 = smul.addr %s168, 8
        %s170 = scalar_lea.vmem %s1, %s169
      $region32: #{basic_block_forward.7} parent=23 // pred_fallthru
        _
    $region24: #{basic_block_forward.7} parent=5 // pred_fallthru
      _
    %p171 = scmp.le.s32.totalorder 1, %s10
    %p172 = scmp.lt.s32.totalorder %s10, 3
    %p173 = pnand %p171, %p172
    %p174 = pneg %p173
    // Predicated region
    $region33: #{basic_block_forward.7} parent=5 // pred_check
      _
    $region34: #{basic_block_forward.7} parent=5 // pred_check_branch
      %176 = sbr.rel (%p173) target = $region36
    $region35: #{basic_block_forward.7} parent=5 // pred_region
      %s177 = ssub.s32 %s10, 1
      %p178 = scmp.lt.s32.totalorder %s15, 1
      %s179 = scalar_select %p178, %s15, 1
      %s180 = smul.addr %s179, 54
      %s181 = smul.addr %s180, 4
      %s182 = scalar_lea.vmem %s0, %s181
      %p183 = pneg %p36
      %p184 = pneg %p33
      %p185 = scmp.lt.s32.totalorder %s15, 1
      %s186 = scalar_select %p185, %s15, 1
      %s187 = smul.addr %s186, 32
      %s188 = smul.addr %s187, 8
      %s189 = scalar_lea.vmem %s1, %s188
      %p190 = pneg %p62
      %p191 = pneg %p59
      %p192 = pneg %p83
      %p193 = pneg %p80
      %p194 = pneg %p104
      %p195 = pneg %p101
      %p196 = pneg %p130
      %p197 = pneg %p127
      %p198 = scmp.lt.s32.totalorder %s15, 1
      %s199 = scalar_select %p198, %s15, 1
      %s200 = smul.addr %s199, 32
      %s201 = smul.addr %s200, 8
      %s202 = scalar_lea.vmem %s4, %s201
      %p203 = scmp.lt.s32.totalorder %s15, 1
      %s204 = scalar_select %p203, %s15, 1
      %s205 = smul.addr %s204, 54
      %s206 = smul.addr %s205, 4
      %s207 = scalar_lea.vmem %s0, %s206
      %p208 = scmp.lt.s32.totalorder %s15, 1
      %s209 = scalar_select %p208, %s15, 1
      %s210 = smul.addr %s209, 32
      %s211 = smul.addr %s210, 8
      %s212 = scalar_lea.vmem %s1, %s211
      %p213 = scmp.lt.s32.totalorder %s15, 1
      %s214 = scalar_select %p213, %s15, 1
      %s215 = smul.addr %s214, 32
      %s216 = smul.addr %s215, 8
      %s217 = scalar_lea.vmem %s4, %s216
      %s218 = scalar_lea.vmem %s207, 12
      %v219 = vld [vmem:[%s218] sm:$0xf]
      %v220 = vld [vmem:[%s218 + $0x4] sm:$0xf]
      %v221 = vld [vmem:[%s218 + $0x8] sm:$0x1]
      %v222 = vld [vmem:[%s218 + $0xc] sm:$0xf]
      %v223 = vld [vmem:[%s218 + $0x10] sm:$0xf]
      %v224 = vld [vmem:[%s218 + $0x14] sm:$0x1]
      %v225 = vld [vmem:[%s218 + $0x18] sm:$0xf]
      %v226 = vld [vmem:[%s218 + $0x1c] sm:$0xf]
      %v227 = vld [vmem:[%s218 + $0x20] sm:$0x1]
      %v228 = vld [vmem:[%s218 + $0x24] sm:$0xf]
      %v229 = vld [vmem:[%s218 + $0x28] sm:$0xf]
      %v230 = vld [vmem:[%s218 + $0x2c] sm:$0x1]
      %v231 = vld [vmem:[%s218 + $0x30] sm:$0xf]
      %v232 = vld [vmem:[%s218 + $0x34] sm:$0xf]
      %v233 = vld [vmem:[%s218 + $0x38] sm:$0x1]
      %v234 = vld [vmem:[%s218 + $0x3c] sm:$0xf]
      %v235 = vld [vmem:[%s218 + $0x40] sm:$0xf]
      %v236 = vld [vmem:[%s218 + $0x44] sm:$0x1]
      %v237 = vld [vmem:[%s218 + $0x48] sm:$0xf]
      %v238 = vld [vmem:[%s218 + $0x4c] sm:$0xf]
      %v239 = vld [vmem:[%s218 + $0x50] sm:$0x1]
      %v240 = vld [vmem:[%s218 + $0x54] sm:$0xf]
      %v241 = vld [vmem:[%s218 + $0x58] sm:$0xf]
      %v242 = vld [vmem:[%s218 + $0x5c] sm:$0x1]
      %v243 = vld [vmem:[%s218 + $0x60] sm:$0xf]
      %v244 = vld [vmem:[%s218 + $0x64] sm:$0xf]
      %v245 = vld [vmem:[%s218 + $0x68] sm:$0x1]
      %v246 = vld [vmem:[%s218 + $0x6c] sm:$0xf]
      %v247 = vld [vmem:[%s218 + $0x70] sm:$0xf]
      %v248 = vld [vmem:[%s218 + $0x74] sm:$0x1]
      %v249 = vld [vmem:[%s218 + $0x78] sm:$0xf]
      %v250 = vld [vmem:[%s218 + $0x7c] sm:$0xf]
      %v251 = vld [vmem:[%s218 + $0x80] sm:$0x1]
      %v252 = vld [vmem:[%s218 + $0x84] sm:$0xf]
      %v253 = vld [vmem:[%s218 + $0x88] sm:$0xf]
      %v254 = vld [vmem:[%s218 + $0x8c] sm:$0x1]
      %v255 = vld [vmem:[%s218 + $0x90] sm:$0xf]
      %v256 = vld [vmem:[%s218 + $0x94] sm:$0xf]
      %v257 = vld [vmem:[%s218 + $0x98] sm:$0x1]
      %v258 = vld [vmem:[%s218 + $0x9c] sm:$0xf]
      %v259 = vld [vmem:[%s218 + $0xa0] sm:$0xf]
      %v260 = vld [vmem:[%s218 + $0xa4] sm:$0x1]
      %v261 = vld [vmem:[%s218 + $0xa8] sm:$0xf]
      %v262 = vld [vmem:[%s218 + $0xac] sm:$0xf]
      %v263 = vld [vmem:[%s218 + $0xb0] sm:$0x1]
      %v264 = vld [vmem:[%s218 + $0xb4] sm:$0xf]
      %v265 = vld [vmem:[%s218 + $0xb8] sm:$0xf]
      %v266 = vld [vmem:[%s218 + $0xbc] sm:$0x1]
      %v267 = vunpack.c.l.bf16 %v219
      %v268 = vunpack.c.l.bf16 %v220
      %v269 = vunpack.c.l.bf16 %v221
      %v270 = vunpack.c.l.bf16 %v222
      %v271 = vunpack.c.l.bf16 %v223
      %v272 = vunpack.c.l.bf16 %v224
      %v273 = vunpack.c.l.bf16 %v225
      %v274 = vunpack.c.l.bf16 %v226
      %v275 = vunpack.c.l.bf16 %v227
      %v276 = vunpack.c.l.bf16 %v228
      %v277 = vunpack.c.l.bf16 %v229
      %v278 = vunpack.c.l.bf16 %v230
      %v279 = vunpack.c.l.bf16 %v231
      %v280 = vunpack.c.l.bf16 %v232
      %v281 = vunpack.c.l.bf16 %v233
      %v282 = vunpack.c.l.bf16 %v234
      %v283 = vunpack.c.l.bf16 %v235
      %v284 = vunpack.c.l.bf16 %v236
      %v285 = vunpack.c.l.bf16 %v237
      %v286 = vunpack.c.l.bf16 %v238
      %v287 = vunpack.c.l.bf16 %v239
      %v288 = vunpack.c.l.bf16 %v240
      %v289 = vunpack.c.l.bf16 %v241
      %v290 = vunpack.c.l.bf16 %v242
      %v291 = vunpack.c.l.bf16 %v243
      %v292 = vunpack.c.l.bf16 %v244
      %v293 = vunpack.c.l.bf16 %v245
      %v294 = vunpack.c.l.bf16 %v246
      %v295 = vunpack.c.l.bf16 %v247
      %v296 = vunpack.c.l.bf16 %v248
      %v297 = vunpack.c.l.bf16 %v249
      %v298 = vunpack.c.l.bf16 %v250
      %v299 = vunpack.c.l.bf16 %v251
      %v300 = vunpack.c.l.bf16 %v252
      %v301 = vunpack.c.l.bf16 %v253
      %v302 = vunpack.c.l.bf16 %v254
      %v303 = vunpack.c.l.bf16 %v255
      %v304 = vunpack.c.l.bf16 %v256
      %v305 = vunpack.c.l.bf16 %v257
      %v306 = vunpack.c.l.bf16 %v258
      %v307 = vunpack.c.l.bf16 %v259
      %v308 = vunpack.c.l.bf16 %v260
      %v309 = vunpack.c.l.bf16 %v261
      %v310 = vunpack.c.l.bf16 %v262
      %v311 = vunpack.c.l.bf16 %v263
      %v312 = vunpack.c.l.bf16 %v264
      %v313 = vunpack.c.l.bf16 %v265
      %v314 = vunpack.c.l.bf16 %v266
      %v315 = vld [vmem:[%s212] sm:$0xff]
      %v316 = vld [vmem:[%s212 + $0x8] sm:$0xff]
      %v317 = vld [vmem:[%s212 + $0x10] sm:$0xff]
      %v318 = vld [vmem:[%s212 + $0x18] sm:$0xff]
      %v319 = vld [vmem:[%s212 + $0x20] sm:$0xff]
      %v320 = vld [vmem:[%s212 + $0x28] sm:$0xff]
      %v321 = vld [vmem:[%s212 + $0x30] sm:$0xff]
      %v322 = vld [vmem:[%s212 + $0x38] sm:$0xff]
      %v323 = vld [vmem:[%s212 + $0x40] sm:$0xff]
      %v324 = vld [vmem:[%s212 + $0x48] sm:$0xff]
      %v325 = vld [vmem:[%s212 + $0x50] sm:$0xff]
      %v326 = vld [vmem:[%s212 + $0x58] sm:$0xff]
      %v327 = vld [vmem:[%s212 + $0x60] sm:$0xff]
      %v328 = vld [vmem:[%s212 + $0x68] sm:$0xff]
      %v329 = vld [vmem:[%s212 + $0x70] sm:$0xff]
      %v330 = vld [vmem:[%s212 + $0x78] sm:$0xff]
      %v331 = vld [vmem:[%s212 + $0x80] sm:$0xff]
      %v332 = vld [vmem:[%s212 + $0x88] sm:$0xff]
      %v333 = vld [vmem:[%s212 + $0x90] sm:$0xff]
      %v334 = vld [vmem:[%s212 + $0x98] sm:$0xff]
      %v335 = vld [vmem:[%s212 + $0xa0] sm:$0xff]
      %v336 = vld [vmem:[%s212 + $0xa8] sm:$0xff]
      %v337 = vld [vmem:[%s212 + $0xb0] sm:$0xff]
      %v338 = vld [vmem:[%s212 + $0xb8] sm:$0xff]
      %v339 = vld [vmem:[%s212 + $0xc0] sm:$0xff]
      %v340 = vld [vmem:[%s212 + $0xc8] sm:$0xff]
      %v341 = vld [vmem:[%s212 + $0xd0] sm:$0xff]
      %v342 = vld [vmem:[%s212 + $0xd8] sm:$0xff]
      %v343 = vld [vmem:[%s212 + $0xe0] sm:$0xff]
      %v344 = vld [vmem:[%s212 + $0xe8] sm:$0xff]
      %v345 = vld [vmem:[%s212 + $0xf0] sm:$0xff]
      %v346 = vld [vmem:[%s212 + $0xf8] sm:$0xff]
      %v347 = vld [vmem:[%s2] sm:$0x1]
      %v349 = vlaneseq
      %v350 = vshrl.u32 %v349, 7
      %v351 = vsub.s32 0, %v350
      %v352 = vrot.slane %v347, %v351
      %v354 = vmul.f32 %v315, %v352
      %v355 = vmul.f32 %v316, %v352
      %v356 = vmul.f32 %v317, %v352
      %v357 = vmul.f32 %v318, %v352
      %v358 = vmul.f32 %v319, %v352
      %v359 = vmul.f32 %v320, %v352
      %v360 = vmul.f32 %v321, %v352
      %v361 = vmul.f32 %v322, %v352
      %v362 = vmul.f32 %v323, %v352
      %v363 = vmul.f32 %v324, %v352
      %v364 = vmul.f32 %v325, %v352
      %v365 = vmul.f32 %v326, %v352
      %v366 = vmul.f32 %v327, %v352
      %v367 = vmul.f32 %v328, %v352
      %v368 = vmul.f32 %v329, %v352
      %v369 = vmul.f32 %v330, %v352
      %v370 = vmul.f32 %v331, %v352
      %v371 = vmul.f32 %v332, %v352
      %v372 = vmul.f32 %v333, %v352
      %v373 = vmul.f32 %v334, %v352
      %v374 = vmul.f32 %v335, %v352
      %v375 = vmul.f32 %v336, %v352
      %v376 = vmul.f32 %v337, %v352
      %v377 = vmul.f32 %v338, %v352
      %v378 = vmul.f32 %v339, %v352
      %v379 = vmul.f32 %v340, %v352
      %v380 = vmul.f32 %v341, %v352
      %v381 = vmul.f32 %v342, %v352
      %v382 = vmul.f32 %v343, %v352
      %v383 = vmul.f32 %v344, %v352
      %v384 = vmul.f32 %v345, %v352
      %v385 = vmul.f32 %v346, %v352
      %v386 = vld [vmem:[%s3] sm:$0x1]
      %v388 = vlaneseq
      %v389 = vshrl.u32 %v388, 7
      %v390 = vsub.s32 0, %v389
      %v391 = vrot.slane %v386, %v390
      %v393 = vadd.f32 %v354, %v391
      %v394 = vadd.f32 %v355, %v391
      %v395 = vadd.f32 %v356, %v391
      %v396 = vadd.f32 %v357, %v391
      %v397 = vadd.f32 %v358, %v391
      %v398 = vadd.f32 %v359, %v391
      %v399 = vadd.f32 %v360, %v391
      %v400 = vadd.f32 %v361, %v391
      %v401 = vadd.f32 %v362, %v391
      %v402 = vadd.f32 %v363, %v391
      %v403 = vadd.f32 %v364, %v391
      %v404 = vadd.f32 %v365, %v391
      %v405 = vadd.f32 %v366, %v391
      %v406 = vadd.f32 %v367, %v391
      %v407 = vadd.f32 %v368, %v391
      %v408 = vadd.f32 %v369, %v391
      %v409 = vadd.f32 %v370, %v391
      %v410 = vadd.f32 %v371, %v391
      %v411 = vadd.f32 %v372, %v391
      %v412 = vadd.f32 %v373, %v391
      %v413 = vadd.f32 %v374, %v391
      %v414 = vadd.f32 %v375, %v391
      %v415 = vadd.f32 %v376, %v391
      %v416 = vadd.f32 %v377, %v391
      %v417 = vadd.f32 %v378, %v391
      %v418 = vadd.f32 %v379, %v391
      %v419 = vadd.f32 %v380, %v391
      %v420 = vadd.f32 %v381, %v391
      %v421 = vadd.f32 %v382, %v391
      %v422 = vadd.f32 %v383, %v391
      %v423 = vadd.f32 %v384, %v391
      %v424 = vadd.f32 %v385, %v391
      %vm457 = vcmask 1040384
      %v458 = vrot.slane %v393, 7
      %v459 = vrot.slane %v394, 7
      %v460 = vsel %vm457, %v458, %v459
      %v461 = vrot.slane %v395, 7
      %v462 = vrot.slane %v396, 7
      %v463 = vsel %vm457, %v461, %v462
      %v464 = vrot.slane %v397, 7
      %v465 = vrot.slane %v398, 7
      %v466 = vsel %vm457, %v464, %v465
      %v467 = vrot.slane %v399, 7
      %v468 = vrot.slane %v400, 7
      %v469 = vsel %vm457, %v467, %v468
      %v470 = vrot.slane %v401, 7
      %v471 = vrot.slane %v402, 7
      %v472 = vsel %vm457, %v470, %v471
      %v473 = vrot.slane %v403, 7
      %v474 = vrot.slane %v404, 7
      %v475 = vsel %vm457, %v473, %v474
      %v476 = vrot.slane %v405, 7
      %v477 = vrot.slane %v406, 7
      %v478 = vsel %vm457, %v476, %v477
      %v479 = vrot.slane %v407, 7
      %v480 = vrot.slane %v408, 7
      %v481 = vsel %vm457, %v479, %v480
      %v482 = vrot.slane %v409, 7
      %v483 = vrot.slane %v410, 7
      %v484 = vsel %vm457, %v482, %v483
      %v485 = vrot.slane %v411, 7
      %v486 = vrot.slane %v412, 7
      %v487 = vsel %vm457, %v485, %v486
      %v488 = vrot.slane %v413, 7
      %v489 = vrot.slane %v414, 7
      %v490 = vsel %vm457, %v488, %v489
      %v491 = vrot.slane %v415, 7
      %v492 = vrot.slane %v416, 7
      %v493 = vsel %vm457, %v491, %v492
      %v494 = vrot.slane %v417, 7
      %v495 = vrot.slane %v418, 7
      %v496 = vsel %vm457, %v494, %v495
      %v497 = vrot.slane %v419, 7
      %v498 = vrot.slane %v420, 7
      %v499 = vsel %vm457, %v497, %v498
      %v500 = vrot.slane %v421, 7
      %v501 = vrot.slane %v422, 7
      %v502 = vsel %vm457, %v500, %v501
      %v503 = vrot.slane %v423, 7
      %v504 = vrot.slane %v424, 7
      %v505 = vsel %vm457, %v503, %v504
      %v554 = vadd.f32 %v267, %v458
      %v555 = vadd.f32 %v268, %v460
      %v556 = vadd.f32 %v269, %v459
      %v557 = vadd.f32 %v270, %v461
      %v558 = vadd.f32 %v271, %v463
      %v559 = vadd.f32 %v272, %v462
      %v560 = vadd.f32 %v273, %v464
      %v561 = vadd.f32 %v274, %v466
      %v562 = vadd.f32 %v275, %v465
      %v563 = vadd.f32 %v276, %v467
      %v564 = vadd.f32 %v277, %v469
      %v565 = vadd.f32 %v278, %v468
      %v566 = vadd.f32 %v279, %v470
      %v567 = vadd.f32 %v280, %v472
      %v568 = vadd.f32 %v281, %v471
      %v569 = vadd.f32 %v282, %v473
      %v570 = vadd.f32 %v283, %v475
      %v571 = vadd.f32 %v284, %v474
      %v572 = vadd.f32 %v285, %v476
      %v573 = vadd.f32 %v286, %v478
      %v574 = vadd.f32 %v287, %v477
      %v575 = vadd.f32 %v288, %v479
      %v576 = vadd.f32 %v289, %v481
      %v577 = vadd.f32 %v290, %v480
      %v578 = vadd.f32 %v291, %v482
      %v579 = vadd.f32 %v292, %v484
      %v580 = vadd.f32 %v293, %v483
      %v581 = vadd.f32 %v294, %v485
      %v582 = vadd.f32 %v295, %v487
      %v583 = vadd.f32 %v296, %v486
      %v584 = vadd.f32 %v297, %v488
      %v585 = vadd.f32 %v298, %v490
      %v586 = vadd.f32 %v299, %v489
      %v587 = vadd.f32 %v300, %v491
      %v588 = vadd.f32 %v301, %v493
      %v589 = vadd.f32 %v302, %v492
      %v590 = vadd.f32 %v303, %v494
      %v591 = vadd.f32 %v304, %v496
      %v592 = vadd.f32 %v305, %v495
      %v593 = vadd.f32 %v306, %v497
      %v594 = vadd.f32 %v307, %v499
      %v595 = vadd.f32 %v308, %v498
      %v596 = vadd.f32 %v309, %v500
      %v597 = vadd.f32 %v310, %v502
      %v598 = vadd.f32 %v311, %v501
      %v599 = vadd.f32 %v312, %v503
      %v600 = vadd.f32 %v313, %v505
      %v601 = vadd.f32 %v314, %v504
      %v602 = vmax.f32 %v554, 0.0
      %v603 = vmax.f32 %v555, 0.0
      %v604 = vmax.f32 %v556, 0.0
      %v605 = vmax.f32 %v557, 0.0
      %v606 = vmax.f32 %v558, 0.0
      %v607 = vmax.f32 %v559, 0.0
      %v608 = vmax.f32 %v560, 0.0
      %v609 = vmax.f32 %v561, 0.0
      %v610 = vmax.f32 %v562, 0.0
      %v611 = vmax.f32 %v563, 0.0
      %v612 = vmax.f32 %v564, 0.0
      %v613 = vmax.f32 %v565, 0.0
      %v614 = vmax.f32 %v566, 0.0
      %v615 = vmax.f32 %v567, 0.0
      %v616 = vmax.f32 %v568, 0.0
      %v617 = vmax.f32 %v569, 0.0
      %v618 = vmax.f32 %v570, 0.0
      %v619 = vmax.f32 %v571, 0.0
      %v620 = vmax.f32 %v572, 0.0
      %v621 = vmax.f32 %v573, 0.0
      %v622 = vmax.f32 %v574, 0.0
      %v623 = vmax.f32 %v575, 0.0
      %v624 = vmax.f32 %v576, 0.0
      %v625 = vmax.f32 %v577, 0.0
      %v626 = vmax.f32 %v578, 0.0
      %v627 = vmax.f32 %v579, 0.0
      %v628 = vmax.f32 %v580, 0.0
      %v629 = vmax.f32 %v581, 0.0
      %v630 = vmax.f32 %v582, 0.0
      %v631 = vmax.f32 %v583, 0.0
      %v632 = vmax.f32 %v584, 0.0
      %v633 = vmax.f32 %v585, 0.0
      %v634 = vmax.f32 %v586, 0.0
      %v635 = vmax.f32 %v587, 0.0
      %v636 = vmax.f32 %v588, 0.0
      %v637 = vmax.f32 %v589, 0.0
      %v638 = vmax.f32 %v590, 0.0
      %v639 = vmax.f32 %v591, 0.0
      %v640 = vmax.f32 %v592, 0.0
      %v641 = vmax.f32 %v593, 0.0
      %v642 = vmax.f32 %v594, 0.0
      %v643 = vmax.f32 %v595, 0.0
      %v644 = vmax.f32 %v596, 0.0
      %v645 = vmax.f32 %v597, 0.0
      %v646 = vmax.f32 %v598, 0.0
      %v647 = vmax.f32 %v599, 0.0
      %v648 = vmax.f32 %v600, 0.0
      %v649 = vmax.f32 %v601, 0.0
      %650 = vst [vmem:[%s217 - $0x1] sm:$0xfe] %v602
      %651 = vst [vmem:[%s217 + $0x7] sm:$0xff] %v603
      %652 = vst [vmem:[%s217 + $0xf] sm:$0x1] %v604
      %653 = vst [vmem:[%s217 + $0xf] sm:$0xfe] %v605
      %654 = vst [vmem:[%s217 + $0x17] sm:$0xff] %v606
      %655 = vst [vmem:[%s217 + $0x1f] sm:$0x1] %v607
      %656 = vst [vmem:[%s217 + $0x1f] sm:$0xfe] %v608
      %657 = vst [vmem:[%s217 + $0x27] sm:$0xff] %v609
      %658 = vst [vmem:[%s217 + $0x2f] sm:$0x1] %v610
      %659 = vst [vmem:[%s217 + $0x2f] sm:$0xfe] %v611
      %660 = vst [vmem:[%s217 + $0x37] sm:$0xff] %v612
      %661 = vst [vmem:[%s217 + $0x3f] sm:$0x1] %v613
      %662 = vst [vmem:[%s217 + $0x3f] sm:$0xfe] %v614
      %663 = vst [vmem:[%s217 + $0x47] sm:$0xff] %v615
      %664 = vst [vmem:[%s217 + $0x4f] sm:$0x1] %v616
      %665 = vst [vmem:[%s217 + $0x4f] sm:$0xfe] %v617
      %666 = vst [vmem:[%s217 + $0x57] sm:$0xff] %v618
      %667 = vst [vmem:[%s217 + $0x5f] sm:$0x1] %v619
      %668 = vst [vmem:[%s217 + $0x5f] sm:$0xfe] %v620
      %669 = vst [vmem:[%s217 + $0x67] sm:$0xff] %v621
      %670 = vst [vmem:[%s217 + $0x6f] sm:$0x1] %v622
      %671 = vst [vmem:[%s217 + $0x6f] sm:$0xfe] %v623
      %672 = vst [vmem:[%s217 + $0x77] sm:$0xff] %v624
      %673 = vst [vmem:[%s217 + $0x7f] sm:$0x1] %v625
      %674 = vst [vmem:[%s217 + $0x7f] sm:$0xfe] %v626
      %675 = vst [vmem:[%s217 + $0x87] sm:$0xff] %v627
      %676 = vst [vmem:[%s217 + $0x8f] sm:$0x1] %v628
      %677 = vst [vmem:[%s217 + $0x8f] sm:$0xfe] %v629
      %678 = vst [vmem:[%s217 + $0x97] sm:$0xff] %v630
      %679 = vst [vmem:[%s217 + $0x9f] sm:$0x1] %v631
      %680 = vst [vmem:[%s217 + $0x9f] sm:$0xfe] %v632
      %681 = vst [vmem:[%s217 + $0xa7] sm:$0xff] %v633
      %682 = vst [vmem:[%s217 + $0xaf] sm:$0x1] %v634
      %683 = vst [vmem:[%s217 + $0xaf] sm:$0xfe] %v635
      %684 = vst [vmem:[%s217 + $0xb7] sm:$0xff] %v636
      %685 = vst [vmem:[%s217 + $0xbf] sm:$0x1] %v637
      %686 = vst [vmem:[%s217 + $0xbf] sm:$0xfe] %v638
      %687 = vst [vmem:[%s217 + $0xc7] sm:$0xff] %v639
      %688 = vst [vmem:[%s217 + $0xcf] sm:$0x1] %v640
      %689 = vst [vmem:[%s217 + $0xcf] sm:$0xfe] %v641
      %690 = vst [vmem:[%s217 + $0xd7] sm:$0xff] %v642
      %691 = vst [vmem:[%s217 + $0xdf] sm:$0x1] %v643
      %692 = vst [vmem:[%s217 + $0xdf] sm:$0xfe] %v644
      %693 = vst [vmem:[%s217 + $0xe7] sm:$0xff] %v645
      %694 = vst [vmem:[%s217 + $0xef] sm:$0x1] %v646
      %695 = vst [vmem:[%s217 + $0xef] sm:$0xfe] %v647
      %696 = vst [vmem:[%s217 + $0xf7] sm:$0xff] %v648
      %697 = vst [vmem:[%s217 + $0xff] sm:$0x1] %v649
      %p698 = scmp.lt.s32.totalorder %s15, 1
      %s699 = scalar_select %p698, %s15, 1
      %s700 = smul.addr %s699, 32
      %s701 = smul.addr %s700, 8
      %s702 = scalar_lea.vmem %s4, %s701
      // Predicated region
      $region37: #{basic_block_forward.7} parent=35 // pred_check
        %p703 = pneg %p127
      $region38: #{basic_block_forward.7} parent=35 // pred_check_branch
        %705 = sbr.rel (%p703) target = $region40
      $region39: #{basic_block_forward.7} parent=35 // pred_region
        _
      $region40: #{basic_block_forward.7} parent=35 // pred_fallthru
        _
    $region36: #{basic_block_forward.7} parent=5 // pred_fallthru
      _
    %p706 = scmp.le.s32.totalorder 2, %s10
    // Predicated region
    $region41: #{basic_block_forward.7} parent=5 // pred_check
      %p707 = pneg %p706
    $region42: #{basic_block_forward.7} parent=5 // pred_check_branch
      %709 = sbr.rel (%p707) target = $region44
    $region43: #{basic_block_forward.7} parent=5 // pred_region
      %s710 = ssub.s32 %s10, 2
      // Predicated region
      $region45: #{basic_block_forward.7} parent=43 // pred_check
        %p711 = pneg %p133
      $region46: #{basic_block_forward.7} parent=43 // pred_check_branch
        %713 = sbr.rel (%p711) target = $region48
      $region47: #{basic_block_forward.7} parent=43 // pred_region
        %p714 = scmp.lt.s32.totalorder %s16, 1
        %s715 = scalar_select %p714, %s16, 1
        %s716 = smul.addr %s715, 32
        %s717 = smul.addr %s716, 8
        %s718 = scalar_lea.vmem %s4, %s717
      $region48: #{basic_block_forward.7} parent=43 // pred_fallthru
        _
    $region44: #{basic_block_forward.7} parent=5 // pred_fallthru
      _
  $region6: #{basic_block_forward.7} parent=0 // loop_footer
    %s14 = sadd.s32 1, %s10
  $region7: #{basic_block_forward.7} parent=0 // loop_footer_branch
    %9 = sbr.rel target = $region3
  $region8: #{basic_block_forward.7} parent=0 // loop_exit
    _

// kernel: basic_block_forward.4
$region0: #{basic_block_forward.4}
  #allocation0 [shape = 'u32[]', space=smem, size = 0x4, offset = 0x4, fixed_abs, tag = 'smem constant byte address 0x4 - core index']
  #allocation1 [shape = 'u32[144,128]{1,0:T(1,128)}', space=vmem, size = 0x12000, scoped, tag = 'internal scratch']
  %s0 = inlined_call_operand.vmem [shape: bf16[2,18,18,128], index: 0, kind: input, shape index: {}]
  %s1 = inlined_call_operand.vmem [shape: bf16[9,128,128], index: 1, kind: input, shape index: {}]
  %s2 = inlined_call_operand.vmem [shape: f32[2,16,16,128], index: 2, kind: output, shape index: {0}]
  %s3 = inlined_call_operand.vmem [shape: f32[2,2,128], index: 3, kind: output, shape index: {1}]
  %4 = xla_tuple %s2, %s3
  %s5 = sld [smem:[#allocation0]]
  $region49: #{basic_block_forward.4} parent=0
    _
  %s7 = ssub.s32 1, %s5
  %s8 = scalar_select 0, %s7, %s5
  loop: start=0, step=1, limit=4
  $region2: #{basic_block_forward.4} parent=0 // loop_pre_header
    _
  $region3: #{basic_block_forward.4} parent=0 // loop_header
    %s10 = sphi 0, %s14
    %p11 = scmp.ge.s32.totalorder %s10, 4
    %s20 = sphi 0, %s22
    %s23 = sphi 0, %s20
    %s24 = sphi 0, %s23
    %s40 = sphi 0, %s24
    %s44 = sphi 0, %s44
    %s46 = sphi 0, %s44
    %s47 = sphi 0, %s46
    %s61 = sphi 0, %s47
    %s67 = sphi 0, %s69
    %s70 = sphi 0, %s67
    %s71 = sphi 0, %s70
    %s87 = sphi 0, %s71
    %s93 = sphi 0, %s95
    %s96 = sphi 0, %s93
    %s97 = sphi 0, %s96
    %s113 = sphi 0, %s97
  $region4: #{basic_block_forward.4} parent=0 // loop_header_branch
    %13 = sbr.rel (%p11) target = $region8
  $region5: #{basic_block_forward.4} parent=0 // loop_body
    %s15 = ssub.s32 %s10, 1
    %s16 = ssub.s32 %s10, 2
    %s17 = sadd.s32 %s10, 1
    %s18 = ssub.s32 %s10, %s17
    %p19 = scmp.eq.s32.totalorder %s18, 0
    %s21 = sadd.s32 %s20, 1
    %s22 = scalar_select %p19, %s20, %s21
    %p25 = pneg %p19
    %p26 = scmp.eq.s32.totalorder %s10, 1
    %p27 = por %p25, %p26
    %p28 = scmp.ne.s32.totalorder %s20, %s23
    %p29 = scmp.eq.s32.totalorder %s10, 0
    %p30 = por %p28, %p29
    %p31 = scmp.ne.s32.totalorder %s20, %s23
    %p32 = scmp.eq.s32.totalorder %s15, 1
    %p33 = por %p31, %p32
    %p34 = scmp.ne.s32.totalorder %s23, %s24
    %p35 = scmp.eq.s32.totalorder %s15, 0
    %p36 = por %p34, %p35
    %p37 = scmp.ne.s32.totalorder %s23, %s24
    %p38 = scmp.eq.s32.totalorder %s16, 1
    %p39 = por %p37, %p38
    %p41 = scmp.ne.s32.totalorder %s24, %s40
    %p42 = scmp.eq.s32.totalorder %s16, 0
    %p43 = por %p41, %p42
    %s45 = sadd.s32 %s44, 1
    %p48 = scmp.eq.s32.totalorder %s10, 1
    %p49 = scmp.ne.s32.totalorder %s44, %s46
    %p50 = scmp.eq.s32.totalorder %s10, 0
    %p51 = por %p49, %p50
    %p52 = scmp.ne.s32.totalorder %s44, %s46
    %p53 = scmp.eq.s32.totalorder %s15, 1
    %p54 = por %p52, %p53
    %p55 = scmp.ne.s32.totalorder %s46, %s47
    %p56 = scmp.eq.s32.totalorder %s15, 0
    %p57 = por %p55, %p56
    %p58 = scmp.ne.s32.totalorder %s46, %s47
    %p59 = scmp.eq.s32.totalorder %s16, 1
    %p60 = por %p58, %p59
    %p62 = scmp.ne.s32.totalorder %s47, %s61
    %p63 = scmp.eq.s32.totalorder %s16, 0
    %p64 = por %p62, %p63
    %s65 = ssub.s32 %s10, %s17
    %p66 = scmp.eq.s32.totalorder %s65, 0
    %s68 = sadd.s32 %s67, 1
    %s69 = scalar_select %p66, %s67, %s68
    %p72 = pneg %p66
    %p73 = scmp.eq.s32.totalorder %s10, 1
    %p74 = por %p72, %p73
    %p75 = scmp.ne.s32.totalorder %s67, %s70
    %p76 = scmp.eq.s32.totalorder %s10, 0
    %p77 = por %p75, %p76
    %p78 = scmp.ne.s32.totalorder %s67, %s70
    %p79 = scmp.eq.s32.totalorder %s15, 1
    %p80 = por %p78, %p79
    %p81 = scmp.ne.s32.totalorder %s70, %s71
    %p82 = scmp.eq.s32.totalorder %s15, 0
    %p83 = por %p81, %p82
    %p84 = scmp.ne.s32.totalorder %s70, %s71
    %p85 = scmp.eq.s32.totalorder %s16, 1
    %p86 = por %p84, %p85
    %p88 = scmp.ne.s32.totalorder %s71, %s87
    %p89 = scmp.eq.s32.totalorder %s16, 0
    %p90 = por %p88, %p89
    %s91 = ssub.s32 %s10, %s17
    %p92 = scmp.eq.s32.totalorder %s91, 0
    %s94 = sadd.s32 %s93, 1
    %s95 = scalar_select %p92, %s93, %s94
    %p98 = pneg %p92
    %p99 = scmp.eq.s32.totalorder %s10, 1
    %p100 = por %p98, %p99
    %p101 = scmp.ne.s32.totalorder %s93, %s96
    %p102 = scmp.eq.s32.totalorder %s10, 0
    %p103 = por %p101, %p102
    %p104 = scmp.ne.s32.totalorder %s93, %s96
    %p105 = scmp.eq.s32.totalorder %s15, 1
    %p106 = por %p104, %p105
    %p107 = scmp.ne.s32.totalorder %s96, %s97
    %p108 = scmp.eq.s32.totalorder %s15, 0
    %p109 = por %p107, %p108
    %p110 = scmp.ne.s32.totalorder %s96, %s97
    %p111 = scmp.eq.s32.totalorder %s16, 1
    %p112 = por %p110, %p111
    %p114 = scmp.ne.s32.totalorder %s97, %s113
    %p115 = scmp.eq.s32.totalorder %s16, 0
    %p116 = por %p114, %p115
    %p117 = scmp.le.s32.totalorder 1, %s10
    %p118 = scmp.lt.s32.totalorder %s10, 3
    %p119 = pnand %p117, %p118
    %p120 = pneg %p119
    // Predicated region
    $region9: #{basic_block_forward.4} parent=5 // pred_check
      _
    $region10: #{basic_block_forward.4} parent=5 // pred_check_branch
      %122 = sbr.rel (%p119) target = $region12
    $region11: #{basic_block_forward.4} parent=5 // pred_region
      %s123 = ssub.s32 %s10, 1
      // Predicated region
      $region13: #{basic_block_forward.4} parent=11 // pred_check
        %p124 = pneg %p57
      $region14: #{basic_block_forward.4} parent=11 // pred_check_branch
        %126 = sbr.rel (%p124) target = $region16
      $region15: #{basic_block_forward.4} parent=11 // pred_region
        _
      $region16: #{basic_block_forward.4} parent=11 // pred_fallthru
        _
    $region12: #{basic_block_forward.4} parent=5 // pred_fallthru
      _
    %p127 = scmp.lt.s32.totalorder %s10, 2
    // Predicated region
    $region17: #{basic_block_forward.4} parent=5 // pred_check
      %p128 = pneg %p127
    $region18: #{basic_block_forward.4} parent=5 // pred_check_branch
      %130 = sbr.rel (%p128) target = $region20
    $region19: #{basic_block_forward.4} parent=5 // pred_region
      // Predicated region
      $region21: #{basic_block_forward.4} parent=19 // pred_check
        %p131 = pneg %p30
      $region22: #{basic_block_forward.4} parent=19 // pred_check_branch
        %133 = sbr.rel (%p131) target = $region24
      $region23: #{basic_block_forward.4} parent=19 // pred_region
        %p134 = scmp.lt.s32.totalorder %s10, 1
        %s135 = scalar_select %p134, %s10, 1
        %s136 = smul.addr %s135, 54
        %s137 = smul.addr %s136, 4
        %s138 = scalar_lea.vmem %s0, %s137
      $region24: #{basic_block_forward.4} parent=19 // pred_fallthru
        _
    $region20: #{basic_block_forward.4} parent=5 // pred_fallthru
      _
    %p139 = scmp.le.s32.totalorder 1, %s10
    %p140 = scmp.lt.s32.totalorder %s10, 3
    %p141 = pnand %p139, %p140
    %p142 = pneg %p141
    // Predicated region
    $region25: #{basic_block_forward.4} parent=5 // pred_check
      _
    $region26: #{basic_block_forward.4} parent=5 // pred_check_branch
      %144 = sbr.rel (%p141) target = $region28
    $region27: #{basic_block_forward.4} parent=5 // pred_region
      %s145 = ssub.s32 %s10, 1
      %p146 = scmp.lt.s32.totalorder %s15, 1
      %s147 = scalar_select %p146, %s15, 1
      %s148 = smul.addr %s147, 54
      %s149 = smul.addr %s148, 4
      %s150 = scalar_lea.vmem %s0, %s149
      %p151 = pneg %p36
      %p152 = pneg %p33
      %p153 = pneg %p57
      %p154 = pneg %p54
      %p155 = pneg %p83
      %p156 = pneg %p80
      %p157 = scmp.lt.s32.totalorder %s15, 1
      %s158 = scalar_select %p157, %s15, 1
      %s159 = smul.addr %s158, 32
      %s160 = smul.addr %s159, 8
      %s161 = scalar_lea.vmem %s2, %s160
      %p162 = pneg %p109
      %p163 = pneg %p106
      %p164 = scmp.lt.s32.totalorder %s15, 1
      %s165 = scalar_select %p164, %s15, 1
      %s166 = smul.addr %s165, 2
      %s167 = scalar_lea.vmem %s3, %s166
      %p168 = scmp.lt.s32.totalorder %s15, 1
      %s169 = scalar_select %p168, %s15, 1
      %s170 = smul.addr %s169, 54
      %s171 = smul.addr %s170, 4
      %s172 = scalar_lea.vmem %s0, %s171
      %p173 = scmp.lt.s32.totalorder %s15, 1
      %s174 = scalar_select %p173, %s15, 1
      %s175 = smul.addr %s174, 32
      %s176 = smul.addr %s175, 8
      %s177 = scalar_lea.vmem %s2, %s176
      %p178 = scmp.lt.s32.totalorder %s15, 1
      %s179 = scalar_select %p178, %s15, 1
      %s180 = smul.addr %s179, 2
      %s181 = scalar_lea.vmem %s3, %s180
      %v183 = vld [vmem:[%s172] sm:$0xf]
      %v184 = vld [vmem:[%s172 + $0x4] sm:$0xf]
      %v185 = vld [vmem:[%s172 + $0xc] sm:$0xf]
      %v186 = vld [vmem:[%s172 + $0x10] sm:$0xf]
      %v187 = vld [vmem:[%s172 + $0x18] sm:$0xf]
      %v188 = vld [vmem:[%s172 + $0x1c] sm:$0xf]
      %v189 = vld [vmem:[%s172 + $0x24] sm:$0xf]
      %v190 = vld [vmem:[%s172 + $0x28] sm:$0xf]
      %v191 = vld [vmem:[%s172 + $0x30] sm:$0xf]
      %v192 = vld [vmem:[%s172 + $0x34] sm:$0xf]
      %v193 = vld [vmem:[%s172 + $0x3c] sm:$0xf]
      %v194 = vld [vmem:[%s172 + $0x40] sm:$0xf]
      %v195 = vld [vmem:[%s172 + $0x48] sm:$0xf]
      %v196 = vld [vmem:[%s172 + $0x4c] sm:$0xf]
      %v197 = vld [vmem:[%s172 + $0x54] sm:$0xf]
      %v198 = vld [vmem:[%s172 + $0x58] sm:$0xf]
      %v199 = vld [vmem:[%s172 + $0x60] sm:$0xf]
      %v200 = vld [vmem:[%s172 + $0x64] sm:$0xf]
      %v201 = vld [vmem:[%s172 + $0x6c] sm:$0xf]
      %v202 = vld [vmem:[%s172 + $0x70] sm:$0xf]
      %v203 = vld [vmem:[%s172 + $0x78] sm:$0xf]
      %v204 = vld [vmem:[%s172 + $0x7c] sm:$0xf]
      %v205 = vld [vmem:[%s172 + $0x84] sm:$0xf]
      %v206 = vld [vmem:[%s172 + $0x88] sm:$0xf]
      %v207 = vld [vmem:[%s172 + $0x90] sm:$0xf]
      %v208 = vld [vmem:[%s172 + $0x94] sm:$0xf]
      %v209 = vld [vmem:[%s172 + $0x9c] sm:$0xf]
      %v210 = vld [vmem:[%s172 + $0xa0] sm:$0xf]
      %v211 = vld [vmem:[%s172 + $0xa8] sm:$0xf]
      %v212 = vld [vmem:[%s172 + $0xac] sm:$0xf]
      %v213 = vld [vmem:[%s172 + $0xb4] sm:$0xf]
      %v214 = vld [vmem:[%s172 + $0xb8] sm:$0xf]
      %v215 = vld [vmem:[%s1] sm:$0xf]
      %v216 = vld [vmem:[%s1 + $0x4] sm:$0xf]
      %v217 = vld [vmem:[%s1 + $0x8] sm:$0xf]
      %v218 = vld [vmem:[%s1 + $0xc] sm:$0xf]
      %v219 = vld [vmem:[%s1 + $0x10] sm:$0xf]
      %v220 = vld [vmem:[%s1 + $0x14] sm:$0xf]
      %v221 = vld [vmem:[%s1 + $0x18] sm:$0xf]
      %v222 = vld [vmem:[%s1 + $0x1c] sm:$0xf]
      %v223 = vld [vmem:[%s1 + $0x20] sm:$0xf]
      %v224 = vld [vmem:[%s1 + $0x24] sm:$0xf]
      %v225 = vld [vmem:[%s1 + $0x28] sm:$0xf]
      %v226 = vld [vmem:[%s1 + $0x2c] sm:$0xf]
      %v227 = vld [vmem:[%s1 + $0x30] sm:$0xf]
      %v228 = vld [vmem:[%s1 + $0x34] sm:$0xf]
      %v229 = vld [vmem:[%s1 + $0x38] sm:$0xf]
      %v230 = vld [vmem:[%s1 + $0x3c] sm:$0xf]
      %v231 = vld [vmem:[%s172 + $0x8] sm:$0x1]
      %v232 = vld [vmem:[%s172 + $0x14] sm:$0x1]
      %v233 = vld [vmem:[%s172 + $0x20] sm:$0x1]
      %v234 = vld [vmem:[%s172 + $0x2c] sm:$0x1]
      %v235 = vld [vmem:[%s172 + $0x38] sm:$0x1]
      %v236 = vld [vmem:[%s172 + $0x44] sm:$0x1]
      %v237 = vld [vmem:[%s172 + $0x50] sm:$0x1]
      %v238 = vld [vmem:[%s172 + $0x5c] sm:$0x1]
      %v239 = vld [vmem:[%s172 + $0x68] sm:$0x1]
      %v240 = vld [vmem:[%s172 + $0x74] sm:$0x1]
      %v241 = vld [vmem:[%s172 + $0x80] sm:$0x1]
      %v242 = vld [vmem:[%s172 + $0x8c] sm:$0x1]
      %v243 = vld [vmem:[%s172 + $0x98] sm:$0x1]
      %v244 = vld [vmem:[%s172 + $0xa4] sm:$0x1]
      %v245 = vld [vmem:[%s172 + $0xb0] sm:$0x1]
      %v246 = vld [vmem:[%s172 + $0xbc] sm:$0x1]
      %vm247 = vsmask.f32 3328
      %vm248 = vsmask.f32 7440
      %vm249 = vmor %vm247, %vm248
      %v251 = vshrl.u32 %v183, 16
      %v253 = vrot.slane %v251, 4
      %v254 = vshll.u32 %v183, 16
      %v256 = vrot.slane %v254, 5
      %v257 = vor.u32 %v253, %v256
      %v258 = vrot.slane %v257, 4
      %v260 = vshll.u32 %v184, 16
      %v262 = vrot.slane %v260, 5
      %v263 = vsel %vm249, %v258, %v262
      %v264 = vshrl.u32 %v184, 16
      %v266 = vrot.slane %v264, 4
      %v267 = vor.u32 %v266, %v262
      %v268 = vrot.slane %v267, 4
      %v270 = vshll.u32 %v231, 16
      %v272 = vrot.slane %v270, 5
      %v273 = vsel %vm249, %v268, %v272
      %v275 = vshrl.u32 %v185, 16
      %v277 = vrot.slane %v275, 4
      %v278 = vshll.u32 %v185, 16
      %v280 = vrot.slane %v278, 5
      %v281 = vor.u32 %v277, %v280
      %v282 = vrot.slane %v281, 4
      %v284 = vshll.u32 %v186, 16
      %v286 = vrot.slane %v284, 5
      %v287 = vsel %vm249, %v282, %v286
      %v288 = vshrl.u32 %v186, 16
      %v290 = vrot.slane %v288, 4
      %v291 = vor.u32 %v290, %v286
      %v292 = vrot.slane %v291, 4
      %v294 = vshll.u32 %v232, 16
      %v296 = vrot.slane %v294, 5
      %v297 = vsel %vm249, %v292, %v296
      %v299 = vshrl.u32 %v187, 16
      %v301 = vrot.slane %v299, 4
      %v302 = vshll.u32 %v187, 16
      %v304 = vrot.slane %v302, 5
      %v305 = vor.u32 %v301, %v304
      %v306 = vrot.slane %v305, 4
      %v308 = vshll.u32 %v188, 16
      %v310 = vrot.slane %v308, 5
      %v311 = vsel %vm249, %v306, %v310
      %v312 = vshrl.u32 %v188, 16
      %v314 = vrot.slane %v312, 4
      %v315 = vor.u32 %v314, %v310
      %v316 = vrot.slane %v315, 4
      %v318 = vshll.u32 %v233, 16
      %v320 = vrot.slane %v318, 5
      %v321 = vsel %vm249, %v316, %v320
      %v323 = vshrl.u32 %v189, 16
      %v325 = vrot.slane %v323, 4
      %v326 = vshll.u32 %v189, 16
      %v328 = vrot.slane %v326, 5
      %v329 = vor.u32 %v325, %v328
      %v330 = vrot.slane %v329, 4
      %v332 = vshll.u32 %v190, 16
      %v334 = vrot.slane %v332, 5
      %v335 = vsel %vm249, %v330, %v334
      %v336 = vshrl.u32 %v190, 16
      %v338 = vrot.slane %v336, 4
      %v339 = vor.u32 %v338, %v334
      %v340 = vrot.slane %v339, 4
      %v342 = vshll.u32 %v234, 16
      %v344 = vrot.slane %v342, 5
      %v345 = vsel %vm249, %v340, %v344
      %v347 = vshrl.u32 %v191, 16
      %v349 = vrot.slane %v347, 4
      %v350 = vshll.u32 %v191, 16
      %v352 = vrot.slane %v350, 5
      %v353 = vor.u32 %v349, %v352
      %v354 = vrot.slane %v353, 4
      %v356 = vshll.u32 %v192, 16
      %v358 = vrot.slane %v356, 5
      %v359 = vsel %vm249, %v354, %v358
      %v360 = vshrl.u32 %v192, 16
      %v362 = vrot.slane %v360, 4
      %v363 = vor.u32 %v362, %v358
      %v364 = vrot.slane %v363, 4
      %v366 = vshll.u32 %v235, 16
      %v368 = vrot.slane %v366, 5
      %v369 = vsel %vm249, %v364, %v368
      %v371 = vshrl.u32 %v193, 16
      %v373 = vrot.slane %v371, 4
      %v374 = vshll.u32 %v193, 16
      %v376 = vrot.slane %v374, 5
      %v377 = vor.u32 %v373, %v376
      %v378 = vrot.slane %v377, 4
      %v380 = vshll.u32 %v194, 16
      %v382 = vrot.slane %v380, 5
      %v383 = vsel %vm249, %v378, %v382
      %v384 = vshrl.u32 %v194, 16
      %v386 = vrot.slane %v384, 4
      %v387 = vor.u32 %v386, %v382
      %v388 = vrot.slane %v387, 4
      %v390 = vshll.u32 %v236, 16
      %v392 = vrot.slane %v390, 5
      %v393 = vsel %vm249, %v388, %v392
      %v395 = vshrl.u32 %v195, 16
      %v397 = vrot.slane %v395, 4
      %v398 = vshll.u32 %v195, 16
      %v400 = vrot.slane %v398, 5
      %v401 = vor.u32 %v397, %v400
      %v402 = vrot.slane %v401, 4
      %v404 = vshll.u32 %v196, 16
      %v406 = vrot.slane %v404, 5
      %v407 = vsel %vm249, %v402, %v406
      %v408 = vshrl.u32 %v196, 16
      %v410 = vrot.slane %v408, 4
      %v411 = vor.u32 %v410, %v406
      %v412 = vrot.slane %v411, 4
      %v414 = vshll.u32 %v237, 16
      %v416 = vrot.slane %v414, 5
      %v417 = vsel %vm249, %v412, %v416
      %v419 = vshrl.u32 %v197, 16
      %v421 = vrot.slane %v419, 4
      %v422 = vshll.u32 %v197, 16
      %v424 = vrot.slane %v422, 5
      %v425 = vor.u32 %v421, %v424
      %v426 = vrot.slane %v425, 4
      %v428 = vshll.u32 %v198, 16
      %v430 = vrot.slane %v428, 5
      %v431 = vsel %vm249, %v426, %v430
      %v432 = vshrl.u32 %v198, 16
      %v434 = vrot.slane %v432, 4
      %v435 = vor.u32 %v434, %v430
      %v436 = vrot.slane %v435, 4
      %v438 = vshll.u32 %v238, 16
      %v440 = vrot.slane %v438, 5
      %v441 = vsel %vm249, %v436, %v440
      %v443 = vshrl.u32 %v199, 16
      %v445 = vrot.slane %v443, 4
      %v446 = vshll.u32 %v199, 16
      %v448 = vrot.slane %v446, 5
      %v449 = vor.u32 %v445, %v448
      %v450 = vrot.slane %v449, 4
      %v452 = vshll.u32 %v200, 16
      %v454 = vrot.slane %v452, 5
      %v455 = vsel %vm249, %v450, %v454
      %v456 = vshrl.u32 %v200, 16
      %v458 = vrot.slane %v456, 4
      %v459 = vor.u32 %v458, %v454
      %v460 = vrot.slane %v459, 4
      %v462 = vshll.u32 %v239, 16
      %v464 = vrot.slane %v462, 5
      %v465 = vsel %vm249, %v460, %v464
      %v467 = vshrl.u32 %v201, 16
      %v469 = vrot.slane %v467, 4
      %v470 = vshll.u32 %v201, 16
      %v472 = vrot.slane %v470, 5
      %v473 = vor.u32 %v469, %v472
      %v474 = vrot.slane %v473, 4
      %v476 = vshll.u32 %v202, 16
      %v478 = vrot.slane %v476, 5
      %v479 = vsel %vm249, %v474, %v478
      %v480 = vshrl.u32 %v202, 16
      %v482 = vrot.slane %v480, 4
      %v483 = vor.u32 %v482, %v478
      %v484 = vrot.slane %v483, 4
      %v486 = vshll.u32 %v240, 16
      %v488 = vrot.slane %v486, 5
      %v489 = vsel %vm249, %v484, %v488
      %v491 = vshrl.u32 %v203, 16
      %v493 = vrot.slane %v491, 4
      %v494 = vshll.u32 %v203, 16
      %v496 = vrot.slane %v494, 5
      %v497 = vor.u32 %v493, %v496
      %v498 = vrot.slane %v497, 4
      %v500 = vshll.u32 %v204, 16
      %v502 = vrot.slane %v500, 5
      %v503 = vsel %vm249, %v498, %v502
      %v504 = vshrl.u32 %v204, 16
      %v506 = vrot.slane %v504, 4
      %v507 = vor.u32 %v506, %v502
      %v508 = vrot.slane %v507, 4
      %v510 = vshll.u32 %v241, 16
      %v512 = vrot.slane %v510, 5
      %v513 = vsel %vm249, %v508, %v512
      %v515 = vshrl.u32 %v205, 16
      %v517 = vrot.slane %v515, 4
      %v518 = vshll.u32 %v205, 16
      %v520 = vrot.slane %v518, 5
      %v521 = vor.u32 %v517, %v520
      %v522 = vrot.slane %v521, 4
      %v524 = vshll.u32 %v206, 16
      %v526 = vrot.slane %v524, 5
      %v527 = vsel %vm249, %v522, %v526
      %v528 = vshrl.u32 %v206, 16
      %v530 = vrot.slane %v528, 4
      %v531 = vor.u32 %v530, %v526
      %v532 = vrot.slane %v531, 4
      %v534 = vshll.u32 %v242, 16
      %v536 = vrot.slane %v534, 5
      %v537 = vsel %vm249, %v532, %v536
      %v539 = vshrl.u32 %v207, 16
      %v541 = vrot.slane %v539, 4
      %v542 = vshll.u32 %v207, 16
      %v544 = vrot.slane %v542, 5
      %v545 = vor.u32 %v541, %v544
      %v546 = vrot.slane %v545, 4
      %v548 = vshll.u32 %v208, 16
      %v550 = vrot.slane %v548, 5
      %v551 = vsel %vm249, %v546, %v550
      %v552 = vshrl.u32 %v208, 16
      %v554 = vrot.slane %v552, 4
      %v555 = vor.u32 %v554, %v550
      %v556 = vrot.slane %v555, 4
      %v558 = vshll.u32 %v243, 16
      %v560 = vrot.slane %v558, 5
      %v561 = vsel %vm249, %v556, %v560
      %v563 = vshrl.u32 %v209, 16
      %v565 = vrot.slane %v563, 4
      %v566 = vshll.u32 %v209, 16
      %v568 = vrot.slane %v566, 5
      %v569 = vor.u32 %v565, %v568
      %v570 = vrot.slane %v569, 4
      %v572 = vshll.u32 %v210, 16
      %v574 = vrot.slane %v572, 5
      %v575 = vsel %vm249, %v570, %v574
      %v576 = vshrl.u32 %v210, 16
      %v578 = vrot.slane %v576, 4
      %v579 = vor.u32 %v578, %v574
      %v580 = vrot.slane %v579, 4
      %v582 = vshll.u32 %v244, 16
      %v584 = vrot.slane %v582, 5
      %v585 = vsel %vm249, %v580, %v584
      %v587 = vshrl.u32 %v211, 16
      %v589 = vrot.slane %v587, 4
      %v590 = vshll.u32 %v211, 16
      %v592 = vrot.slane %v590, 5
      %v593 = vor.u32 %v589, %v592
      %v594 = vrot.slane %v593, 4
      %v596 = vshll.u32 %v212, 16
      %v598 = vrot.slane %v596, 5
      %v599 = vsel %vm249, %v594, %v598
      %v600 = vshrl.u32 %v212, 16
      %v602 = vrot.slane %v600, 4
      %v603 = vor.u32 %v602, %v598
      %v604 = vrot.slane %v603, 4
      %v606 = vshll.u32 %v245, 16
      %v608 = vrot.slane %v606, 5
      %v609 = vsel %vm249, %v604, %v608
      %v611 = vshrl.u32 %v213, 16
      %v613 = vrot.slane %v611, 4
      %v614 = vshll.u32 %v213, 16
      %v616 = vrot.slane %v614, 5
      %v617 = vor.u32 %v613, %v616
      %v618 = vrot.slane %v617, 4
      %v620 = vshll.u32 %v214, 16
      %v622 = vrot.slane %v620, 5
      %v623 = vsel %vm249, %v618, %v622
      %v624 = vshrl.u32 %v214, 16
      %v626 = vrot.slane %v624, 4
      %v627 = vor.u32 %v626, %v622
      %v628 = vrot.slane %v627, 4
      %v630 = vshll.u32 %v246, 16
      %v632 = vrot.slane %v630, 5
      %v633 = vsel %vm249, %v628, %v632
      %s634 = scalar_lea.vmem %s1, 64
      %v635 = vld [vmem:[%s634] sm:$0xf]
      %v636 = vld [vmem:[%s634 + $0x4] sm:$0xf]
      %v637 = vld [vmem:[%s634 + $0x8] sm:$0xf]
      %v638 = vld [vmem:[%s634 + $0xc] sm:$0xf]
      %v639 = vld [vmem:[%s634 + $0x10] sm:$0xf]
      %v640 = vld [vmem:[%s634 + $0x14] sm:$0xf]
      %v641 = vld [vmem:[%s634 + $0x18] sm:$0xf]
      %v642 = vld [vmem:[%s634 + $0x1c] sm:$0xf]
      %v643 = vld [vmem:[%s634 + $0x20] sm:$0xf]
      %v644 = vld [vmem:[%s634 + $0x24] sm:$0xf]
      %v645 = vld [vmem:[%s634 + $0x28] sm:$0xf]
      %v646 = vld [vmem:[%s634 + $0x2c] sm:$0xf]
      %v647 = vld [vmem:[%s634 + $0x30] sm:$0xf]
      %v648 = vld [vmem:[%s634 + $0x34] sm:$0xf]
      %v649 = vld [vmem:[%s634 + $0x38] sm:$0xf]
      %v650 = vld [vmem:[%s634 + $0x3c] sm:$0xf]
      %v651 = vunpack.c.l.b16 %v263
      %v652 = vunpack.c.l.b16 %v273
      %v653 = vunpack.c.l.b16 %v287
      %v654 = vunpack.c.l.b16 %v297
      %v655 = vunpack.c.l.b16 %v311
      %v656 = vunpack.c.l.b16 %v321
      %v657 = vunpack.c.l.b16 %v335
      %v658 = vunpack.c.l.b16 %v345
      %v659 = vunpack.c.l.b16 %v359
      %v660 = vunpack.c.l.b16 %v369
      %v661 = vunpack.c.l.b16 %v383
      %v662 = vunpack.c.l.b16 %v393
      %v663 = vunpack.c.l.b16 %v407
      %v664 = vunpack.c.l.b16 %v417
      %v665 = vunpack.c.l.b16 %v431
      %v666 = vunpack.c.l.b16 %v441
      %v667 = vunpack.c.l.b16 %v455
      %v668 = vunpack.c.l.b16 %v465
      %v669 = vunpack.c.l.b16 %v479
      %v670 = vunpack.c.l.b16 %v489
      %v671 = vunpack.c.l.b16 %v503
      %v672 = vunpack.c.l.b16 %v513
      %v673 = vunpack.c.l.b16 %v527
      %v674 = vunpack.c.l.b16 %v537
      %v675 = vunpack.c.l.b16 %v551
      %v676 = vunpack.c.l.b16 %v561
      %v677 = vunpack.c.l.b16 %v575
      %v678 = vunpack.c.l.b16 %v585
      %v679 = vunpack.c.l.b16 %v599
      %v680 = vunpack.c.l.b16 %v609
      %v681 = vunpack.c.l.b16 %v623
      %v682 = vunpack.c.l.b16 %v633
      %v683 = vpack.c.b16 %v652, %v651
      %v684 = vpack.c.b16 %v654, %v653
      %v685 = vpack.c.b16 %v656, %v655
      %v686 = vpack.c.b16 %v658, %v657
      %v687 = vpack.c.b16 %v660, %v659
      %v688 = vpack.c.b16 %v662, %v661
      %v689 = vpack.c.b16 %v664, %v663
      %v690 = vpack.c.b16 %v666, %v665
      %v691 = vpack.c.b16 %v668, %v667
      %v692 = vpack.c.b16 %v670, %v669
      %v693 = vpack.c.b16 %v672, %v671
      %v694 = vpack.c.b16 %v674, %v673
      %v695 = vpack.c.b16 %v676, %v675
      %v696 = vpack.c.b16 %v678, %v677
      %v697 = vpack.c.b16 %v680, %v679
      %v698 = vpack.c.b16 %v682, %v681
      %v731 = vunpack.c.l.b16 %v635
      %v732 = vunpack.c.l.b16 %v636
      %v733 = vunpack.c.l.b16 %v637
      %v734 = vunpack.c.l.b16 %v638
      %v735 = vunpack.c.l.b16 %v639
      %v736 = vunpack.c.l.b16 %v640
      %v737 = vunpack.c.l.b16 %v641
      %v738 = vunpack.c.l.b16 %v642
      %v739 = vunpack.c.l.b16 %v643
      %v740 = vunpack.c.l.b16 %v644
      %v741 = vunpack.c.l.b16 %v645
      %v742 = vunpack.c.l.b16 %v646
      %v743 = vunpack.c.l.b16 %v647
      %v744 = vunpack.c.l.b16 %v648
      %v745 = vunpack.c.l.b16 %v649
      %v746 = vunpack.c.l.b16 %v650
      %v747 = vpack.c.b16 %v732, %v731
      %v748 = vpack.c.b16 %v734, %v733
      %v749 = vpack.c.b16 %v736, %v735
      %v750 = vpack.c.b16 %v738, %v737
      %v751 = vpack.c.b16 %v740, %v739
      %v752 = vpack.c.b16 %v742, %v741
      %v753 = vpack.c.b16 %v744, %v743
      %v754 = vpack.c.b16 %v746, %v745
      %763 = vmatprep.subr.bf16.mxu0 0
      %764 = vmatpush1.bf16.msra.mxu0 %v747
      %765 = vmatprep.subr.bf16.mxu0 0
      %766 = vmatpush1.bf16.msra.mxu0 %v748
      %767 = vmatprep.subr.bf16.mxu0 0
      %768 = vmatpush1.bf16.msra.mxu0 %v749
      %769 = vmatprep.subr.bf16.mxu0 0
      %770 = vmatpush1.bf16.msra.mxu0 %v750
      %771 = vmatprep.subr.bf16.mxu0 0
      %772 = vmatpush1.bf16.msra.mxu0 %v751
      %773 = vmatprep.subr.bf16.mxu0 0
      %774 = vmatpush1.bf16.msra.mxu0 %v752
      %775 = vmatprep.subr.bf16.mxu0 0
      %776 = vmatpush1.bf16.msra.mxu0 %v753
      %777 = vmatprep.subr.bf16.mxu0 0
      %778 = vmatpush1.bf16.msra.mxu0 %v754
      %779 = vmatprep.subr.bf16.mxu0 0
      %780 = vmatpush1.bf16.msra.mxu0 0
      %781 = vmatprep.subr.bf16.mxu0 0
      %782 = vmatpush1.bf16.msra.mxu0 0
      %783 = vmatprep.subr.bf16.mxu0 0
      %784 = vmatpush1.bf16.msra.mxu0 0
      %785 = vmatprep.subr.bf16.mxu0 0
      %786 = vmatpush1.bf16.msra.mxu0 0
      %787 = vmatprep.subr.bf16.mxu0 0
      %788 = vmatpush1.bf16.msra.mxu0 0
      %789 = vmatprep.subr.bf16.mxu0 0
      %790 = vmatpush1.bf16.msra.mxu0 0
      %791 = vmatprep.subr.bf16.mxu0 0
      %792 = vmatpush1.bf16.msra.mxu0 0
      %793 = vmatprep.subr.bf16.mxu0 0
      %794 = vmatpush1.bf16.msra.mxu0 0
      %795 = vmatprep.mubr.bf16.mxu0 0
      %796 = vmatmul.mubr.bf16.gmra.mrb[0].mxu0 %v683
      %v797 = vpop.f32.mrb[0].mxu0
      %v798 = vadd.f32 0.0, %v797
      %v799 = vpop.f32.mrb[0].mxu0
      %v800 = vpop.f32.mrb[0].mxu0
      %v801 = vadd.f32 0.0, %v800
      %v802 = vpop.f32.mrb[0].mxu0
      %803 = vmatprep.mubr.bf16.mxu0 0
      %804 = vmatmul.mubr.bf16.gmra.mrb[0].mxu0 %v684
      %v805 = vpop.f32.mrb[0].mxu0
      %v806 = vadd.f32 0.0, %v805
      %v807 = vpop.f32.mrb[0].mxu0
      %v808 = vpop.f32.mrb[0].mxu0
      %v809 = vadd.f32 0.0, %v808
      %v810 = vpop.f32.mrb[0].mxu0
      %811 = vmatprep.mubr.bf16.mxu0 0
      %812 = vmatmul.mubr.bf16.gmra.mrb[0].mxu0 %v685
      %v813 = vpop.f32.mrb[0].mxu0
      %v814 = vadd.f32 0.0, %v813
      %v815 = vpop.f32.mrb[0].mxu0
      %v816 = vpop.f32.mrb[0].mxu0
      %v817 = vadd.f32 0.0, %v816
      %v818 = vpop.f32.mrb[0].mxu0
      %819 = vmatprep.mubr.bf16.mxu0 0
      %820 = vmatmul.mubr.bf16.gmra.mrb[0].mxu0 %v686
      %v821 = vpop.f32.mrb[0].mxu0
      %v822 = vadd.f32 0.0, %v821
      %v823 = vpop.f32.mrb[0].mxu0
      %v824 = vpop.f32.mrb[0].mxu0
      %v825 = vadd.f32 0.0, %v824
      %v826 = vpop.f32.mrb[0].mxu0
      %827 = vmatprep.mubr.bf16.mxu0 0
      %828 = vmatmul.mubr.bf16.gmra.mrb[0].mxu0 %v687
      %v829 = vpop.f32.mrb[0].mxu0
      %v830 = vadd.f32 0.0, %v829
      %v831 = vpop.f32.mrb[0].mxu0
      %v832 = vpop.f32.mrb[0].mxu0
      %v833 = vadd.f32 0.0, %v832
      %v834 = vpop.f32.mrb[0].mxu0
      %835 = vmatprep.mubr.bf16.mxu0 0
      %836 = vmatmul.mubr.bf16.gmra.mrb[0].mxu0 %v688
      %v837 = vpop.f32.mrb[0].mxu0
      %v838 = vadd.f32 0.0, %v837
      %v839 = vpop.f32.mrb[0].mxu0
      %v840 = vpop.f32.mrb[0].mxu0
      %v841 = vadd.f32 0.0, %v840
      %v842 = vpop.f32.mrb[0].mxu0
      %843 = vmatprep.mubr.bf16.mxu0 0
      %844 = vmatmul.mubr.bf16.gmra.mrb[0].mxu0 %v689
      %v845 = vpop.f32.mrb[0].mxu0
      %v846 = vadd.f32 0.0, %v845
      %v847 = vpop.f32.mrb[0].mxu0
      %v848 = vpop.f32.mrb[0].mxu0
      %v849 = vadd.f32 0.0, %v848
      %v850 = vpop.f32.mrb[0].mxu0
      %851 = vmatprep.mubr.bf16.mxu0 0
      %852 = vmatmul.mubr.bf16.gmra.mrb[0].mxu0 %v690
      %v853 = vpop.f32.mrb[0].mxu0
      %v854 = vadd.f32 0.0, %v853
      %v855 = vpop.f32.mrb[0].mxu0
      %v856 = vpop.f32.mrb[0].mxu0
      %v857 = vadd.f32 0.0, %v856
      %v858 = vpop.f32.mrb[0].mxu0
      %859 = vmatprep.mubr.bf16.mxu0 0
      %860 = vmatmul.mubr.bf16.gmra.mrb[0].mxu0 %v691
      %v861 = vpop.f32.mrb[0].mxu0
      %v862 = vadd.f32 0.0, %v861
      %v863 = vpop.f32.mrb[0].mxu0
      %v864 = vpop.f32.mrb[0].mxu0
      %v865 = vadd.f32 0.0, %v864
      %v866 = vpop.f32.mrb[0].mxu0
      %867 = vmatprep.mubr.bf16.mxu0 0
      %868 = vmatmul.mubr.bf16.gmra.mrb[0].mxu0 %v692
      %v869 = vpop.f32.mrb[0].mxu0
      %v870 = vadd.f32 0.0, %v869
      %v871 = vpop.f32.mrb[0].mxu0
      %v872 = vpop.f32.mrb[0].mxu0
      %v873 = vadd.f32 0.0, %v872
      %v874 = vpop.f32.mrb[0].mxu0
      %875 = vmatprep.mubr.bf16.mxu0 0
      %876 = vmatmul.mubr.bf16.gmra.mrb[0].mxu0 %v693
      %v877 = vpop.f32.mrb[0].mxu0
      %v878 = vadd.f32 0.0, %v877
      %v879 = vpop.f32.mrb[0].mxu0
      %v880 = vpop.f32.mrb[0].mxu0
      %v881 = vadd.f32 0.0, %v880
      %v882 = vpop.f32.mrb[0].mxu0
      %883 = vmatprep.mubr.bf16.mxu0 0
      %884 = vmatmul.mubr.bf16.gmra.mrb[0].mxu0 %v694
      %v885 = vpop.f32.mrb[0].mxu0
      %v886 = vadd.f32 0.0, %v885
      %v887 = vpop.f32.mrb[0].mxu0
      %v888 = vpop.f32.mrb[0].mxu0
      %v889 = vadd.f32 0.0, %v888
      %v890 = vpop.f32.mrb[0].mxu0
      %891 = vmatprep.mubr.bf16.mxu0 0
      %892 = vmatmul.mubr.bf16.gmra.mrb[0].mxu0 %v695
      %v893 = vpop.f32.mrb[0].mxu0
      %v894 = vadd.f32 0.0, %v893
      %v895 = vpop.f32.mrb[0].mxu0
      %v896 = vpop.f32.mrb[0].mxu0
      %v897 = vadd.f32 0.0, %v896
      %v898 = vpop.f32.mrb[0].mxu0
      %899 = vmatprep.mubr.bf16.mxu0 0
      %900 = vmatmul.mubr.bf16.gmra.mrb[0].mxu0 %v696
      %v901 = vpop.f32.mrb[0].mxu0
      %v902 = vadd.f32 0.0, %v901
      %v903 = vpop.f32.mrb[0].mxu0
      %v904 = vpop.f32.mrb[0].mxu0
      %v905 = vadd.f32 0.0, %v904
      %v906 = vpop.f32.mrb[0].mxu0
      %907 = vmatprep.mubr.bf16.mxu0 0
      %908 = vmatmul.mubr.bf16.gmra.mrb[0].mxu0 %v697
      %v909 = vpop.f32.mrb[0].mxu0
      %v910 = vadd.f32 0.0, %v909
      %v911 = vpop.f32.mrb[0].mxu0
      %v912 = vpop.f32.mrb[0].mxu0
      %v913 = vadd.f32 0.0, %v912
      %v914 = vpop.f32.mrb[0].mxu0
      %915 = vmatprep.mubr.bf16.mxu0 0
      %916 = vmatmul.mubr.bf16.gmra.mrb[0].mxu0 %v698
      %v917 = vpop.f32.mrb[0].mxu0
      %v918 = vadd.f32 0.0, %v917
      %v919 = vpop.f32.mrb[0].mxu0
      %v920 = vpop.f32.mrb[0].mxu0
      %v921 = vadd.f32 0.0, %v920
      %v922 = vpop.f32.mrb[0].mxu0
      %923 = vdwg.mxu0
      %v956 = vunpack.c.l.b16 %v183
      %v957 = vunpack.c.l.b16 %v184
      %v958 = vunpack.c.l.b16 %v185
      %v959 = vunpack.c.l.b16 %v186
      %v960 = vunpack.c.l.b16 %v187
      %v961 = vunpack.c.l.b16 %v188
      %v962 = vunpack.c.l.b16 %v189
      %v963 = vunpack.c.l.b16 %v190
      %v964 = vunpack.c.l.b16 %v191
      %v965 = vunpack.c.l.b16 %v192
      %v966 = vunpack.c.l.b16 %v193
      %v967 = vunpack.c.l.b16 %v194
      %v968 = vunpack.c.l.b16 %v195
      %v969 = vunpack.c.l.b16 %v196
      %v970 = vunpack.c.l.b16 %v197
      %v971 = vunpack.c.l.b16 %v198
      %v972 = vunpack.c.l.b16 %v199
      %v973 = vunpack.c.l.b16 %v200
      %v974 = vunpack.c.l.b16 %v201
      %v975 = vunpack.c.l.b16 %v202
      %v976 = vunpack.c.l.b16 %v203
      %v977 = vunpack.c.l.b16 %v204
      %v978 = vunpack.c.l.b16 %v205
      %v979 = vunpack.c.l.b16 %v206
      %v980 = vunpack.c.l.b16 %v207
      %v981 = vunpack.c.l.b16 %v208
      %v982 = vunpack.c.l.b16 %v209
      %v983 = vunpack.c.l.b16 %v210
      %v984 = vunpack.c.l.b16 %v211
      %v985 = vunpack.c.l.b16 %v212
      %v986 = vunpack.c.l.b16 %v213
      %v987 = vunpack.c.l.b16 %v214
      %v988 = vpack.c.b16 %v957, %v956
      %v989 = vpack.c.b16 %v959, %v958
      %v990 = vpack.c.b16 %v961, %v960
      %v991 = vpack.c.b16 %v963, %v962
      %v992 = vpack.c.b16 %v965, %v964
      %v993 = vpack.c.b16 %v967, %v966
      %v994 = vpack.c.b16 %v969, %v968
      %v995 = vpack.c.b16 %v971, %v970
      %v996 = vpack.c.b16 %v973, %v972
      %v997 = vpack.c.b16 %v975, %v974
      %v998 = vpack.c.b16 %v977, %v976
      %v999 = vpack.c.b16 %v979, %v978
      %v1000 = vpack.c.b16 %v981, %v980
      %v1001 = vpack.c.b16 %v983, %v982
      %v1002 = vpack.c.b16 %v985, %v984
      %v1003 = vpack.c.b16 %v987, %v986
      %v1036 = vunpack.c.l.b16 %v215
      %v1037 = vunpack.c.l.b16 %v216
      %v1038 = vunpack.c.l.b16 %v217
      %v1039 = vunpack.c.l.b16 %v218
      %v1040 = vunpack.c.l.b16 %v219
      %v1041 = vunpack.c.l.b16 %v220
      %v1042 = vunpack.c.l.b16 %v221
      %v1043 = vunpack.c.l.b16 %v222
      %v1044 = vunpack.c.l.b16 %v223
      %v1045 = vunpack.c.l.b16 %v224
      %v1046 = vunpack.c.l.b16 %v225
      %v1047 = vunpack.c.l.b16 %v226
      %v1048 = vunpack.c.l.b16 %v227
      %v1049 = vunpack.c.l.b16 %v228
      %v1050 = vunpack.c.l.b16 %v229
      %v1051 = vunpack.c.l.b16 %v230
      %v1052 = vpack.c.b16 %v1037, %v1036
      %v1053 = vpack.c.b16 %v1039, %v1038
      %v1054 = vpack.c.b16 %v1041, %v1040
      %v1055 = vpack.c.b16 %v1043, %v1042
      %v1056 = vpack.c.b16 %v1045, %v1044
      %v1057 = vpack.c.b16 %v1047, %v1046
      %v1058 = vpack.c.b16 %v1049, %v1048
      %v1059 = vpack.c.b16 %v1051, %v1050
      %1068 = vmatprep.subr.bf16.mxu0 0
      %1069 = vmatpush1.bf16.msra.mxu0 %v1052
      %1070 = vmatprep.subr.bf16.mxu0 0
      %1071 = vmatpush1.bf16.msra.mxu0 %v1053
      %1072 = vmatprep.subr.bf16.mxu0 0
      %1073 = vmatpush1.bf16.msra.mxu0 %v1054
      %1074 = vmatprep.subr.bf16.mxu0 0
      %1075 = vmatpush1.bf16.msra.mxu0 %v1055
      %1076 = vmatprep.subr.bf16.mxu0 0
      %1077 = vmatpush1.bf16.msra.mxu0 %v1056
      %1078 = vmatprep.subr.bf16.mxu0 0
      %1079 = vmatpush1.bf16.msra.mxu0 %v1057
      %1080 = vmatprep.subr.bf16.mxu0 0
      %1081 = vmatpush1.bf16.msra.mxu0 %v1058
      %1082 = vmatprep.subr.bf16.mxu0 0
      %1083 = vmatpush1.bf16.msra.mxu0 %v1059
      %1084 = vmatprep.subr.bf16.mxu0 0
      %1085 = vmatpush1.bf16.msra.mxu0 0
      %1086 = vmatprep.subr.bf16.mxu0 0
      %1087 = vmatpush1.bf16.msra.mxu0 0
      %1088 = vmatprep.subr.bf16.mxu0 0
      %1089 = vmatpush1.bf16.msra.mxu0 0
      %1090 = vmatprep.subr.bf16.mxu0 0
      %1091 = vmatpush1.bf16.msra.mxu0 0
      %1092 = vmatprep.subr.bf16.mxu0 0
      %1093 = vmatpush1.bf16.msra.mxu0 0
      %1094 = vmatprep.subr.bf16.mxu0 0
      %1095 = vmatpush1.bf16.msra.mxu0 0
      %1096 = vmatprep.subr.bf16.mxu0 0
      %1097 = vmatpush1.bf16.msra.mxu0 0
      %1098 = vmatprep.subr.bf16.mxu0 0
      %1099 = vmatpush1.bf16.msra.mxu0 0
      %1100 = vmatprep.mubr.bf16.mxu0 0
      %1101 = vmatmul.mubr.bf16.gmra.mrb[0].mxu0 %v988
      %v1102 = vpop.f32.mrb[0].mxu0
      %v1103 = vadd.f32 %v798, %v1102
      %v1104 = vpop.f32.mrb[0].mxu0
      %v1105 = vpop.f32.mrb[0].mxu0
      %v1106 = vadd.f32 %v801, %v1105
      %v1107 = vpop.f32.mrb[0].mxu0
      %1108 = vmatprep.mubr.bf16.mxu0 0
      %1109 = vmatmul.mubr.bf16.gmra.mrb[0].mxu0 %v989
      %v1110 = vpop.f32.mrb[0].mxu0
      %v1111 = vadd.f32 %v806, %v1110
      %v1112 = vpop.f32.mrb[0].mxu0
      %v1113 = vpop.f32.mrb[0].mxu0
      %v1114 = vadd.f32 %v809, %v1113
      %v1115 = vpop.f32.mrb[0].mxu0
      %1116 = vmatprep.mubr.bf16.mxu0 0
      %1117 = vmatmul.mubr.bf16.gmra.mrb[0].mxu0 %v990
      %v1118 = vpop.f32.mrb[0].mxu0
      %v1119 = vadd.f32 %v814, %v1118
      %v1120 = vpop.f32.mrb[0].mxu0
      %v1121 = vpop.f32.mrb[0].mxu0
      %v1122 = vadd.f32 %v817, %v1121
      %v1123 = vpop.f32.mrb[0].mxu0
      %1124 = vmatprep.mubr.bf16.mxu0 0
      %1125 = vmatmul.mubr.bf16.gmra.mrb[0].mxu0 %v991
      %v1126 = vpop.f32.mrb[0].mxu0
      %v1127 = vadd.f32 %v822, %v1126
      %v1128 = vpop.f32.mrb[0].mxu0
      %v1129 = vpop.f32.mrb[0].mxu0
      %v1130 = vadd.f32 %v825, %v1129
      %v1131 = vpop.f32.mrb[0].mxu0
      %1132 = vmatprep.mubr.bf16.mxu0 0
      %1133 = vmatmul.mubr.bf16.gmra.mrb[0].mxu0 %v992
      %v1134 = vpop.f32.mrb[0].mxu0
      %v1135 = vadd.f32 %v830, %v1134
      %v1136 = vpop.f32.mrb[0].mxu0
      %v1137 = vpop.f32.mrb[0].mxu0
      %v1138 = vadd.f32 %v833, %v1137
      %v1139 = vpop.f32.mrb[0].mxu0
      %1140 = vmatprep.mubr.bf16.mxu0 0
      %1141 = vmatmul.mubr.bf16.gmra.mrb[0].mxu0 %v993
      %v1142 = vpop.f32.mrb[0].mxu0
      %v1143 = vadd.f32 %v838, %v1142
      %v1144 = vpop.f32.mrb[0].mxu0
      %v1145 = vpop.f32.mrb[0].mxu0
      %v1146 = vadd.f32 %v841, %v1145
      %v1147 = vpop.f32.mrb[0].mxu0
      %1148 = vmatprep.mubr.bf16.mxu0 0
      %1149 = vmatmul.mubr.bf16.gmra.mrb[0].mxu0 %v994
      %v1150 = vpop.f32.mrb[0].mxu0
      %v1151 = vadd.f32 %v846, %v1150
      %v1152 = vpop.f32.mrb[0].mxu0
      %v1153 = vpop.f32.mrb[0].mxu0
      %v1154 = vadd.f32 %v849, %v1153
      %v1155 = vpop.f32.mrb[0].mxu0
      %1156 = vmatprep.mubr.bf16.mxu0 0
      %1157 = vmatmul.mubr.bf16.gmra.mrb[0].mxu0 %v995
      %v1158 = vpop.f32.mrb[0].mxu0
      %v1159 = vadd.f32 %v854, %v1158
      %v1160 = vpop.f32.mrb[0].mxu0
      %v1161 = vpop.f32.mrb[0].mxu0
      %v1162 = vadd.f32 %v857, %v1161
      %v1163 = vpop.f32.mrb[0].mxu0
      %1164 = vmatprep.mubr.bf16.mxu0 0
      %1165 = vmatmul.mubr.bf16.gmra.mrb[0].mxu0 %v996
      %v1166 = vpop.f32.mrb[0].mxu0
      %v1167 = vadd.f32 %v862, %v1166
      %v1168 = vpop.f32.mrb[0].mxu0
      %v1169 = vpop.f32.mrb[0].mxu0
      %v1170 = vadd.f32 %v865, %v1169
      %v1171 = vpop.f32.mrb[0].mxu0
      %1172 = vmatprep.mubr.bf16.mxu0 0
      %1173 = vmatmul.mubr.bf16.gmra.mrb[0].mxu0 %v997
      %v1174 = vpop.f32.mrb[0].mxu0
      %v1175 = vadd.f32 %v870, %v1174
      %v1176 = vpop.f32.mrb[0].mxu0
      %v1177 = vpop.f32.mrb[0].mxu0
      %v1178 = vadd.f32 %v873, %v1177
      %v1179 = vpop.f32.mrb[0].mxu0
      %1180 = vmatprep.mubr.bf16.mxu0 0
      %1181 = vmatmul.mubr.bf16.gmra.mrb[0].mxu0 %v998
      %v1182 = vpop.f32.mrb[0].mxu0
      %v1183 = vadd.f32 %v878, %v1182
      %v1184 = vpop.f32.mrb[0].mxu0
      %v1185 = vpop.f32.mrb[0].mxu0
      %v1186 = vadd.f32 %v881, %v1185
      %v1187 = vpop.f32.mrb[0].mxu0
      %1188 = vmatprep.mubr.bf16.mxu0 0
      %1189 = vmatmul.mubr.bf16.gmra.mrb[0].mxu0 %v999
      %v1190 = vpop.f32.mrb[0].mxu0
      %v1191 = vadd.f32 %v886, %v1190
      %v1192 = vpop.f32.mrb[0].mxu0
      %v1193 = vpop.f32.mrb[0].mxu0
      %v1194 = vadd.f32 %v889, %v1193
      %v1195 = vpop.f32.mrb[0].mxu0
      %1196 = vmatprep.mubr.bf16.mxu0 0
      %1197 = vmatmul.mubr.bf16.gmra.mrb[0].mxu0 %v1000
      %v1198 = vpop.f32.mrb[0].mxu0
      %v1199 = vadd.f32 %v894, %v1198
      %v1200 = vpop.f32.mrb[0].mxu0
      %v1201 = vpop.f32.mrb[0].mxu0
      %v1202 = vadd.f32 %v897, %v1201
      %v1203 = vpop.f32.mrb[0].mxu0
      %1204 = vmatprep.mubr.bf16.mxu0 0
      %1205 = vmatmul.mubr.bf16.gmra.mrb[0].mxu0 %v1001
      %v1206 = vpop.f32.mrb[0].mxu0
      %v1207 = vadd.f32 %v902, %v1206
      %v1208 = vpop.f32.mrb[0].mxu0
      %v1209 = vpop.f32.mrb[0].mxu0
      %v1210 = vadd.f32 %v905, %v1209
      %v1211 = vpop.f32.mrb[0].mxu0
      %1212 = vmatprep.mubr.bf16.mxu0 0
      %1213 = vmatmul.mubr.bf16.gmra.mrb[0].mxu0 %v1002
      %v1214 = vpop.f32.mrb[0].mxu0
      %v1215 = vadd.f32 %v910, %v1214
      %v1216 = vpop.f32.mrb[0].mxu0
      %v1217 = vpop.f32.mrb[0].mxu0
      %v1218 = vadd.f32 %v913, %v1217
      %v1219 = vpop.f32.mrb[0].mxu0
      %1220 = vmatprep.mubr.bf16.mxu0 0
      %1221 = vmatmul.mubr.bf16.gmra.mrb[0].mxu0 %v1003
      %v1222 = vpop.f32.mrb[0].mxu0
      %v1223 = vadd.f32 %v918, %v1222
      %v1224 = vpop.f32.mrb[0].mxu0
      %v1225 = vpop.f32.mrb[0].mxu0
      %v1226 = vadd.f32 %v921, %v1225
      %v1227 = vpop.f32.mrb[0].mxu0
      %1228 = vdwg.mxu0
      %v1229 = vld [vmem:[%s172] sm:$0xe]
      %v1230 = vld [vmem:[%s172 + $0xc] sm:$0xe]
      %v1231 = vld [vmem:[%s172 + $0x18] sm:$0xe]
      %v1232 = vld [vmem:[%s172 + $0x24] sm:$0xe]
      %v1233 = vld [vmem:[%s172 + $0x30] sm:$0xe]
      %v1234 = vld [vmem:[%s172 + $0x3c] sm:$0xe]
      %v1235 = vld [vmem:[%s172 + $0x48] sm:$0xe]
      %v1236 = vld [vmem:[%s172 + $0x54] sm:$0xe]
      %v1237 = vld [vmem:[%s172 + $0x60] sm:$0xe]
      %v1238 = vld [vmem:[%s172 + $0x6c] sm:$0xe]
      %v1239 = vld [vmem:[%s172 + $0x78] sm:$0xe]
      %v1240 = vld [vmem:[%s172 + $0x84] sm:$0xe]
      %v1241 = vld [vmem:[%s172 + $0x90] sm:$0xe]
      %v1242 = vld [vmem:[%s172 + $0x9c] sm:$0xe]
      %v1243 = vld [vmem:[%s172 + $0xa8] sm:$0xe]
      %v1244 = vld [vmem:[%s172 + $0xb4] sm:$0xe]
      %vm1277 = vcmask 1042432
      %vm1278 = vcmask 1046532
      %vm1279 = vmor %vm1277, %vm1278
      %v1280 = vrot.slane %v1229, 5
      %v1281 = vrot.slane %v1280, 4
      %v1282 = vrot.slane %v184, 5
      %v1283 = vsel %vm1279, %v1281, %v1282
      %v1284 = vrot.slane %v1282, 4
      %v1285 = vrot.slane %v231, 5
      %v1286 = vsel %vm1279, %v1284, %v1285
      %v1287 = vrot.slane %v1230, 5
      %v1288 = vrot.slane %v1287, 4
      %v1289 = vrot.slane %v186, 5
      %v1290 = vsel %vm1279, %v1288, %v1289
      %v1291 = vrot.slane %v1289, 4
      %v1292 = vrot.slane %v232, 5
      %v1293 = vsel %vm1279, %v1291, %v1292
      %v1294 = vrot.slane %v1231, 5
      %v1295 = vrot.slane %v1294, 4
      %v1296 = vrot.slane %v188, 5
      %v1297 = vsel %vm1279, %v1295, %v1296
      %v1298 = vrot.slane %v1296, 4
      %v1299 = vrot.slane %v233, 5
      %v1300 = vsel %vm1279, %v1298, %v1299
      %v1301 = vrot.slane %v1232, 5
      %v1302 = vrot.slane %v1301, 4
      %v1303 = vrot.slane %v190, 5
      %v1304 = vsel %vm1279, %v1302, %v1303
      %v1305 = vrot.slane %v1303, 4
      %v1306 = vrot.slane %v234, 5
      %v1307 = vsel %vm1279, %v1305, %v1306
      %v1308 = vrot.slane %v1233, 5
      %v1309 = vrot.slane %v1308, 4
      %v1310 = vrot.slane %v192, 5
      %v1311 = vsel %vm1279, %v1309, %v1310
      %v1312 = vrot.slane %v1310, 4
      %v1313 = vrot.slane %v235, 5
      %v1314 = vsel %vm1279, %v1312, %v1313
      %v1315 = vrot.slane %v1234, 5
      %v1316 = vrot.slane %v1315, 4
      %v1317 = vrot.slane %v194, 5
      %v1318 = vsel %vm1279, %v1316, %v1317
      %v1319 = vrot.slane %v1317, 4
      %v1320 = vrot.slane %v236, 5
      %v1321 = vsel %vm1279, %v1319, %v1320
      %v1322 = vrot.slane %v1235, 5
      %v1323 = vrot.slane %v1322, 4
      %v1324 = vrot.slane %v196, 5
      %v1325 = vsel %vm1279, %v1323, %v1324
      %v1326 = vrot.slane %v1324, 4
      %v1327 = vrot.slane %v237, 5
      %v1328 = vsel %vm1279, %v1326, %v1327
      %v1329 = vrot.slane %v1236, 5
      %v1330 = vrot.slane %v1329, 4
      %v1331 = vrot.slane %v198, 5
      %v1332 = vsel %vm1279, %v1330, %v1331
      %v1333 = vrot.slane %v1331, 4
      %v1334 = vrot.slane %v238, 5
      %v1335 = vsel %vm1279, %v1333, %v1334
      %v1336 = vrot.slane %v1237, 5
      %v1337 = vrot.slane %v1336, 4
      %v1338 = vrot.slane %v200, 5
      %v1339 = vsel %vm1279, %v1337, %v1338
      %v1340 = vrot.slane %v1338, 4
      %v1341 = vrot.slane %v239, 5
      %v1342 = vsel %vm1279, %v1340, %v1341
      %v1343 = vrot.slane %v1238, 5
      %v1344 = vrot.slane %v1343, 4
      %v1345 = vrot.slane %v202, 5
      %v1346 = vsel %vm1279, %v1344, %v1345
      %v1347 = vrot.slane %v1345, 4
      %v1348 = vrot.slane %v240, 5
      %v1349 = vsel %vm1279, %v1347, %v1348
      %v1350 = vrot.slane %v1239, 5
      %v1351 = vrot.slane %v1350, 4
      %v1352 = vrot.slane %v204, 5
      %v1353 = vsel %vm1279, %v1351, %v1352
      %v1354 = vrot.slane %v1352, 4
      %v1355 = vrot.slane %v241, 5
      %v1356 = vsel %vm1279, %v1354, %v1355
      %v1357 = vrot.slane %v1240, 5
      %v1358 = vrot.slane %v1357, 4
      %v1359 = vrot.slane %v206, 5
      %v1360 = vsel %vm1279, %v1358, %v1359
      %v1361 = vrot.slane %v1359, 4
      %v1362 = vrot.slane %v242, 5
      %v1363 = vsel %vm1279, %v1361, %v1362
      %v1364 = vrot.slane %v1241, 5
      %v1365 = vrot.slane %v1364, 4
      %v1366 = vrot.slane %v208, 5
      %v1367 = vsel %vm1279, %v1365, %v1366
      %v1368 = vrot.slane %v1366, 4
      %v1369 = vrot.slane %v243, 5
      %v1370 = vsel %vm1279, %v1368, %v1369
      %v1371 = vrot.slane %v1242, 5
      %v1372 = vrot.slane %v1371, 4
      %v1373 = vrot.slane %v210, 5
      %v1374 = vsel %vm1279, %v1372, %v1373
      %v1375 = vrot.slane %v1373, 4
      %v1376 = vrot.slane %v244, 5
      %v1377 = vsel %vm1279, %v1375, %v1376
      %v1378 = vrot.slane %v1243, 5
      %v1379 = vrot.slane %v1378, 4
      %v1380 = vrot.slane %v212, 5
      %v1381 = vsel %vm1279, %v1379, %v1380
      %v1382 = vrot.slane %v1380, 4
      %v1383 = vrot.slane %v245, 5
      %v1384 = vsel %vm1279, %v1382, %v1383
      %v1385 = vrot.slane %v1244, 5
      %v1386 = vrot.slane %v1385, 4
      %v1387 = vrot.slane %v214, 5
      %v1388 = vsel %vm1279, %v1386, %v1387
      %v1389 = vrot.slane %v1387, 4
      %v1390 = vrot.slane %v246, 5
      %v1391 = vsel %vm1279, %v1389, %v1390
      %s1392 = scalar_lea.vmem %s1, 128
      %v1393 = vld [vmem:[%s1392] sm:$0xf]
      %v1394 = vld [vmem:[%s1392 + $0x4] sm:$0xf]
      %v1395 = vld [vmem:[%s1392 + $0x8] sm:$0xf]
      %v1396 = vld [vmem:[%s1392 + $0xc] sm:$0xf]
      %v1397 = vld [vmem:[%s1392 + $0x10] sm:$0xf]
      %v1398 = vld [vmem:[%s1392 + $0x14] sm:$0xf]
      %v1399 = vld [vmem:[%s1392 + $0x18] sm:$0xf]
      %v1400 = vld [vmem:[%s1392 + $0x1c] sm:$0xf]
      %v1401 = vld [vmem:[%s1392 + $0x20] sm:$0xf]
      %v1402 = vld [vmem:[%s1392 + $0x24] sm:$0xf]
      %v1403 = vld [vmem:[%s1392 + $0x28] sm:$0xf]
      %v1404 = vld [vmem:[%s1392 + $0x2c] sm:$0xf]
      %v1405 = vld [vmem:[%s1392 + $0x30] sm:$0xf]
      %v1406 = vld [vmem:[%s1392 + $0x34] sm:$0xf]
      %v1407 = vld [vmem:[%s1392 + $0x38] sm:$0xf]
      %v1408 = vld [vmem:[%s1392 + $0x3c] sm:$0xf]
      %v1409 = vunpack.c.l.b16 %v1283
      %v1410 = vunpack.c.l.b16 %v1286
      %v1411 = vunpack.c.l.b16 %v1290
      %v1412 = vunpack.c.l.b16 %v1293
      %v1413 = vunpack.c.l.b16 %v1297
      %v1414 = vunpack.c.l.b16 %v1300
      %v1415 = vunpack.c.l.b16 %v1304
      %v1416 = vunpack.c.l.b16 %v1307
      %v1417 = vunpack.c.l.b16 %v1311
      %v1418 = vunpack.c.l.b16 %v1314
      %v1419 = vunpack.c.l.b16 %v1318
      %v1420 = vunpack.c.l.b16 %v1321
      %v1421 = vunpack.c.l.b16 %v1325
      %v1422 = vunpack.c.l.b16 %v1328
      %v1423 = vunpack.c.l.b16 %v1332
      %v1424 = vunpack.c.l.b16 %v1335
      %v1425 = vunpack.c.l.b16 %v1339
      %v1426 = vunpack.c.l.b16 %v1342
      %v1427 = vunpack.c.l.b16 %v1346
      %v1428 = vunpack.c.l.b16 %v1349
      %v1429 = vunpack.c.l.b16 %v1353
      %v1430 = vunpack.c.l.b16 %v1356
      %v1431 = vunpack.c.l.b16 %v1360
      %v1432 = vunpack.c.l.b16 %v1363
      %v1433 = vunpack.c.l.b16 %v1367
      %v1434 = vunpack.c.l.b16 %v1370
      %v1435 = vunpack.c.l.b16 %v1374
      %v1436 = vunpack.c.l.b16 %v1377
      %v1437 = vunpack.c.l.b16 %v1381
      %v1438 = vunpack.c.l.b16 %v1384
      %v1439 = vunpack.c.l.b16 %v1388
      %v1440 = vunpack.c.l.b16 %v1391
      %v1441 = vpack.c.b16 %v1410, %v1409
      %v1442 = vpack.c.b16 %v1412, %v1411
      %v1443 = vpack.c.b16 %v1414, %v1413
      %v1444 = vpack.c.b16 %v1416, %v1415
      %v1445 = vpack.c.b16 %v1418, %v1417
      %v1446 = vpack.c.b16 %v1420, %v1419
      %v1447 = vpack.c.b16 %v1422, %v1421
      %v1448 = vpack.c.b16 %v1424, %v1423
      %v1449 = vpack.c.b16 %v1426, %v1425
      %v1450 = vpack.c.b16 %v1428, %v1427
      %v1451 = vpack.c.b16 %v1430, %v1429
      %v1452 = vpack.c.b16 %v1432, %v1431
      %v1453 = vpack.c.b16 %v1434, %v1433
      %v1454 = vpack.c.b16 %v1436, %v1435
      %v1455 = vpack.c.b16 %v1438, %v1437
      %v1456 = vpack.c.b16 %v1440, %v1439
      %v1489 = vunpack.c.l.b16 %v1393
      %v1490 = vunpack.c.l.b16 %v1394
      %v1491 = vunpack.c.l.b16 %v1395
      %v1492 = vunpack.c.l.b16 %v1396
      %v1493 = vunpack.c.l.b16 %v1397
      %v1494 = vunpack.c.l.b16 %v1398
      %v1495 = vunpack.c.l.b16 %v1399
      %v1496 = vunpack.c.l.b16 %v1400
      %v1497 = vunpack.c.l.b16 %v1401
      %v1498 = vunpack.c.l.b16 %v1402
      %v1499 = vunpack.c.l.b16 %v1403
      %v1500 = vunpack.c.l.b16 %v1404
      %v1501 = vunpack.c.l.b16 %v1405
      %v1502 = vunpack.c.l.b16 %v1406
      %v1503 = vunpack.c.l.b16 %v1407
      %v1504 = vunpack.c.l.b16 %v1408
      %v1505 = vpack.c.b16 %v1490, %v1489
      %v1506 = vpack.c.b16 %v1492, %v1491
      %v1507 = vpack.c.b16 %v1494, %v1493
      %v1508 = vpack.c.b16 %v1496, %v1495
      %v1509 = vpack.c.b16 %v1498, %v1497
      %v1510 = vpack.c.b16 %v1500, %v1499
      %v1511 = vpack.c.b16 %v1502, %v1501
      %v1512 = vpack.c.b16 %v1504, %v1503
      %1521 = vmatprep.subr.bf16.mxu0 0
      %1522 = vmatpush1.bf16.msra.mxu0 %v1505
      %1523 = vmatprep.subr.bf16.mxu0 0
      %1524 = vmatpush1.bf16.msra.mxu0 %v1506
      %1525 = vmatprep.subr.bf16.mxu0 0
      %1526 = vmatpush1.bf16.msra.mxu0 %v1507
      %1527 = vmatprep.subr.bf16.mxu0 0
      %1528 = vmatpush1.bf16.msra.mxu0 %v1508
      %1529 = vmatprep.subr.bf16.mxu0 0
      %1530 = vmatpush1.bf16.msra.mxu0 %v1509
      %1531 = vmatprep.subr.bf16.mxu0 0
      %1532 = vmatpush1.bf16.msra.mxu0 %v1510
      %1533 = vmatprep.subr.bf16.mxu0 0
      %1534 = vmatpush1.bf16.msra.mxu0 %v1511
      %1535 = vmatprep.subr.bf16.mxu0 0
      %1536 = vmatpush1.bf16.msra.mxu0 %v1512
      %1537 = vmatprep.subr.bf16.mxu0 0
      %1538 = vmatpush1.bf16.msra.mxu0 0
      %1539 = vmatprep.subr.bf16.mxu0 0
      %1540 = vmatpush1.bf16.msra.mxu0 0
      %1541 = vmatprep.subr.bf16.mxu0 0
      %1542 = vmatpush1.bf16.msra.mxu0 0
      %1543 = vmatprep.subr.bf16.mxu0 0
      %1544 = vmatpush1.bf16.msra.mxu0 0
      %1545 = vmatprep.subr.bf16.mxu0 0
      %1546 = vmatpush1.bf16.msra.mxu0 0
      %1547 = vmatprep.subr.bf16.mxu0 0
      %1548 = vmatpush1.bf16.msra.mxu0 0
      %1549 = vmatprep.subr.bf16.mxu0 0
      %1550 = vmatpush1.bf16.msra.mxu0 0
      %1551 = vmatprep.subr.bf16.mxu0 0
      %1552 = vmatpush1.bf16.msra.mxu0 0
      %1553 = vmatprep.mubr.bf16.mxu0 0
      %1554 = vmatmul.mubr.bf16.gmra.mrb[0].mxu0 %v1441
      %v1555 = vpop.f32.mrb[0].mxu0
      %v1556 = vadd.f32 0.0, %v1555
      %v1557 = vpop.f32.mrb[0].mxu0
      %v1558 = vpop.f32.mrb[0].mxu0
      %v1559 = vadd.f32 0.0, %v1558
      %v1560 = vpop.f32.mrb[0].mxu0
      %1561 = vmatprep.mubr.bf16.mxu0 0
      %1562 = vmatmul.mubr.bf16.gmra.mrb[0].mxu0 %v1442
      %v1563 = vpop.f32.mrb[0].mxu0
      %v1564 = vadd.f32 0.0, %v1563
      %v1565 = vpop.f32.mrb[0].mxu0
      %v1566 = vpop.f32.mrb[0].mxu0
      %v1567 = vadd.f32 0.0, %v1566
      %v1568 = vpop.f32.mrb[0].mxu0
      %1569 = vmatprep.mubr.bf16.mxu0 0
      %1570 = vmatmul.mubr.bf16.gmra.mrb[0].mxu0 %v1443
      %v1571 = vpop.f32.mrb[0].mxu0
      %v1572 = vadd.f32 0.0, %v1571
      %v1573 = vpop.f32.mrb[0].mxu0
      %v1574 = vpop.f32.mrb[0].mxu0
      %v1575 = vadd.f32 0.0, %v1574
      %v1576 = vpop.f32.mrb[0].mxu0
      %1577 = vmatprep.mubr.bf16.mxu0 0
      %1578 = vmatmul.mubr.bf16.gmra.mrb[0].mxu0 %v1444
      %v1579 = vpop.f32.mrb[0].mxu0
      %v1580 = vadd.f32 0.0, %v1579
      %v1581 = vpop.f32.mrb[0].mxu0
      %v1582 = vpop.f32.mrb[0].mxu0
      %v1583 = vadd.f32 0.0, %v1582
      %v1584 = vpop.f32.mrb[0].mxu0
      %1585 = vmatprep.mubr.bf16.mxu0 0
      %1586 = vmatmul.mubr.bf16.gmra.mrb[0].mxu0 %v1445
      %v1587 = vpop.f32.mrb[0].mxu0
      %v1588 = vadd.f32 0.0, %v1587
      %v1589 = vpop.f32.mrb[0].mxu0
      %v1590 = vpop.f32.mrb[0].mxu0
      %v1591 = vadd.f32 0.0, %v1590
      %v1592 = vpop.f32.mrb[0].mxu0
      %1593 = vmatprep.mubr.bf16.mxu0 0
      %1594 = vmatmul.mubr.bf16.gmra.mrb[0].mxu0 %v1446
      %v1595 = vpop.f32.mrb[0].mxu0
      %v1596 = vadd.f32 0.0, %v1595
      %v1597 = vpop.f32.mrb[0].mxu0
      %v1598 = vpop.f32.mrb[0].mxu0
      %v1599 = vadd.f32 0.0, %v1598
      %v1600 = vpop.f32.mrb[0].mxu0
      %1601 = vmatprep.mubr.bf16.mxu0 0
      %1602 = vmatmul.mubr.bf16.gmra.mrb[0].mxu0 %v1447
      %v1603 = vpop.f32.mrb[0].mxu0
      %v1604 = vadd.f32 0.0, %v1603
      %v1605 = vpop.f32.mrb[0].mxu0
      %v1606 = vpop.f32.mrb[0].mxu0
      %v1607 = vadd.f32 0.0, %v1606
      %v1608 = vpop.f32.mrb[0].mxu0
      %1609 = vmatprep.mubr.bf16.mxu0 0
      %1610 = vmatmul.mubr.bf16.gmra.mrb[0].mxu0 %v1448
      %v1611 = vpop.f32.mrb[0].mxu0
      %v1612 = vadd.f32 0.0, %v1611
      %v1613 = vpop.f32.mrb[0].mxu0
      %v1614 = vpop.f32.mrb[0].mxu0
      %v1615 = vadd.f32 0.0, %v1614
      %v1616 = vpop.f32.mrb[0].mxu0
      %1617 = vmatprep.mubr.bf16.mxu0 0
      %1618 = vmatmul.mubr.bf16.gmra.mrb[0].mxu0 %v1449
      %v1619 = vpop.f32.mrb[0].mxu0
      %v1620 = vadd.f32 0.0, %v1619
      %v1621 = vpop.f32.mrb[0].mxu0
      %v1622 = vpop.f32.mrb[0].mxu0
      %v1623 = vadd.f32 0.0, %v1622
      %v1624 = vpop.f32.mrb[0].mxu0
      %1625 = vmatprep.mubr.bf16.mxu0 0
      %1626 = vmatmul.mubr.bf16.gmra.mrb[0].mxu0 %v1450
      %v1627 = vpop.f32.mrb[0].mxu0
      %v1628 = vadd.f32 0.0, %v1627
      %v1629 = vpop.f32.mrb[0].mxu0
      %v1630 = vpop.f32.mrb[0].mxu0
      %v1631 = vadd.f32 0.0, %v1630
      %v1632 = vpop.f32.mrb[0].mxu0
      %1633 = vmatprep.mubr.bf16.mxu0 0
      %1634 = vmatmul.mubr.bf16.gmra.mrb[0].mxu0 %v1451
      %v1635 = vpop.f32.mrb[0].mxu0
      %v1636 = vadd.f32 0.0, %v1635
      %v1637 = vpop.f32.mrb[0].mxu0
      %v1638 = vpop.f32.mrb[0].mxu0
      %v1639 = vadd.f32 0.0, %v1638
      %v1640 = vpop.f32.mrb[0].mxu0
      %1641 = vmatprep.mubr.bf16.mxu0 0
      %1642 = vmatmul.mubr.bf16.gmra.mrb[0].mxu0 %v1452
      %v1643 = vpop.f32.mrb[0].mxu0
      %v1644 = vadd.f32 0.0, %v1643
      %v1645 = vpop.f32.mrb[0].mxu0
      %v1646 = vpop.f32.mrb[0].mxu0
      %v1647 = vadd.f32 0.0, %v1646
      %v1648 = vpop.f32.mrb[0].mxu0
      %1649 = vmatprep.mubr.bf16.mxu0 0
      %1650 = vmatmul.mubr.bf16.gmra.mrb[0].mxu0 %v1453
      %v1651 = vpop.f32.mrb[0].mxu0
      %v1652 = vadd.f32 0.0, %v1651
      %v1653 = vpop.f32.mrb[0].mxu0
      %v1654 = vpop.f32.mrb[0].mxu0
      %v1655 = vadd.f32 0.0, %v1654
      %v1656 = vpop.f32.mrb[0].mxu0
      %1657 = vmatprep.mubr.bf16.mxu0 0
      %1658 = vmatmul.mubr.bf16.gmra.mrb[0].mxu0 %v1454
      %v1659 = vpop.f32.mrb[0].mxu0
      %v1660 = vadd.f32 0.0, %v1659
      %v1661 = vpop.f32.mrb[0].mxu0
      %v1662 = vpop.f32.mrb[0].mxu0
      %v1663 = vadd.f32 0.0, %v1662
      %v1664 = vpop.f32.mrb[0].mxu0
      %1665 = vmatprep.mubr.bf16.mxu0 0
      %1666 = vmatmul.mubr.bf16.gmra.mrb[0].mxu0 %v1455
      %v1667 = vpop.f32.mrb[0].mxu0
      %v1668 = vadd.f32 0.0, %v1667
      %v1669 = vpop.f32.mrb[0].mxu0
      %v1670 = vpop.f32.mrb[0].mxu0
      %v1671 = vadd.f32 0.0, %v1670
      %v1672 = vpop.f32.mrb[0].mxu0
      %1673 = vmatprep.mubr.bf16.mxu0 0
      %1674 = vmatmul.mubr.bf16.gmra.mrb[0].mxu0 %v1456
      %v1675 = vpop.f32.mrb[0].mxu0
      %v1676 = vadd.f32 0.0, %v1675
      %v1677 = vpop.f32.mrb[0].mxu0
      %v1678 = vpop.f32.mrb[0].mxu0
      %v1679 = vadd.f32 0.0, %v1678
      %v1680 = vpop.f32.mrb[0].mxu0
      %1681 = vdwg.mxu0
      %v1682 = vadd.f32 %v1103, %v1556
      %v1683 = vadd.f32 %v1106, %v1559
      %v1684 = vadd.f32 %v1111, %v1564
      %v1685 = vadd.f32 %v1114, %v1567
      %v1686 = vadd.f32 %v1119, %v1572
      %v1687 = vadd.f32 %v1122, %v1575
      %v1688 = vadd.f32 %v1127, %v1580
      %v1689 = vadd.f32 %v1130, %v1583
      %v1690 = vadd.f32 %v1135, %v1588
      %v1691 = vadd.f32 %v1138, %v1591
      %v1692 = vadd.f32 %v1143, %v1596
      %v1693 = vadd.f32 %v1146, %v1599
      %v1694 = vadd.f32 %v1151, %v1604
      %v1695 = vadd.f32 %v1154, %v1607
      %v1696 = vadd.f32 %v1159, %v1612
      %v1697 = vadd.f32 %v1162, %v1615
      %v1698 = vadd.f32 %v1167, %v1620
      %v1699 = vadd.f32 %v1170, %v1623
      %v1700 = vadd.f32 %v1175, %v1628
      %v1701 = vadd.f32 %v1178, %v1631
      %v1702 = vadd.f32 %v1183, %v1636
      %v1703 = vadd.f32 %v1186, %v1639
      %v1704 = vadd.f32 %v1191, %v1644
      %v1705 = vadd.f32 %v1194, %v1647
      %v1706 = vadd.f32 %v1199, %v1652
      %v1707 = vadd.f32 %v1202, %v1655
      %v1708 = vadd.f32 %v1207, %v1660
      %v1709 = vadd.f32 %v1210, %v1663
      %v1710 = vadd.f32 %v1215, %v1668
      %v1711 = vadd.f32 %v1218, %v1671
      %v1712 = vadd.f32 %v1223, %v1676
      %v1713 = vadd.f32 %v1226, %v1679
      %s1714 = scalar_lea.vmem %s172, 12
      %v1715 = vld [vmem:[%s1714] sm:$0xf]
      %v1716 = vld [vmem:[%s1714 + $0x4] sm:$0xf]
      %v1717 = vld [vmem:[%s1714 + $0xc] sm:$0xf]
      %v1718 = vld [vmem:[%s1714 + $0x10] sm:$0xf]
      %v1719 = vld [vmem:[%s1714 + $0x18] sm:$0xf]
      %v1720 = vld [vmem:[%s1714 + $0x1c] sm:$0xf]
      %v1721 = vld [vmem:[%s1714 + $0x24] sm:$0xf]
      %v1722 = vld [vmem:[%s1714 + $0x28] sm:$0xf]
      %v1723 = vld [vmem:[%s1714 + $0x30] sm:$0xf]
      %v1724 = vld [vmem:[%s1714 + $0x34] sm:$0xf]
      %v1725 = vld [vmem:[%s1714 + $0x3c] sm:$0xf]
      %v1726 = vld [vmem:[%s1714 + $0x40] sm:$0xf]
      %v1727 = vld [vmem:[%s1714 + $0x48] sm:$0xf]
      %v1728 = vld [vmem:[%s1714 + $0x4c] sm:$0xf]
      %v1729 = vld [vmem:[%s1714 + $0x54] sm:$0xf]
      %v1730 = vld [vmem:[%s1714 + $0x58] sm:$0xf]
      %v1731 = vld [vmem:[%s1714 + $0x60] sm:$0xf]
      %v1732 = vld [vmem:[%s1714 + $0x64] sm:$0xf]
      %v1733 = vld [vmem:[%s1714 + $0x6c] sm:$0xf]
      %v1734 = vld [vmem:[%s1714 + $0x70] sm:$0xf]
      %v1735 = vld [vmem:[%s1714 + $0x78] sm:$0xf]
      %v1736 = vld [vmem:[%s1714 + $0x7c] sm:$0xf]
      %v1737 = vld [vmem:[%s1714 + $0x84] sm:$0xf]
      %v1738 = vld [vmem:[%s1714 + $0x88] sm:$0xf]
      %v1739 = vld [vmem:[%s1714 + $0x90] sm:$0xf]
      %v1740 = vld [vmem:[%s1714 + $0x94] sm:$0xf]
      %v1741 = vld [vmem:[%s1714 + $0x9c] sm:$0xf]
      %v1742 = vld [vmem:[%s1714 + $0xa0] sm:$0xf]
      %v1743 = vld [vmem:[%s1714 + $0xa8] sm:$0xf]
      %v1744 = vld [vmem:[%s1714 + $0xac] sm:$0xf]
      %v1745 = vld [vmem:[%s1714 + $0xb4] sm:$0xf]
      %v1746 = vld [vmem:[%s1714 + $0xb8] sm:$0xf]
      %s1747 = scalar_lea.vmem %s1, 192
      %v1748 = vld [vmem:[%s1747] sm:$0xf]
      %v1749 = vld [vmem:[%s1747 + $0x4] sm:$0xf]
      %v1750 = vld [vmem:[%s1747 + $0x8] sm:$0xf]
      %v1751 = vld [vmem:[%s1747 + $0xc] sm:$0xf]
      %v1752 = vld [vmem:[%s1747 + $0x10] sm:$0xf]
      %v1753 = vld [vmem:[%s1747 + $0x14] sm:$0xf]
      %v1754 = vld [vmem:[%s1747 + $0x18] sm:$0xf]
      %v1755 = vld [vmem:[%s1747 + $0x1c] sm:$0xf]
      %v1756 = vld [vmem:[%s1747 + $0x20] sm:$0xf]
      %v1757 = vld [vmem:[%s1747 + $0x24] sm:$0xf]
      %v1758 = vld [vmem:[%s1747 + $0x28] sm:$0xf]
      %v1759 = vld [vmem:[%s1747 + $0x2c] sm:$0xf]
      %v1760 = vld [vmem:[%s1747 + $0x30] sm:$0xf]
      %v1761 = vld [vmem:[%s1747 + $0x34] sm:$0xf]
      %v1762 = vld [vmem:[%s1747 + $0x38] sm:$0xf]
      %v1763 = vld [vmem:[%s1747 + $0x3c] sm:$0xf]
      %v1796 = vunpack.c.l.b16 %v1715
      %v1797 = vunpack.c.l.b16 %v1716
      %v1798 = vunpack.c.l.b16 %v1717
      %v1799 = vunpack.c.l.b16 %v1718
      %v1800 = vunpack.c.l.b16 %v1719
      %v1801 = vunpack.c.l.b16 %v1720
      %v1802 = vunpack.c.l.b16 %v1721
      %v1803 = vunpack.c.l.b16 %v1722
      %v1804 = vunpack.c.l.b16 %v1723
      %v1805 = vunpack.c.l.b16 %v1724
      %v1806 = vunpack.c.l.b16 %v1725
      %v1807 = vunpack.c.l.b16 %v1726
      %v1808 = vunpack.c.l.b16 %v1727
      %v1809 = vunpack.c.l.b16 %v1728
      %v1810 = vunpack.c.l.b16 %v1729
      %v1811 = vunpack.c.l.b16 %v1730
      %v1812 = vunpack.c.l.b16 %v1731
      %v1813 = vunpack.c.l.b16 %v1732
      %v1814 = vunpack.c.l.b16 %v1733
      %v1815 = vunpack.c.l.b16 %v1734
      %v1816 = vunpack.c.l.b16 %v1735
      %v1817 = vunpack.c.l.b16 %v1736
      %v1818 = vunpack.c.l.b16 %v1737
      %v1819 = vunpack.c.l.b16 %v1738
      %v1820 = vunpack.c.l.b16 %v1739
      %v1821 = vunpack.c.l.b16 %v1740
      %v1822 = vunpack.c.l.b16 %v1741
      %v1823 = vunpack.c.l.b16 %v1742
      %v1824 = vunpack.c.l.b16 %v1743
      %v1825 = vunpack.c.l.b16 %v1744
      %v1826 = vunpack.c.l.b16 %v1745
      %v1827 = vunpack.c.l.b16 %v1746
      %v1828 = vpack.c.b16 %v1797, %v1796
      %v1829 = vpack.c.b16 %v1799, %v1798
      %v1830 = vpack.c.b16 %v1801, %v1800
      %v1831 = vpack.c.b16 %v1803, %v1802
      %v1832 = vpack.c.b16 %v1805, %v1804
      %v1833 = vpack.c.b16 %v1807, %v1806
      %v1834 = vpack.c.b16 %v1809, %v1808
      %v1835 = vpack.c.b16 %v1811, %v1810
      %v1836 = vpack.c.b16 %v1813, %v1812
      %v1837 = vpack.c.b16 %v1815, %v1814
      %v1838 = vpack.c.b16 %v1817, %v1816
      %v1839 = vpack.c.b16 %v1819, %v1818
      %v1840 = vpack.c.b16 %v1821, %v1820
      %v1841 = vpack.c.b16 %v1823, %v1822
      %v1842 = vpack.c.b16 %v1825, %v1824
      %v1843 = vpack.c.b16 %v1827, %v1826
      %v1876 = vunpack.c.l.b16 %v1748
      %v1877 = vunpack.c.l.b16 %v1749
      %v1878 = vunpack.c.l.b16 %v1750
      %v1879 = vunpack.c.l.b16 %v1751
      %v1880 = vunpack.c.l.b16 %v1752
      %v1881 = vunpack.c.l.b16 %v1753
      %v1882 = vunpack.c.l.b16 %v1754
      %v1883 = vunpack.c.l.b16 %v1755
      %v1884 = vunpack.c.l.b16 %v1756
      %v1885 = vunpack.c.l.b16 %v1757
      %v1886 = vunpack.c.l.b16 %v1758
      %v1887 = vunpack.c.l.b16 %v1759
      %v1888 = vunpack.c.l.b16 %v1760
      %v1889 = vunpack.c.l.b16 %v1761
      %v1890 = vunpack.c.l.b16 %v1762
      %v1891 = vunpack.c.l.b16 %v1763
      %v1892 = vpack.c.b16 %v1877, %v1876
      %v1893 = vpack.c.b16 %v1879, %v1878
      %v1894 = vpack.c.b16 %v1881, %v1880
      %v1895 = vpack.c.b16 %v1883, %v1882
      %v1896 = vpack.c.b16 %v1885, %v1884
      %v1897 = vpack.c.b16 %v1887, %v1886
      %v1898 = vpack.c.b16 %v1889, %v1888
      %v1899 = vpack.c.b16 %v1891, %v1890
      %1908 = vmatprep.subr.bf16.mxu0 0
      %1909 = vmatpush1.bf16.msra.mxu0 %v1892
      %1910 = vmatprep.subr.bf16.mxu0 0
      %1911 = vmatpush1.bf16.msra.mxu0 %v1893
      %1912 = vmatprep.subr.bf16.mxu0 0
      %1913 = vmatpush1.bf16.msra.mxu0 %v1894
      %1914 = vmatprep.subr.bf16.mxu0 0
      %1915 = vmatpush1.bf16.msra.mxu0 %v1895
      %1916 = vmatprep.subr.bf16.mxu0 0
      %1917 = vmatpush1.bf16.msra.mxu0 %v1896
      %1918 = vmatprep.subr.bf16.mxu0 0
      %1919 = vmatpush1.bf16.msra.mxu0 %v1897
      %1920 = vmatprep.subr.bf16.mxu0 0
      %1921 = vmatpush1.bf16.msra.mxu0 %v1898
      %1922 = vmatprep.subr.bf16.mxu0 0
      %1923 = vmatpush1.bf16.msra.mxu0 %v1899
      %1924 = vmatprep.subr.bf16.mxu0 0
      %1925 = vmatpush1.bf16.msra.mxu0 0
      %1926 = vmatprep.subr.bf16.mxu0 0
      %1927 = vmatpush1.bf16.msra.mxu0 0
      %1928 = vmatprep.subr.bf16.mxu0 0
      %1929 = vmatpush1.bf16.msra.mxu0 0
      %1930 = vmatprep.subr.bf16.mxu0 0
      %1931 = vmatpush1.bf16.msra.mxu0 0
      %1932 = vmatprep.subr.bf16.mxu0 0
      %1933 = vmatpush1.bf16.msra.mxu0 0
      %1934 = vmatprep.subr.bf16.mxu0 0
      %1935 = vmatpush1.bf16.msra.mxu0 0
      %1936 = vmatprep.subr.bf16.mxu0 0
      %1937 = vmatpush1.bf16.msra.mxu0 0
      %1938 = vmatprep.subr.bf16.mxu0 0
      %1939 = vmatpush1.bf16.msra.mxu0 0
      %1940 = vmatprep.mubr.bf16.mxu0 0
      %1941 = vmatmul.mubr.bf16.gmra.mrb[0].mxu0 %v1828
      %v1942 = vpop.f32.mrb[0].mxu0
      %v1943 = vadd.f32 0.0, %v1942
      %v1944 = vpop.f32.mrb[0].mxu0
      %v1945 = vpop.f32.mrb[0].mxu0
      %v1946 = vadd.f32 0.0, %v1945
      %v1947 = vpop.f32.mrb[0].mxu0
      %1948 = vmatprep.mubr.bf16.mxu0 0
      %1949 = vmatmul.mubr.bf16.gmra.mrb[0].mxu0 %v1829
      %v1950 = vpop.f32.mrb[0].mxu0
      %v1951 = vadd.f32 0.0, %v1950
      %v1952 = vpop.f32.mrb[0].mxu0
      %v1953 = vpop.f32.mrb[0].mxu0
      %v1954 = vadd.f32 0.0, %v1953
      %v1955 = vpop.f32.mrb[0].mxu0
      %1956 = vmatprep.mubr.bf16.mxu0 0
      %1957 = vmatmul.mubr.bf16.gmra.mrb[0].mxu0 %v1830
      %v1958 = vpop.f32.mrb[0].mxu0
      %v1959 = vadd.f32 0.0, %v1958
      %v1960 = vpop.f32.mrb[0].mxu0
      %v1961 = vpop.f32.mrb[0].mxu0
      %v1962 = vadd.f32 0.0, %v1961
      %v1963 = vpop.f32.mrb[0].mxu0
      %1964 = vmatprep.mubr.bf16.mxu0 0
      %1965 = vmatmul.mubr.bf16.gmra.mrb[0].mxu0 %v1831
      %v1966 = vpop.f32.mrb[0].mxu0
      %v1967 = vadd.f32 0.0, %v1966
      %v1968 = vpop.f32.mrb[0].mxu0
      %v1969 = vpop.f32.mrb[0].mxu0
      %v1970 = vadd.f32 0.0, %v1969
      %v1971 = vpop.f32.mrb[0].mxu0
      %1972 = vmatprep.mubr.bf16.mxu0 0
      %1973 = vmatmul.mubr.bf16.gmra.mrb[0].mxu0 %v1832
      %v1974 = vpop.f32.mrb[0].mxu0
      %v1975 = vadd.f32 0.0, %v1974
      %v1976 = vpop.f32.mrb[0].mxu0
      %v1977 = vpop.f32.mrb[0].mxu0
      %v1978 = vadd.f32 0.0, %v1977
      %v1979 = vpop.f32.mrb[0].mxu0
      %1980 = vmatprep.mubr.bf16.mxu0 0
      %1981 = vmatmul.mubr.bf16.gmra.mrb[0].mxu0 %v1833
      %v1982 = vpop.f32.mrb[0].mxu0
      %v1983 = vadd.f32 0.0, %v1982
      %v1984 = vpop.f32.mrb[0].mxu0
      %v1985 = vpop.f32.mrb[0].mxu0
      %v1986 = vadd.f32 0.0, %v1985
      %v1987 = vpop.f32.mrb[0].mxu0
      %1988 = vmatprep.mubr.bf16.mxu0 0
      %1989 = vmatmul.mubr.bf16.gmra.mrb[0].mxu0 %v1834
      %v1990 = vpop.f32.mrb[0].mxu0
      %v1991 = vadd.f32 0.0, %v1990
      %v1992 = vpop.f32.mrb[0].mxu0
      %v1993 = vpop.f32.mrb[0].mxu0
      %v1994 = vadd.f32 0.0, %v1993
      %v1995 = vpop.f32.mrb[0].mxu0
      %1996 = vmatprep.mubr.bf16.mxu0 0
      %1997 = vmatmul.mubr.bf16.gmra.mrb[0].mxu0 %v1835
      %v1998 = vpop.f32.mrb[0].mxu0
      %v1999 = vadd.f32 0.0, %v1998
      %v2000 = vpop.f32.mrb[0].mxu0
      %v2001 = vpop.f32.mrb[0].mxu0
      %v2002 = vadd.f32 0.0, %v2001
      %v2003 = vpop.f32.mrb[0].mxu0
      %2004 = vmatprep.mubr.bf16.mxu0 0
      %2005 = vmatmul.mubr.bf16.gmra.mrb[0].mxu0 %v1836
      %v2006 = vpop.f32.mrb[0].mxu0
      %v2007 = vadd.f32 0.0, %v2006
      %v2008 = vpop.f32.mrb[0].mxu0
      %v2009 = vpop.f32.mrb[0].mxu0
      %v2010 = vadd.f32 0.0, %v2009
      %v2011 = vpop.f32.mrb[0].mxu0
      %2012 = vmatprep.mubr.bf16.mxu0 0
      %2013 = vmatmul.mubr.bf16.gmra.mrb[0].mxu0 %v1837
      %v2014 = vpop.f32.mrb[0].mxu0
      %v2015 = vadd.f32 0.0, %v2014
      %v2016 = vpop.f32.mrb[0].mxu0
      %v2017 = vpop.f32.mrb[0].mxu0
      %v2018 = vadd.f32 0.0, %v2017
      %v2019 = vpop.f32.mrb[0].mxu0
      %2020 = vmatprep.mubr.bf16.mxu0 0
      %2021 = vmatmul.mubr.bf16.gmra.mrb[0].mxu0 %v1838
      %v2022 = vpop.f32.mrb[0].mxu0
      %v2023 = vadd.f32 0.0, %v2022
      %v2024 = vpop.f32.mrb[0].mxu0
      %v2025 = vpop.f32.mrb[0].mxu0
      %v2026 = vadd.f32 0.0, %v2025
      %v2027 = vpop.f32.mrb[0].mxu0
      %2028 = vmatprep.mubr.bf16.mxu0 0
      %2029 = vmatmul.mubr.bf16.gmra.mrb[0].mxu0 %v1839
      %v2030 = vpop.f32.mrb[0].mxu0
      %v2031 = vadd.f32 0.0, %v2030
      %v2032 = vpop.f32.mrb[0].mxu0
      %v2033 = vpop.f32.mrb[0].mxu0
      %v2034 = vadd.f32 0.0, %v2033
      %v2035 = vpop.f32.mrb[0].mxu0
      %2036 = vmatprep.mubr.bf16.mxu0 0
      %2037 = vmatmul.mubr.bf16.gmra.mrb[0].mxu0 %v1840
      %v2038 = vpop.f32.mrb[0].mxu0
      %v2039 = vadd.f32 0.0, %v2038
      %v2040 = vpop.f32.mrb[0].mxu0
      %v2041 = vpop.f32.mrb[0].mxu0
      %v2042 = vadd.f32 0.0, %v2041
      %v2043 = vpop.f32.mrb[0].mxu0
      %2044 = vmatprep.mubr.bf16.mxu0 0
      %2045 = vmatmul.mubr.bf16.gmra.mrb[0].mxu0 %v1841
      %v2046 = vpop.f32.mrb[0].mxu0
      %v2047 = vadd.f32 0.0, %v2046
      %v2048 = vpop.f32.mrb[0].mxu0
      %v2049 = vpop.f32.mrb[0].mxu0
      %v2050 = vadd.f32 0.0, %v2049
      %v2051 = vpop.f32.mrb[0].mxu0
      %2052 = vmatprep.mubr.bf16.mxu0 0
      %2053 = vmatmul.mubr.bf16.gmra.mrb[0].mxu0 %v1842
      %v2054 = vpop.f32.mrb[0].mxu0
      %v2055 = vadd.f32 0.0, %v2054
      %v2056 = vpop.f32.mrb[0].mxu0
      %v2057 = vpop.f32.mrb[0].mxu0
      %v2058 = vadd.f32 0.0, %v2057
      %v2059 = vpop.f32.mrb[0].mxu0
      %2060 = vmatprep.mubr.bf16.mxu0 0
      %2061 = vmatmul.mubr.bf16.gmra.mrb[0].mxu0 %v1843
      %v2062 = vpop.f32.mrb[0].mxu0
      %v2063 = vadd.f32 0.0, %v2062
      %v2064 = vpop.f32.mrb[0].mxu0
      %v2065 = vpop.f32.mrb[0].mxu0
      %v2066 = vadd.f32 0.0, %v2065
      %v2067 = vpop.f32.mrb[0].mxu0
      %2068 = vdwg.mxu0
      %v2069 = vadd.f32 %v1682, %v1943
      %v2070 = vadd.f32 %v1683, %v1946
      %v2071 = vadd.f32 %v1684, %v1951
      %v2072 = vadd.f32 %v1685, %v1954
      %v2073 = vadd.f32 %v1686, %v1959
      %v2074 = vadd.f32 %v1687, %v1962
      %v2075 = vadd.f32 %v1688, %v1967
      %v2076 = vadd.f32 %v1689, %v1970
      %v2077 = vadd.f32 %v1690, %v1975
      %v2078 = vadd.f32 %v1691, %v1978
      %v2079 = vadd.f32 %v1692, %v1983
      %v2080 = vadd.f32 %v1693, %v1986
      %v2081 = vadd.f32 %v1694, %v1991
      %v2082 = vadd.f32 %v1695, %v1994
      %v2083 = vadd.f32 %v1696, %v1999
      %v2084 = vadd.f32 %v1697, %v2002
      %v2085 = vadd.f32 %v1698, %v2007
      %v2086 = vadd.f32 %v1699, %v2010
      %v2087 = vadd.f32 %v1700, %v2015
      %v2088 = vadd.f32 %v1701, %v2018
      %v2089 = vadd.f32 %v1702, %v2023
      %v2090 = vadd.f32 %v1703, %v2026
      %v2091 = vadd.f32 %v1704, %v2031
      %v2092 = vadd.f32 %v1705, %v2034
      %v2093 = vadd.f32 %v1706, %v2039
      %v2094 = vadd.f32 %v1707, %v2042
      %v2095 = vadd.f32 %v1708, %v2047
      %v2096 = vadd.f32 %v1709, %v2050
      %v2097 = vadd.f32 %v1710, %v2055
      %v2098 = vadd.f32 %v1711, %v2058
      %v2099 = vadd.f32 %v1712, %v2063
      %v2100 = vadd.f32 %v1713, %v2066
      %v2101 = vld [vmem:[%s1714] sm:$0xf]
      %v2102 = vld [vmem:[%s1714 + $0x4] sm:$0xf]
      %v2103 = vld [vmem:[%s1714 + $0x8] sm:$0x1]
      %v2104 = vld [vmem:[%s1714 + $0xc] sm:$0xf]
      %v2105 = vld [vmem:[%s1714 + $0x10] sm:$0xf]
      %v2106 = vld [vmem:[%s1714 + $0x14] sm:$0x1]
      %v2107 = vld [vmem:[%s1714 + $0x18] sm:$0xf]
      %v2108 = vld [vmem:[%s1714 + $0x1c] sm:$0xf]
      %v2109 = vld [vmem:[%s1714 + $0x20] sm:$0x1]
      %v2110 = vld [vmem:[%s1714 + $0x24] sm:$0xf]
      %v2111 = vld [vmem:[%s1714 + $0x28] sm:$0xf]
      %v2112 = vld [vmem:[%s1714 + $0x2c] sm:$0x1]
      %v2113 = vld [vmem:[%s1714 + $0x30] sm:$0xf]
      %v2114 = vld [vmem:[%s1714 + $0x34] sm:$0xf]
      %v2115 = vld [vmem:[%s1714 + $0x38] sm:$0x1]
      %v2116 = vld [vmem:[%s1714 + $0x3c] sm:$0xf]
      %v2117 = vld [vmem:[%s1714 + $0x40] sm:$0xf]
      %v2118 = vld [vmem:[%s1714 + $0x44] sm:$0x1]
      %v2119 = vld [vmem:[%s1714 + $0x48] sm:$0xf]
      %v2120 = vld [vmem:[%s1714 + $0x4c] sm:$0xf]
      %v2121 = vld [vmem:[%s1714 + $0x50] sm:$0x1]
      %v2122 = vld [vmem:[%s1714 + $0x54] sm:$0xf]
      %v2123 = vld [vmem:[%s1714 + $0x58] sm:$0xf]
      %v2124 = vld [vmem:[%s1714 + $0x5c] sm:$0x1]
      %v2125 = vld [vmem:[%s1714 + $0x60] sm:$0xf]
      %v2126 = vld [vmem:[%s1714 + $0x64] sm:$0xf]
      %v2127 = vld [vmem:[%s1714 + $0x68] sm:$0x1]
      %v2128 = vld [vmem:[%s1714 + $0x6c] sm:$0xf]
      %v2129 = vld [vmem:[%s1714 + $0x70] sm:$0xf]
      %v2130 = vld [vmem:[%s1714 + $0x74] sm:$0x1]
      %v2131 = vld [vmem:[%s1714 + $0x78] sm:$0xf]
      %v2132 = vld [vmem:[%s1714 + $0x7c] sm:$0xf]
      %v2133 = vld [vmem:[%s1714 + $0x80] sm:$0x1]
      %v2134 = vld [vmem:[%s1714 + $0x84] sm:$0xf]
      %v2135 = vld [vmem:[%s1714 + $0x88] sm:$0xf]
      %v2136 = vld [vmem:[%s1714 + $0x8c] sm:$0x1]
      %v2137 = vld [vmem:[%s1714 + $0x90] sm:$0xf]
      %v2138 = vld [vmem:[%s1714 + $0x94] sm:$0xf]
      %v2139 = vld [vmem:[%s1714 + $0x98] sm:$0x1]
      %v2140 = vld [vmem:[%s1714 + $0x9c] sm:$0xf]
      %v2141 = vld [vmem:[%s1714 + $0xa0] sm:$0xf]
      %v2142 = vld [vmem:[%s1714 + $0xa4] sm:$0x1]
      %v2143 = vld [vmem:[%s1714 + $0xa8] sm:$0xf]
      %v2144 = vld [vmem:[%s1714 + $0xac] sm:$0xf]
      %v2145 = vld [vmem:[%s1714 + $0xb0] sm:$0x1]
      %v2146 = vld [vmem:[%s1714 + $0xb4] sm:$0xf]
      %v2147 = vld [vmem:[%s1714 + $0xb8] sm:$0xf]
      %v2148 = vld [vmem:[%s1714 + $0xbc] sm:$0x1]
      %v2150 = vshrl.u32 %v2101, 16
      %v2152 = vrot.slane %v2150, 4
      %v2153 = vshll.u32 %v2101, 16
      %v2155 = vrot.slane %v2153, 5
      %v2156 = vor.u32 %v2152, %v2155
      %v2157 = vrot.slane %v2156, 4
      %v2159 = vshll.u32 %v2102, 16
      %v2161 = vrot.slane %v2159, 5
      %v2162 = vsel %vm249, %v2157, %v2161
      %v2163 = vshrl.u32 %v2102, 16
      %v2165 = vrot.slane %v2163, 4
      %v2166 = vor.u32 %v2165, %v2161
      %v2167 = vrot.slane %v2166, 4
      %v2169 = vshll.u32 %v2103, 16
      %v2171 = vrot.slane %v2169, 5
      %v2172 = vsel %vm249, %v2167, %v2171
      %v2174 = vshrl.u32 %v2104, 16
      %v2176 = vrot.slane %v2174, 4
      %v2177 = vshll.u32 %v2104, 16
      %v2179 = vrot.slane %v2177, 5
      %v2180 = vor.u32 %v2176, %v2179
      %v2181 = vrot.slane %v2180, 4
      %v2183 = vshll.u32 %v2105, 16
      %v2185 = vrot.slane %v2183, 5
      %v2186 = vsel %vm249, %v2181, %v2185
      %v2187 = vshrl.u32 %v2105, 16
      %v2189 = vrot.slane %v2187, 4
      %v2190 = vor.u32 %v2189, %v2185
      %v2191 = vrot.slane %v2190, 4
      %v2193 = vshll.u32 %v2106, 16
      %v2195 = vrot.slane %v2193, 5
      %v2196 = vsel %vm249, %v2191, %v2195
      %v2198 = vshrl.u32 %v2107, 16
      %v2200 = vrot.slane %v2198, 4
      %v2201 = vshll.u32 %v2107, 16
      %v2203 = vrot.slane %v2201, 5
      %v2204 = vor.u32 %v2200, %v2203
      %v2205 = vrot.slane %v2204, 4
      %v2207 = vshll.u32 %v2108, 16
      %v2209 = vrot.slane %v2207, 5
      %v2210 = vsel %vm249, %v2205, %v2209
      %v2211 = vshrl.u32 %v2108, 16
      %v2213 = vrot.slane %v2211, 4
      %v2214 = vor.u32 %v2213, %v2209
      %v2215 = vrot.slane %v2214, 4
      %v2217 = vshll.u32 %v2109, 16
      %v2219 = vrot.slane %v2217, 5
      %v2220 = vsel %vm249, %v2215, %v2219
      %v2222 = vshrl.u32 %v2110, 16
      %v2224 = vrot.slane %v2222, 4
      %v2225 = vshll.u32 %v2110, 16
      %v2227 = vrot.slane %v2225, 5
      %v2228 = vor.u32 %v2224, %v2227
      %v2229 = vrot.slane %v2228, 4
      %v2231 = vshll.u32 %v2111, 16
      %v2233 = vrot.slane %v2231, 5
      %v2234 = vsel %vm249, %v2229, %v2233
      %v2235 = vshrl.u32 %v2111, 16
      %v2237 = vrot.slane %v2235, 4
      %v2238 = vor.u32 %v2237, %v2233
      %v2239 = vrot.slane %v2238, 4
      %v2241 = vshll.u32 %v2112, 16
      %v2243 = vrot.slane %v2241, 5
      %v2244 = vsel %vm249, %v2239, %v2243
      %v2246 = vshrl.u32 %v2113, 16
      %v2248 = vrot.slane %v2246, 4
      %v2249 = vshll.u32 %v2113, 16
      %v2251 = vrot.slane %v2249, 5
      %v2252 = vor.u32 %v2248, %v2251
      %v2253 = vrot.slane %v2252, 4
      %v2255 = vshll.u32 %v2114, 16
      %v2257 = vrot.slane %v2255, 5
      %v2258 = vsel %vm249, %v2253, %v2257
      %v2259 = vshrl.u32 %v2114, 16
      %v2261 = vrot.slane %v2259, 4
      %v2262 = vor.u32 %v2261, %v2257
      %v2263 = vrot.slane %v2262, 4
      %v2265 = vshll.u32 %v2115, 16
      %v2267 = vrot.slane %v2265, 5
      %v2268 = vsel %vm249, %v2263, %v2267
      %v2270 = vshrl.u32 %v2116, 16
      %v2272 = vrot.slane %v2270, 4
      %v2273 = vshll.u32 %v2116, 16
      %v2275 = vrot.slane %v2273, 5
      %v2276 = vor.u32 %v2272, %v2275
      %v2277 = vrot.slane %v2276, 4
      %v2279 = vshll.u32 %v2117, 16
      %v2281 = vrot.slane %v2279, 5
      %v2282 = vsel %vm249, %v2277, %v2281
      %v2283 = vshrl.u32 %v2117, 16
      %v2285 = vrot.slane %v2283, 4
      %v2286 = vor.u32 %v2285, %v2281
      %v2287 = vrot.slane %v2286, 4
      %v2289 = vshll.u32 %v2118, 16
      %v2291 = vrot.slane %v2289, 5
      %v2292 = vsel %vm249, %v2287, %v2291
      %v2294 = vshrl.u32 %v2119, 16
      %v2296 = vrot.slane %v2294, 4
      %v2297 = vshll.u32 %v2119, 16
      %v2299 = vrot.slane %v2297, 5
      %v2300 = vor.u32 %v2296, %v2299
      %v2301 = vrot.slane %v2300, 4
      %v2303 = vshll.u32 %v2120, 16
      %v2305 = vrot.slane %v2303, 5
      %v2306 = vsel %vm249, %v2301, %v2305
      %v2307 = vshrl.u32 %v2120, 16
      %v2309 = vrot.slane %v2307, 4
      %v2310 = vor.u32 %v2309, %v2305
      %v2311 = vrot.slane %v2310, 4
      %v2313 = vshll.u32 %v2121, 16
      %v2315 = vrot.slane %v2313, 5
      %v2316 = vsel %vm249, %v2311, %v2315
      %v2318 = vshrl.u32 %v2122, 16
      %v2320 = vrot.slane %v2318, 4
      %v2321 = vshll.u32 %v2122, 16
      %v2323 = vrot.slane %v2321, 5
      %v2324 = vor.u32 %v2320, %v2323
      %v2325 = vrot.slane %v2324, 4
      %v2327 = vshll.u32 %v2123, 16
      %v2329 = vrot.slane %v2327, 5
      %v2330 = vsel %vm249, %v2325, %v2329
      %v2331 = vshrl.u32 %v2123, 16
      %v2333 = vrot.slane %v2331, 4
      %v2334 = vor.u32 %v2333, %v2329
      %v2335 = vrot.slane %v2334, 4
      %v2337 = vshll.u32 %v2124, 16
      %v2339 = vrot.slane %v2337, 5
      %v2340 = vsel %vm249, %v2335, %v2339
      %v2342 = vshrl.u32 %v2125, 16
      %v2344 = vrot.slane %v2342, 4
      %v2345 = vshll.u32 %v2125, 16
      %v2347 = vrot.slane %v2345, 5
      %v2348 = vor.u32 %v2344, %v2347
      %v2349 = vrot.slane %v2348, 4
      %v2351 = vshll.u32 %v2126, 16
      %v2353 = vrot.slane %v2351, 5
      %v2354 = vsel %vm249, %v2349, %v2353
      %v2355 = vshrl.u32 %v2126, 16
      %v2357 = vrot.slane %v2355, 4
      %v2358 = vor.u32 %v2357, %v2353
      %v2359 = vrot.slane %v2358, 4
      %v2361 = vshll.u32 %v2127, 16
      %v2363 = vrot.slane %v2361, 5
      %v2364 = vsel %vm249, %v2359, %v2363
      %v2366 = vshrl.u32 %v2128, 16
      %v2368 = vrot.slane %v2366, 4
      %v2369 = vshll.u32 %v2128, 16
      %v2371 = vrot.slane %v2369, 5
      %v2372 = vor.u32 %v2368, %v2371
      %v2373 = vrot.slane %v2372, 4
      %v2375 = vshll.u32 %v2129, 16
      %v2377 = vrot.slane %v2375, 5
      %v2378 = vsel %vm249, %v2373, %v2377
      %v2379 = vshrl.u32 %v2129, 16
      %v2381 = vrot.slane %v2379, 4
      %v2382 = vor.u32 %v2381, %v2377
      %v2383 = vrot.slane %v2382, 4
      %v2385 = vshll.u32 %v2130, 16
      %v2387 = vrot.slane %v2385, 5
      %v2388 = vsel %vm249, %v2383, %v2387
      %v2390 = vshrl.u32 %v2131, 16
      %v2392 = vrot.slane %v2390, 4
      %v2393 = vshll.u32 %v2131, 16
      %v2395 = vrot.slane %v2393, 5
      %v2396 = vor.u32 %v2392, %v2395
      %v2397 = vrot.slane %v2396, 4
      %v2399 = vshll.u32 %v2132, 16
      %v2401 = vrot.slane %v2399, 5
      %v2402 = vsel %vm249, %v2397, %v2401
      %v2403 = vshrl.u32 %v2132, 16
      %v2405 = vrot.slane %v2403, 4
      %v2406 = vor.u32 %v2405, %v2401
      %v2407 = vrot.slane %v2406, 4
      %v2409 = vshll.u32 %v2133, 16
      %v2411 = vrot.slane %v2409, 5
      %v2412 = vsel %vm249, %v2407, %v2411
      %v2414 = vshrl.u32 %v2134, 16
      %v2416 = vrot.slane %v2414, 4
      %v2417 = vshll.u32 %v2134, 16
      %v2419 = vrot.slane %v2417, 5
      %v2420 = vor.u32 %v2416, %v2419
      %v2421 = vrot.slane %v2420, 4
      %v2423 = vshll.u32 %v2135, 16
      %v2425 = vrot.slane %v2423, 5
      %v2426 = vsel %vm249, %v2421, %v2425
      %v2427 = vshrl.u32 %v2135, 16
      %v2429 = vrot.slane %v2427, 4
      %v2430 = vor.u32 %v2429, %v2425
      %v2431 = vrot.slane %v2430, 4
      %v2433 = vshll.u32 %v2136, 16
      %v2435 = vrot.slane %v2433, 5
      %v2436 = vsel %vm249, %v2431, %v2435
      %v2438 = vshrl.u32 %v2137, 16
      %v2440 = vrot.slane %v2438, 4
      %v2441 = vshll.u32 %v2137, 16
      %v2443 = vrot.slane %v2441, 5
      %v2444 = vor.u32 %v2440, %v2443
      %v2445 = vrot.slane %v2444, 4
      %v2447 = vshll.u32 %v2138, 16
      %v2449 = vrot.slane %v2447, 5
      %v2450 = vsel %vm249, %v2445, %v2449
      %v2451 = vshrl.u32 %v2138, 16
      %v2453 = vrot.slane %v2451, 4
      %v2454 = vor.u32 %v2453, %v2449
      %v2455 = vrot.slane %v2454, 4
      %v2457 = vshll.u32 %v2139, 16
      %v2459 = vrot.slane %v2457, 5
      %v2460 = vsel %vm249, %v2455, %v2459
      %v2462 = vshrl.u32 %v2140, 16
      %v2464 = vrot.slane %v2462, 4
      %v2465 = vshll.u32 %v2140, 16
      %v2467 = vrot.slane %v2465, 5
      %v2468 = vor.u32 %v2464, %v2467
      %v2469 = vrot.slane %v2468, 4
      %v2471 = vshll.u32 %v2141, 16
      %v2473 = vrot.slane %v2471, 5
      %v2474 = vsel %vm249, %v2469, %v2473
      %v2475 = vshrl.u32 %v2141, 16
      %v2477 = vrot.slane %v2475, 4
      %v2478 = vor.u32 %v2477, %v2473
      %v2479 = vrot.slane %v2478, 4
      %v2481 = vshll.u32 %v2142, 16
      %v2483 = vrot.slane %v2481, 5
      %v2484 = vsel %vm249, %v2479, %v2483
      %v2486 = vshrl.u32 %v2143, 16
      %v2488 = vrot.slane %v2486, 4
      %v2489 = vshll.u32 %v2143, 16
      %v2491 = vrot.slane %v2489, 5
      %v2492 = vor.u32 %v2488, %v2491
      %v2493 = vrot.slane %v2492, 4
      %v2495 = vshll.u32 %v2144, 16
      %v2497 = vrot.slane %v2495, 5
      %v2498 = vsel %vm249, %v2493, %v2497
      %v2499 = vshrl.u32 %v2144, 16
      %v2501 = vrot.slane %v2499, 4
      %v2502 = vor.u32 %v2501, %v2497
      %v2503 = vrot.slane %v2502, 4
      %v2505 = vshll.u32 %v2145, 16
      %v2507 = vrot.slane %v2505, 5
      %v2508 = vsel %vm249, %v2503, %v2507
      %v2510 = vshrl.u32 %v2146, 16
      %v2512 = vrot.slane %v2510, 4
      %v2513 = vshll.u32 %v2146, 16
      %v2515 = vrot.slane %v2513, 5
      %v2516 = vor.u32 %v2512, %v2515
      %v2517 = vrot.slane %v2516, 4
      %v2519 = vshll.u32 %v2147, 16
      %v2521 = vrot.slane %v2519, 5
      %v2522 = vsel %vm249, %v2517, %v2521
      %v2523 = vshrl.u32 %v2147, 16
      %v2525 = vrot.slane %v2523, 4
      %v2526 = vor.u32 %v2525, %v2521
      %v2527 = vrot.slane %v2526, 4
      %v2529 = vshll.u32 %v2148, 16
      %v2531 = vrot.slane %v2529, 5
      %v2532 = vsel %vm249, %v2527, %v2531
      %s2533 = scalar_lea.vmem %s1, 256
      %v2534 = vld [vmem:[%s2533] sm:$0xf]
      %v2535 = vld [vmem:[%s2533 + $0x4] sm:$0xf]
      %v2536 = vld [vmem:[%s2533 + $0x8] sm:$0xf]
      %v2537 = vld [vmem:[%s2533 + $0xc] sm:$0xf]
      %v2538 = vld [vmem:[%s2533 + $0x10] sm:$0xf]
      %v2539 = vld [vmem:[%s2533 + $0x14] sm:$0xf]
      %v2540 = vld [vmem:[%s2533 + $0x18] sm:$0xf]
      %v2541 = vld [vmem:[%s2533 + $0x1c] sm:$0xf]
      %v2542 = vld [vmem:[%s2533 + $0x20] sm:$0xf]
      %v2543 = vld [vmem:[%s2533 + $0x24] sm:$0xf]
      %v2544 = vld [vmem:[%s2533 + $0x28] sm:$0xf]
      %v2545 = vld [vmem:[%s2533 + $0x2c] sm:$0xf]
      %v2546 = vld [vmem:[%s2533 + $0x30] sm:$0xf]
      %v2547 = vld [vmem:[%s2533 + $0x34] sm:$0xf]
      %v2548 = vld [vmem:[%s2533 + $0x38] sm:$0xf]
      %v2549 = vld [vmem:[%s2533 + $0x3c] sm:$0xf]
      %v2550 = vunpack.c.l.b16 %v2162
      %v2551 = vunpack.c.l.b16 %v2172
      %v2552 = vunpack.c.l.b16 %v2186
      %v2553 = vunpack.c.l.b16 %v2196
      %v2554 = vunpack.c.l.b16 %v2210
      %v2555 = vunpack.c.l.b16 %v2220
      %v2556 = vunpack.c.l.b16 %v2234
      %v2557 = vunpack.c.l.b16 %v2244
      %v2558 = vunpack.c.l.b16 %v2258
      %v2559 = vunpack.c.l.b16 %v2268
      %v2560 = vunpack.c.l.b16 %v2282
      %v2561 = vunpack.c.l.b16 %v2292
      %v2562 = vunpack.c.l.b16 %v2306
      %v2563 = vunpack.c.l.b16 %v2316
      %v2564 = vunpack.c.l.b16 %v2330
      %v2565 = vunpack.c.l.b16 %v2340
      %v2566 = vunpack.c.l.b16 %v2354
      %v2567 = vunpack.c.l.b16 %v2364
      %v2568 = vunpack.c.l.b16 %v2378
      %v2569 = vunpack.c.l.b16 %v2388
      %v2570 = vunpack.c.l.b16 %v2402
      %v2571 = vunpack.c.l.b16 %v2412
      %v2572 = vunpack.c.l.b16 %v2426
      %v2573 = vunpack.c.l.b16 %v2436
      %v2574 = vunpack.c.l.b16 %v2450
      %v2575 = vunpack.c.l.b16 %v2460
      %v2576 = vunpack.c.l.b16 %v2474
      %v2577 = vunpack.c.l.b16 %v2484
      %v2578 = vunpack.c.l.b16 %v2498
      %v2579 = vunpack.c.l.b16 %v2508
      %v2580 = vunpack.c.l.b16 %v2522
      %v2581 = vunpack.c.l.b16 %v2532
      %v2582 = vpack.c.b16 %v2551, %v2550
      %v2583 = vpack.c.b16 %v2553, %v2552
      %v2584 = vpack.c.b16 %v2555, %v2554
      %v2585 = vpack.c.b16 %v2557, %v2556
      %v2586 = vpack.c.b16 %v2559, %v2558
      %v2587 = vpack.c.b16 %v2561, %v2560
      %v2588 = vpack.c.b16 %v2563, %v2562
      %v2589 = vpack.c.b16 %v2565, %v2564
      %v2590 = vpack.c.b16 %v2567, %v2566
      %v2591 = vpack.c.b16 %v2569, %v2568
      %v2592 = vpack.c.b16 %v2571, %v2570
      %v2593 = vpack.c.b16 %v2573, %v2572
      %v2594 = vpack.c.b16 %v2575, %v2574
      %v2595 = vpack.c.b16 %v2577, %v2576
      %v2596 = vpack.c.b16 %v2579, %v2578
      %v2597 = vpack.c.b16 %v2581, %v2580
      %v2630 = vunpack.c.l.b16 %v2534
      %v2631 = vunpack.c.l.b16 %v2535
      %v2632 = vunpack.c.l.b16 %v2536
      %v2633 = vunpack.c.l.b16 %v2537
      %v2634 = vunpack.c.l.b16 %v2538
      %v2635 = vunpack.c.l.b16 %v2539
      %v2636 = vunpack.c.l.b16 %v2540
      %v2637 = vunpack.c.l.b16 %v2541
      %v2638 = vunpack.c.l.b16 %v2542
      %v2639 = vunpack.c.l.b16 %v2543
      %v2640 = vunpack.c.l.b16 %v2544
      %v2641 = vunpack.c.l.b16 %v2545
      %v2642 = vunpack.c.l.b16 %v2546
      %v2643 = vunpack.c.l.b16 %v2547
      %v2644 = vunpack.c.l.b16 %v2548
      %v2645 = vunpack.c.l.b16 %v2549
      %v2646 = vpack.c.b16 %v2631, %v2630
      %v2647 = vpack.c.b16 %v2633, %v2632
      %v2648 = vpack.c.b16 %v2635, %v2634
      %v2649 = vpack.c.b16 %v2637, %v2636
      %v2650 = vpack.c.b16 %v2639, %v2638
      %v2651 = vpack.c.b16 %v2641, %v2640
      %v2652 = vpack.c.b16 %v2643, %v2642
      %v2653 = vpack.c.b16 %v2645, %v2644
      %2662 = vmatprep.subr.bf16.mxu0 0
      %2663 = vmatpush1.bf16.msra.mxu0 %v2646
      %2664 = vmatprep.subr.bf16.mxu0 0
      %2665 = vmatpush1.bf16.msra.mxu0 %v2647
      %2666 = vmatprep.subr.bf16.mxu0 0
      %2667 = vmatpush1.bf16.msra.mxu0 %v2648
      %2668 = vmatprep.subr.bf16.mxu0 0
      %2669 = vmatpush1.bf16.msra.mxu0 %v2649
      %2670 = vmatprep.subr.bf16.mxu0 0
      %2671 = vmatpush1.bf16.msra.mxu0 %v2650
      %2672 = vmatprep.subr.bf16.mxu0 0
      %2673 = vmatpush1.bf16.msra.mxu0 %v2651
      %2674 = vmatprep.subr.bf16.mxu0 0
      %2675 = vmatpush1.bf16.msra.mxu0 %v2652
      %2676 = vmatprep.subr.bf16.mxu0 0
      %2677 = vmatpush1.bf16.msra.mxu0 %v2653
      %2678 = vmatprep.subr.bf16.mxu0 0
      %2679 = vmatpush1.bf16.msra.mxu0 0
      %2680 = vmatprep.subr.bf16.mxu0 0
      %2681 = vmatpush1.bf16.msra.mxu0 0
      %2682 = vmatprep.subr.bf16.mxu0 0
      %2683 = vmatpush1.bf16.msra.mxu0 0
      %2684 = vmatprep.subr.bf16.mxu0 0
      %2685 = vmatpush1.bf16.msra.mxu0 0
      %2686 = vmatprep.subr.bf16.mxu0 0
      %2687 = vmatpush1.bf16.msra.mxu0 0
      %2688 = vmatprep.subr.bf16.mxu0 0
      %2689 = vmatpush1.bf16.msra.mxu0 0
      %2690 = vmatprep.subr.bf16.mxu0 0
      %2691 = vmatpush1.bf16.msra.mxu0 0
      %2692 = vmatprep.subr.bf16.mxu0 0
      %2693 = vmatpush1.bf16.msra.mxu0 0
      %2694 = vmatprep.mubr.bf16.mxu0 0
      %2695 = vmatmul.mubr.bf16.gmra.mrb[0].mxu0 %v2582
      %v2696 = vpop.f32.mrb[0].mxu0
      %v2697 = vadd.f32 0.0, %v2696
      %v2698 = vpop.f32.mrb[0].mxu0
      %v2699 = vpop.f32.mrb[0].mxu0
      %v2700 = vadd.f32 0.0, %v2699
      %v2701 = vpop.f32.mrb[0].mxu0
      %2702 = vmatprep.mubr.bf16.mxu0 0
      %2703 = vmatmul.mubr.bf16.gmra.mrb[0].mxu0 %v2583
      %v2704 = vpop.f32.mrb[0].mxu0
      %v2705 = vadd.f32 0.0, %v2704
      %v2706 = vpop.f32.mrb[0].mxu0
      %v2707 = vpop.f32.mrb[0].mxu0
      %v2708 = vadd.f32 0.0, %v2707
      %v2709 = vpop.f32.mrb[0].mxu0
      %2710 = vmatprep.mubr.bf16.mxu0 0
      %2711 = vmatmul.mubr.bf16.gmra.mrb[0].mxu0 %v2584
      %v2712 = vpop.f32.mrb[0].mxu0
      %v2713 = vadd.f32 0.0, %v2712
      %v2714 = vpop.f32.mrb[0].mxu0
      %v2715 = vpop.f32.mrb[0].mxu0
      %v2716 = vadd.f32 0.0, %v2715
      %v2717 = vpop.f32.mrb[0].mxu0
      %2718 = vmatprep.mubr.bf16.mxu0 0
      %2719 = vmatmul.mubr.bf16.gmra.mrb[0].mxu0 %v2585
      %v2720 = vpop.f32.mrb[0].mxu0
      %v2721 = vadd.f32 0.0, %v2720
      %v2722 = vpop.f32.mrb[0].mxu0
      %v2723 = vpop.f32.mrb[0].mxu0
      %v2724 = vadd.f32 0.0, %v2723
      %v2725 = vpop.f32.mrb[0].mxu0
      %2726 = vmatprep.mubr.bf16.mxu0 0
      %2727 = vmatmul.mubr.bf16.gmra.mrb[0].mxu0 %v2586
      %v2728 = vpop.f32.mrb[0].mxu0
      %v2729 = vadd.f32 0.0, %v2728
      %v2730 = vpop.f32.mrb[0].mxu0
      %v2731 = vpop.f32.mrb[0].mxu0
      %v2732 = vadd.f32 0.0, %v2731
      %v2733 = vpop.f32.mrb[0].mxu0
      %2734 = vmatprep.mubr.bf16.mxu0 0
      %2735 = vmatmul.mubr.bf16.gmra.mrb[0].mxu0 %v2587
      %v2736 = vpop.f32.mrb[0].mxu0
      %v2737 = vadd.f32 0.0, %v2736
      %v2738 = vpop.f32.mrb[0].mxu0
      %v2739 = vpop.f32.mrb[0].mxu0
      %v2740 = vadd.f32 0.0, %v2739
      %v2741 = vpop.f32.mrb[0].mxu0
      %2742 = vmatprep.mubr.bf16.mxu0 0
      %2743 = vmatmul.mubr.bf16.gmra.mrb[0].mxu0 %v2588
      %v2744 = vpop.f32.mrb[0].mxu0
      %v2745 = vadd.f32 0.0, %v2744
      %v2746 = vpop.f32.mrb[0].mxu0
      %v2747 = vpop.f32.mrb[0].mxu0
      %v2748 = vadd.f32 0.0, %v2747
      %v2749 = vpop.f32.mrb[0].mxu0
      %2750 = vmatprep.mubr.bf16.mxu0 0
      %2751 = vmatmul.mubr.bf16.gmra.mrb[0].mxu0 %v2589
      %v2752 = vpop.f32.mrb[0].mxu0
      %v2753 = vadd.f32 0.0, %v2752
      %v2754 = vpop.f32.mrb[0].mxu0
      %v2755 = vpop.f32.mrb[0].mxu0
      %v2756 = vadd.f32 0.0, %v2755
      %v2757 = vpop.f32.mrb[0].mxu0
      %2758 = vmatprep.mubr.bf16.mxu0 0
      %2759 = vmatmul.mubr.bf16.gmra.mrb[0].mxu0 %v2590
      %v2760 = vpop.f32.mrb[0].mxu0
      %v2761 = vadd.f32 0.0, %v2760
      %v2762 = vpop.f32.mrb[0].mxu0
      %v2763 = vpop.f32.mrb[0].mxu0
      %v2764 = vadd.f32 0.0, %v2763
      %v2765 = vpop.f32.mrb[0].mxu0
      %2766 = vmatprep.mubr.bf16.mxu0 0
      %2767 = vmatmul.mubr.bf16.gmra.mrb[0].mxu0 %v2591
      %v2768 = vpop.f32.mrb[0].mxu0
      %v2769 = vadd.f32 0.0, %v2768
      %v2770 = vpop.f32.mrb[0].mxu0
      %v2771 = vpop.f32.mrb[0].mxu0
      %v2772 = vadd.f32 0.0, %v2771
      %v2773 = vpop.f32.mrb[0].mxu0
      %2774 = vmatprep.mubr.bf16.mxu0 0
      %2775 = vmatmul.mubr.bf16.gmra.mrb[0].mxu0 %v2592
      %v2776 = vpop.f32.mrb[0].mxu0
      %v2777 = vadd.f32 0.0, %v2776
      %v2778 = vpop.f32.mrb[0].mxu0
      %v2779 = vpop.f32.mrb[0].mxu0
      %v2780 = vadd.f32 0.0, %v2779
      %v2781 = vpop.f32.mrb[0].mxu0
      %2782 = vmatprep.mubr.bf16.mxu0 0
      %2783 = vmatmul.mubr.bf16.gmra.mrb[0].mxu0 %v2593
      %v2784 = vpop.f32.mrb[0].mxu0
      %v2785 = vadd.f32 0.0, %v2784
      %v2786 = vpop.f32.mrb[0].mxu0
      %v2787 = vpop.f32.mrb[0].mxu0
      %v2788 = vadd.f32 0.0, %v2787
      %v2789 = vpop.f32.mrb[0].mxu0
      %2790 = vmatprep.mubr.bf16.mxu0 0
      %2791 = vmatmul.mubr.bf16.gmra.mrb[0].mxu0 %v2594
      %v2792 = vpop.f32.mrb[0].mxu0
      %v2793 = vadd.f32 0.0, %v2792
      %v2794 = vpop.f32.mrb[0].mxu0
      %v2795 = vpop.f32.mrb[0].mxu0
      %v2796 = vadd.f32 0.0, %v2795
      %v2797 = vpop.f32.mrb[0].mxu0
      %2798 = vmatprep.mubr.bf16.mxu0 0
      %2799 = vmatmul.mubr.bf16.gmra.mrb[0].mxu0 %v2595
      %v2800 = vpop.f32.mrb[0].mxu0
      %v2801 = vadd.f32 0.0, %v2800
      %v2802 = vpop.f32.mrb[0].mxu0
      %v2803 = vpop.f32.mrb[0].mxu0
      %v2804 = vadd.f32 0.0, %v2803
      %v2805 = vpop.f32.mrb[0].mxu0
      %2806 = vmatprep.mubr.bf16.mxu0 0
      %2807 = vmatmul.mubr.bf16.gmra.mrb[0].mxu0 %v2596
      %v2808 = vpop.f32.mrb[0].mxu0
      %v2809 = vadd.f32 0.0, %v2808
      %v2810 = vpop.f32.mrb[0].mxu0
      %v2811 = vpop.f32.mrb[0].mxu0
      %v2812 = vadd.f32 0.0, %v2811
      %v2813 = vpop.f32.mrb[0].mxu0
      %2814 = vmatprep.mubr.bf16.mxu0 0
      %2815 = vmatmul.mubr.bf16.gmra.mrb[0].mxu0 %v2597
      %v2816 = vpop.f32.mrb[0].mxu0
      %v2817 = vadd.f32 0.0, %v2816
      %v2818 = vpop.f32.mrb[0].mxu0
      %v2819 = vpop.f32.mrb[0].mxu0
      %v2820 = vadd.f32 0.0, %v2819
      %v2821 = vpop.f32.mrb[0].mxu0
      %2822 = vdwg.mxu0
      %v2823 = vadd.f32 %v2069, %v2697
      %v2824 = vadd.f32 %v2070, %v2700
      %v2825 = vadd.f32 %v2071, %v2705
      %v2826 = vadd.f32 %v2072, %v2708
      %v2827 = vadd.f32 %v2073, %v2713
      %v2828 = vadd.f32 %v2074, %v2716
      %v2829 = vadd.f32 %v2075, %v2721
      %v2830 = vadd.f32 %v2076, %v2724
      %v2831 = vadd.f32 %v2077, %v2729
      %v2832 = vadd.f32 %v2078, %v2732
      %v2833 = vadd.f32 %v2079, %v2737
      %v2834 = vadd.f32 %v2080, %v2740
      %v2835 = vadd.f32 %v2081, %v2745
      %v2836 = vadd.f32 %v2082, %v2748
      %v2837 = vadd.f32 %v2083, %v2753
      %v2838 = vadd.f32 %v2084, %v2756
      %v2839 = vadd.f32 %v2085, %v2761
      %v2840 = vadd.f32 %v2086, %v2764
      %v2841 = vadd.f32 %v2087, %v2769
      %v2842 = vadd.f32 %v2088, %v2772
      %v2843 = vadd.f32 %v2089, %v2777
      %v2844 = vadd.f32 %v2090, %v2780
      %v2845 = vadd.f32 %v2091, %v2785
      %v2846 = vadd.f32 %v2092, %v2788
      %v2847 = vadd.f32 %v2093, %v2793
      %v2848 = vadd.f32 %v2094, %v2796
      %v2849 = vadd.f32 %v2095, %v2801
      %v2850 = vadd.f32 %v2096, %v2804
      %v2851 = vadd.f32 %v2097, %v2809
      %v2852 = vadd.f32 %v2098, %v2812
      %v2853 = vadd.f32 %v2099, %v2817
      %v2854 = vadd.f32 %v2100, %v2820
      %v2855 = vld [vmem:[%s1714] sm:$0xe]
      %v2856 = vld [vmem:[%s1714 + $0xc] sm:$0xe]
      %v2857 = vld [vmem:[%s1714 + $0x18] sm:$0xe]
      %v2858 = vld [vmem:[%s1714 + $0x24] sm:$0xe]
      %v2859 = vld [vmem:[%s1714 + $0x30] sm:$0xe]
      %v2860 = vld [vmem:[%s1714 + $0x3c] sm:$0xe]
      %v2861 = vld [vmem:[%s1714 + $0x48] sm:$0xe]
      %v2862 = vld [vmem:[%s1714 + $0x54] sm:$0xe]
      %v2863 = vld [vmem:[%s1714 + $0x60] sm:$0xe]
      %v2864 = vld [vmem:[%s1714 + $0x6c] sm:$0xe]
      %v2865 = vld [vmem:[%s1714 + $0x78] sm:$0xe]
      %v2866 = vld [vmem:[%s1714 + $0x84] sm:$0xe]
      %v2867 = vld [vmem:[%s1714 + $0x90] sm:$0xe]
      %v2868 = vld [vmem:[%s1714 + $0x9c] sm:$0xe]
      %v2869 = vld [vmem:[%s1714 + $0xa8] sm:$0xe]
      %v2870 = vld [vmem:[%s1714 + $0xb4] sm:$0xe]
      %v2919 = vrot.slane %v2855, 5
      %v2920 = vrot.slane %v2919, 4
      %v2921 = vrot.slane %v2102, 5
      %v2922 = vsel %vm1279, %v2920, %v2921
      %v2923 = vrot.slane %v2921, 4
      %v2924 = vrot.slane %v2103, 5
      %v2925 = vsel %vm1279, %v2923, %v2924
      %v2926 = vrot.slane %v2856, 5
      %v2927 = vrot.slane %v2926, 4
      %v2928 = vrot.slane %v2105, 5
      %v2929 = vsel %vm1279, %v2927, %v2928
      %v2930 = vrot.slane %v2928, 4
      %v2931 = vrot.slane %v2106, 5
      %v2932 = vsel %vm1279, %v2930, %v2931
      %v2933 = vrot.slane %v2857, 5
      %v2934 = vrot.slane %v2933, 4
      %v2935 = vrot.slane %v2108, 5
      %v2936 = vsel %vm1279, %v2934, %v2935
      %v2937 = vrot.slane %v2935, 4
      %v2938 = vrot.slane %v2109, 5
      %v2939 = vsel %vm1279, %v2937, %v2938
      %v2940 = vrot.slane %v2858, 5
      %v2941 = vrot.slane %v2940, 4
      %v2942 = vrot.slane %v2111, 5
      %v2943 = vsel %vm1279, %v2941, %v2942
      %v2944 = vrot.slane %v2942, 4
      %v2945 = vrot.slane %v2112, 5
      %v2946 = vsel %vm1279, %v2944, %v2945
      %v2947 = vrot.slane %v2859, 5
      %v2948 = vrot.slane %v2947, 4
      %v2949 = vrot.slane %v2114, 5
      %v2950 = vsel %vm1279, %v2948, %v2949
      %v2951 = vrot.slane %v2949, 4
      %v2952 = vrot.slane %v2115, 5
      %v2953 = vsel %vm1279, %v2951, %v2952
      %v2954 = vrot.slane %v2860, 5
      %v2955 = vrot.slane %v2954, 4
      %v2956 = vrot.slane %v2117, 5
      %v2957 = vsel %vm1279, %v2955, %v2956
      %v2958 = vrot.slane %v2956, 4
      %v2959 = vrot.slane %v2118, 5
      %v2960 = vsel %vm1279, %v2958, %v2959
      %v2961 = vrot.slane %v2861, 5
      %v2962 = vrot.slane %v2961, 4
      %v2963 = vrot.slane %v2120, 5
      %v2964 = vsel %vm1279, %v2962, %v2963
      %v2965 = vrot.slane %v2963, 4
      %v2966 = vrot.slane %v2121, 5
      %v2967 = vsel %vm1279, %v2965, %v2966
      %v2968 = vrot.slane %v2862, 5
      %v2969 = vrot.slane %v2968, 4
      %v2970 = vrot.slane %v2123, 5
      %v2971 = vsel %vm1279, %v2969, %v2970
      %v2972 = vrot.slane %v2970, 4
      %v2973 = vrot.slane %v2124, 5
      %v2974 = vsel %vm1279, %v2972, %v2973
      %v2975 = vrot.slane %v2863, 5
      %v2976 = vrot.slane %v2975, 4
      %v2977 = vrot.slane %v2126, 5
      %v2978 = vsel %vm1279, %v2976, %v2977
      %v2979 = vrot.slane %v2977, 4
      %v2980 = vrot.slane %v2127, 5
      %v2981 = vsel %vm1279, %v2979, %v2980
      %v2982 = vrot.slane %v2864, 5
      %v2983 = vrot.slane %v2982, 4
      %v2984 = vrot.slane %v2129, 5
      %v2985 = vsel %vm1279, %v2983, %v2984
      %v2986 = vrot.slane %v2984, 4
      %v2987 = vrot.slane %v2130, 5
      %v2988 = vsel %vm1279, %v2986, %v2987
      %v2989 = vrot.slane %v2865, 5
      %v2990 = vrot.slane %v2989, 4
      %v2991 = vrot.slane %v2132, 5
      %v2992 = vsel %vm1279, %v2990, %v2991
      %v2993 = vrot.slane %v2991, 4
      %v2994 = vrot.slane %v2133, 5
      %v2995 = vsel %vm1279, %v2993, %v2994
      %v2996 = vrot.slane %v2866, 5
      %v2997 = vrot.slane %v2996, 4
      %v2998 = vrot.slane %v2135, 5
      %v2999 = vsel %vm1279, %v2997, %v2998
      %v3000 = vrot.slane %v2998, 4
      %v3001 = vrot.slane %v2136, 5
      %v3002 = vsel %vm1279, %v3000, %v3001
      %v3003 = vrot.slane %v2867, 5
      %v3004 = vrot.slane %v3003, 4
      %v3005 = vrot.slane %v2138, 5
      %v3006 = vsel %vm1279, %v3004, %v3005
      %v3007 = vrot.slane %v3005, 4
      %v3008 = vrot.slane %v2139, 5
      %v3009 = vsel %vm1279, %v3007, %v3008
      %v3010 = vrot.slane %v2868, 5
      %v3011 = vrot.slane %v3010, 4
      %v3012 = vrot.slane %v2141, 5
      %v3013 = vsel %vm1279, %v3011, %v3012
      %v3014 = vrot.slane %v3012, 4
      %v3015 = vrot.slane %v2142, 5
      %v3016 = vsel %vm1279, %v3014, %v3015
      %v3017 = vrot.slane %v2869, 5
      %v3018 = vrot.slane %v3017, 4
      %v3019 = vrot.slane %v2144, 5
      %v3020 = vsel %vm1279, %v3018, %v3019
      %v3021 = vrot.slane %v3019, 4
      %v3022 = vrot.slane %v2145, 5
      %v3023 = vsel %vm1279, %v3021, %v3022
      %v3024 = vrot.slane %v2870, 5
      %v3025 = vrot.slane %v3024, 4
      %v3026 = vrot.slane %v2147, 5
      %v3027 = vsel %vm1279, %v3025, %v3026
      %v3028 = vrot.slane %v3026, 4
      %v3029 = vrot.slane %v2148, 5
      %v3030 = vsel %vm1279, %v3028, %v3029
      %s3031 = scalar_lea.vmem %s1, 320
      %v3032 = vld [vmem:[%s3031] sm:$0xf]
      %v3033 = vld [vmem:[%s3031 + $0x4] sm:$0xf]
      %v3034 = vld [vmem:[%s3031 + $0x8] sm:$0xf]
      %v3035 = vld [vmem:[%s3031 + $0xc] sm:$0xf]
      %v3036 = vld [vmem:[%s3031 + $0x10] sm:$0xf]
      %v3037 = vld [vmem:[%s3031 + $0x14] sm:$0xf]
      %v3038 = vld [vmem:[%s3031 + $0x18] sm:$0xf]
      %v3039 = vld [vmem:[%s3031 + $0x1c] sm:$0xf]
      %v3040 = vld [vmem:[%s3031 + $0x20] sm:$0xf]
      %v3041 = vld [vmem:[%s3031 + $0x24] sm:$0xf]
      %v3042 = vld [vmem:[%s3031 + $0x28] sm:$0xf]
      %v3043 = vld [vmem:[%s3031 + $0x2c] sm:$0xf]
      %v3044 = vld [vmem:[%s3031 + $0x30] sm:$0xf]
      %v3045 = vld [vmem:[%s3031 + $0x34] sm:$0xf]
      %v3046 = vld [vmem:[%s3031 + $0x38] sm:$0xf]
      %v3047 = vld [vmem:[%s3031 + $0x3c] sm:$0xf]
      %v3048 = vunpack.c.l.b16 %v2922
      %v3049 = vunpack.c.l.b16 %v2925
      %v3050 = vunpack.c.l.b16 %v2929
      %v3051 = vunpack.c.l.b16 %v2932
      %v3052 = vunpack.c.l.b16 %v2936
      %v3053 = vunpack.c.l.b16 %v2939
      %v3054 = vunpack.c.l.b16 %v2943
      %v3055 = vunpack.c.l.b16 %v2946
      %v3056 = vunpack.c.l.b16 %v2950
      %v3057 = vunpack.c.l.b16 %v2953
      %v3058 = vunpack.c.l.b16 %v2957
      %v3059 = vunpack.c.l.b16 %v2960
      %v3060 = vunpack.c.l.b16 %v2964
      %v3061 = vunpack.c.l.b16 %v2967
      %v3062 = vunpack.c.l.b16 %v2971
      %v3063 = vunpack.c.l.b16 %v2974
      %v3064 = vunpack.c.l.b16 %v2978
      %v3065 = vunpack.c.l.b16 %v2981
      %v3066 = vunpack.c.l.b16 %v2985
      %v3067 = vunpack.c.l.b16 %v2988
      %v3068 = vunpack.c.l.b16 %v2992
      %v3069 = vunpack.c.l.b16 %v2995
      %v3070 = vunpack.c.l.b16 %v2999
      %v3071 = vunpack.c.l.b16 %v3002
      %v3072 = vunpack.c.l.b16 %v3006
      %v3073 = vunpack.c.l.b16 %v3009
      %v3074 = vunpack.c.l.b16 %v3013
      %v3075 = vunpack.c.l.b16 %v3016
      %v3076 = vunpack.c.l.b16 %v3020
      %v3077 = vunpack.c.l.b16 %v3023
      %v3078 = vunpack.c.l.b16 %v3027
      %v3079 = vunpack.c.l.b16 %v3030
      %v3080 = vpack.c.b16 %v3049, %v3048
      %v3081 = vpack.c.b16 %v3051, %v3050
      %v3082 = vpack.c.b16 %v3053, %v3052
      %v3083 = vpack.c.b16 %v3055, %v3054
      %v3084 = vpack.c.b16 %v3057, %v3056
      %v3085 = vpack.c.b16 %v3059, %v3058
      %v3086 = vpack.c.b16 %v3061, %v3060
      %v3087 = vpack.c.b16 %v3063, %v3062
      %v3088 = vpack.c.b16 %v3065, %v3064
      %v3089 = vpack.c.b16 %v3067, %v3066
      %v3090 = vpack.c.b16 %v3069, %v3068
      %v3091 = vpack.c.b16 %v3071, %v3070
      %v3092 = vpack.c.b16 %v3073, %v3072
      %v3093 = vpack.c.b16 %v3075, %v3074
      %v3094 = vpack.c.b16 %v3077, %v3076
      %v3095 = vpack.c.b16 %v3079, %v3078
      %v3128 = vunpack.c.l.b16 %v3032
      %v3129 = vunpack.c.l.b16 %v3033
      %v3130 = vunpack.c.l.b16 %v3034
      %v3131 = vunpack.c.l.b16 %v3035
      %v3132 = vunpack.c.l.b16 %v3036
      %v3133 = vunpack.c.l.b16 %v3037
      %v3134 = vunpack.c.l.b16 %v3038
      %v3135 = vunpack.c.l.b16 %v3039
      %v3136 = vunpack.c.l.b16 %v3040
      %v3137 = vunpack.c.l.b16 %v3041
      %v3138 = vunpack.c.l.b16 %v3042
      %v3139 = vunpack.c.l.b16 %v3043
      %v3140 = vunpack.c.l.b16 %v3044
      %v3141 = vunpack.c.l.b16 %v3045
      %v3142 = vunpack.c.l.b16 %v3046
      %v3143 = vunpack.c.l.b16 %v3047
      %v3144 = vpack.c.b16 %v3129, %v3128
      %v3145 = vpack.c.b16 %v3131, %v3130
      %v3146 = vpack.c.b16 %v3133, %v3132
      %v3147 = vpack.c.b16 %v3135, %v3134
      %v3148 = vpack.c.b16 %v3137, %v3136
      %v3149 = vpack.c.b16 %v3139, %v3138
      %v3150 = vpack.c.b16 %v3141, %v3140
      %v3151 = vpack.c.b16 %v3143, %v3142
      %3160 = vmatprep.subr.bf16.mxu0 0
      %3161 = vmatpush1.bf16.msra.mxu0 %v3144
      %3162 = vmatprep.subr.bf16.mxu0 0
      %3163 = vmatpush1.bf16.msra.mxu0 %v3145
      %3164 = vmatprep.subr.bf16.mxu0 0
      %3165 = vmatpush1.bf16.msra.mxu0 %v3146
      %3166 = vmatprep.subr.bf16.mxu0 0
      %3167 = vmatpush1.bf16.msra.mxu0 %v3147
      %3168 = vmatprep.subr.bf16.mxu0 0
      %3169 = vmatpush1.bf16.msra.mxu0 %v3148
      %3170 = vmatprep.subr.bf16.mxu0 0
      %3171 = vmatpush1.bf16.msra.mxu0 %v3149
      %3172 = vmatprep.subr.bf16.mxu0 0
      %3173 = vmatpush1.bf16.msra.mxu0 %v3150
      %3174 = vmatprep.subr.bf16.mxu0 0
      %3175 = vmatpush1.bf16.msra.mxu0 %v3151
      %3176 = vmatprep.subr.bf16.mxu0 0
      %3177 = vmatpush1.bf16.msra.mxu0 0
      %3178 = vmatprep.subr.bf16.mxu0 0
      %3179 = vmatpush1.bf16.msra.mxu0 0
      %3180 = vmatprep.subr.bf16.mxu0 0
      %3181 = vmatpush1.bf16.msra.mxu0 0
      %3182 = vmatprep.subr.bf16.mxu0 0
      %3183 = vmatpush1.bf16.msra.mxu0 0
      %3184 = vmatprep.subr.bf16.mxu0 0
      %3185 = vmatpush1.bf16.msra.mxu0 0
      %3186 = vmatprep.subr.bf16.mxu0 0
      %3187 = vmatpush1.bf16.msra.mxu0 0
      %3188 = vmatprep.subr.bf16.mxu0 0
      %3189 = vmatpush1.bf16.msra.mxu0 0
      %3190 = vmatprep.subr.bf16.mxu0 0
      %3191 = vmatpush1.bf16.msra.mxu0 0
      %3192 = vmatprep.mubr.bf16.mxu0 0
      %3193 = vmatmul.mubr.bf16.gmra.mrb[0].mxu0 %v3080
      %v3194 = vpop.f32.mrb[0].mxu0
      %v3195 = vadd.f32 0.0, %v3194
      %v3196 = vpop.f32.mrb[0].mxu0
      %v3197 = vpop.f32.mrb[0].mxu0
      %v3198 = vadd.f32 0.0, %v3197
      %v3199 = vpop.f32.mrb[0].mxu0
      %3200 = vmatprep.mubr.bf16.mxu0 0
      %3201 = vmatmul.mubr.bf16.gmra.mrb[0].mxu0 %v3081
      %v3202 = vpop.f32.mrb[0].mxu0
      %v3203 = vadd.f32 0.0, %v3202
      %v3204 = vpop.f32.mrb[0].mxu0
      %v3205 = vpop.f32.mrb[0].mxu0
      %v3206 = vadd.f32 0.0, %v3205
      %v3207 = vpop.f32.mrb[0].mxu0
      %3208 = vmatprep.mubr.bf16.mxu0 0
      %3209 = vmatmul.mubr.bf16.gmra.mrb[0].mxu0 %v3082
      %v3210 = vpop.f32.mrb[0].mxu0
      %v3211 = vadd.f32 0.0, %v3210
      %v3212 = vpop.f32.mrb[0].mxu0
      %v3213 = vpop.f32.mrb[0].mxu0
      %v3214 = vadd.f32 0.0, %v3213
      %v3215 = vpop.f32.mrb[0].mxu0
      %3216 = vmatprep.mubr.bf16.mxu0 0
      %3217 = vmatmul.mubr.bf16.gmra.mrb[0].mxu0 %v3083
      %v3218 = vpop.f32.mrb[0].mxu0
      %v3219 = vadd.f32 0.0, %v3218
      %v3220 = vpop.f32.mrb[0].mxu0
      %v3221 = vpop.f32.mrb[0].mxu0
      %v3222 = vadd.f32 0.0, %v3221
      %v3223 = vpop.f32.mrb[0].mxu0
      %3224 = vmatprep.mubr.bf16.mxu0 0
      %3225 = vmatmul.mubr.bf16.gmra.mrb[0].mxu0 %v3084
      %v3226 = vpop.f32.mrb[0].mxu0
      %v3227 = vadd.f32 0.0, %v3226
      %v3228 = vpop.f32.mrb[0].mxu0
      %v3229 = vpop.f32.mrb[0].mxu0
      %v3230 = vadd.f32 0.0, %v3229
      %v3231 = vpop.f32.mrb[0].mxu0
      %3232 = vmatprep.mubr.bf16.mxu0 0
      %3233 = vmatmul.mubr.bf16.gmra.mrb[0].mxu0 %v3085
      %v3234 = vpop.f32.mrb[0].mxu0
      %v3235 = vadd.f32 0.0, %v3234
      %v3236 = vpop.f32.mrb[0].mxu0
      %v3237 = vpop.f32.mrb[0].mxu0
      %v3238 = vadd.f32 0.0, %v3237
      %v3239 = vpop.f32.mrb[0].mxu0
      %3240 = vmatprep.mubr.bf16.mxu0 0
      %3241 = vmatmul.mubr.bf16.gmra.mrb[0].mxu0 %v3086
      %v3242 = vpop.f32.mrb[0].mxu0
      %v3243 = vadd.f32 0.0, %v3242
      %v3244 = vpop.f32.mrb[0].mxu0
      %v3245 = vpop.f32.mrb[0].mxu0
      %v3246 = vadd.f32 0.0, %v3245
      %v3247 = vpop.f32.mrb[0].mxu0
      %3248 = vmatprep.mubr.bf16.mxu0 0
      %3249 = vmatmul.mubr.bf16.gmra.mrb[0].mxu0 %v3087
      %v3250 = vpop.f32.mrb[0].mxu0
      %v3251 = vadd.f32 0.0, %v3250
      %v3252 = vpop.f32.mrb[0].mxu0
      %v3253 = vpop.f32.mrb[0].mxu0
      %v3254 = vadd.f32 0.0, %v3253
      %v3255 = vpop.f32.mrb[0].mxu0
      %3256 = vmatprep.mubr.bf16.mxu0 0
      %3257 = vmatmul.mubr.bf16.gmra.mrb[0].mxu0 %v3088
      %v3258 = vpop.f32.mrb[0].mxu0
      %v3259 = vadd.f32 0.0, %v3258
      %v3260 = vpop.f32.mrb[0].mxu0
      %v3261 = vpop.f32.mrb[0].mxu0
      %v3262 = vadd.f32 0.0, %v3261
      %v3263 = vpop.f32.mrb[0].mxu0
      %3264 = vmatprep.mubr.bf16.mxu0 0
      %3265 = vmatmul.mubr.bf16.gmra.mrb[0].mxu0 %v3089
      %v3266 = vpop.f32.mrb[0].mxu0
      %v3267 = vadd.f32 0.0, %v3266
      %v3268 = vpop.f32.mrb[0].mxu0
      %v3269 = vpop.f32.mrb[0].mxu0
      %v3270 = vadd.f32 0.0, %v3269
      %v3271 = vpop.f32.mrb[0].mxu0
      %3272 = vmatprep.mubr.bf16.mxu0 0
      %3273 = vmatmul.mubr.bf16.gmra.mrb[0].mxu0 %v3090
      %v3274 = vpop.f32.mrb[0].mxu0
      %v3275 = vadd.f32 0.0, %v3274
      %v3276 = vpop.f32.mrb[0].mxu0
      %v3277 = vpop.f32.mrb[0].mxu0
      %v3278 = vadd.f32 0.0, %v3277
      %v3279 = vpop.f32.mrb[0].mxu0
      %3280 = vmatprep.mubr.bf16.mxu0 0
      %3281 = vmatmul.mubr.bf16.gmra.mrb[0].mxu0 %v3091
      %v3282 = vpop.f32.mrb[0].mxu0
      %v3283 = vadd.f32 0.0, %v3282
      %v3284 = vpop.f32.mrb[0].mxu0
      %v3285 = vpop.f32.mrb[0].mxu0
      %v3286 = vadd.f32 0.0, %v3285
      %v3287 = vpop.f32.mrb[0].mxu0
      %3288 = vmatprep.mubr.bf16.mxu0 0
      %3289 = vmatmul.mubr.bf16.gmra.mrb[0].mxu0 %v3092
      %v3290 = vpop.f32.mrb[0].mxu0
      %v3291 = vadd.f32 0.0, %v3290
      %v3292 = vpop.f32.mrb[0].mxu0
      %v3293 = vpop.f32.mrb[0].mxu0
      %v3294 = vadd.f32 0.0, %v3293
      %v3295 = vpop.f32.mrb[0].mxu0
      %3296 = vmatprep.mubr.bf16.mxu0 0
      %3297 = vmatmul.mubr.bf16.gmra.mrb[0].mxu0 %v3093
      %v3298 = vpop.f32.mrb[0].mxu0
      %v3299 = vadd.f32 0.0, %v3298
      %v3300 = vpop.f32.mrb[0].mxu0
      %v3301 = vpop.f32.mrb[0].mxu0
      %v3302 = vadd.f32 0.0, %v3301
      %v3303 = vpop.f32.mrb[0].mxu0
      %3304 = vmatprep.mubr.bf16.mxu0 0
      %3305 = vmatmul.mubr.bf16.gmra.mrb[0].mxu0 %v3094
      %v3306 = vpop.f32.mrb[0].mxu0
      %v3307 = vadd.f32 0.0, %v3306
      %v3308 = vpop.f32.mrb[0].mxu0
      %v3309 = vpop.f32.mrb[0].mxu0
      %v3310 = vadd.f32 0.0, %v3309
      %v3311 = vpop.f32.mrb[0].mxu0
      %3312 = vmatprep.mubr.bf16.mxu0 0
      %3313 = vmatmul.mubr.bf16.gmra.mrb[0].mxu0 %v3095
      %v3314 = vpop.f32.mrb[0].mxu0
      %v3315 = vadd.f32 0.0, %v3314
      %v3316 = vpop.f32.mrb[0].mxu0
      %v3317 = vpop.f32.mrb[0].mxu0
      %v3318 = vadd.f32 0.0, %v3317
      %v3319 = vpop.f32.mrb[0].mxu0
      %3320 = vdwg.mxu0
      %v3321 = vadd.f32 %v2823, %v3195
      %v3322 = vadd.f32 %v2824, %v3198
      %v3323 = vadd.f32 %v2825, %v3203
      %v3324 = vadd.f32 %v2826, %v3206
      %v3325 = vadd.f32 %v2827, %v3211
      %v3326 = vadd.f32 %v2828, %v3214
      %v3327 = vadd.f32 %v2829, %v3219
      %v3328 = vadd.f32 %v2830, %v3222
      %v3329 = vadd.f32 %v2831, %v3227
      %v3330 = vadd.f32 %v2832, %v3230
      %v3331 = vadd.f32 %v2833, %v3235
      %v3332 = vadd.f32 %v2834, %v3238
      %v3333 = vadd.f32 %v2835, %v3243
      %v3334 = vadd.f32 %v2836, %v3246
      %v3335 = vadd.f32 %v2837, %v3251
      %v3336 = vadd.f32 %v2838, %v3254
      %v3337 = vadd.f32 %v2839, %v3259
      %v3338 = vadd.f32 %v2840, %v3262
      %v3339 = vadd.f32 %v2841, %v3267
      %v3340 = vadd.f32 %v2842, %v3270
      %v3341 = vadd.f32 %v2843, %v3275
      %v3342 = vadd.f32 %v2844, %v3278
      %v3343 = vadd.f32 %v2845, %v3283
      %v3344 = vadd.f32 %v2846, %v3286
      %v3345 = vadd.f32 %v2847, %v3291
      %v3346 = vadd.f32 %v2848, %v3294
      %v3347 = vadd.f32 %v2849, %v3299
      %v3348 = vadd.f32 %v2850, %v3302
      %v3349 = vadd.f32 %v2851, %v3307
      %v3350 = vadd.f32 %v2852, %v3310
      %v3351 = vadd.f32 %v2853, %v3315
      %v3352 = vadd.f32 %v2854, %v3318
      %s3353 = scalar_lea.vmem %s172, 24
      %v3354 = vld [vmem:[%s3353] sm:$0xf]
      %v3355 = vld [vmem:[%s3353 + $0x4] sm:$0xf]
      %v3356 = vld [vmem:[%s3353 + $0xc] sm:$0xf]
      %v3357 = vld [vmem:[%s3353 + $0x10] sm:$0xf]
      %v3358 = vld [vmem:[%s3353 + $0x18] sm:$0xf]
      %v3359 = vld [vmem:[%s3353 + $0x1c] sm:$0xf]
      %v3360 = vld [vmem:[%s3353 + $0x24] sm:$0xf]
      %v3361 = vld [vmem:[%s3353 + $0x28] sm:$0xf]
      %v3362 = vld [vmem:[%s3353 + $0x30] sm:$0xf]
      %v3363 = vld [vmem:[%s3353 + $0x34] sm:$0xf]
      %v3364 = vld [vmem:[%s3353 + $0x3c] sm:$0xf]
      %v3365 = vld [vmem:[%s3353 + $0x40] sm:$0xf]
      %v3366 = vld [vmem:[%s3353 + $0x48] sm:$0xf]
      %v3367 = vld [vmem:[%s3353 + $0x4c] sm:$0xf]
      %v3368 = vld [vmem:[%s3353 + $0x54] sm:$0xf]
      %v3369 = vld [vmem:[%s3353 + $0x58] sm:$0xf]
      %v3370 = vld [vmem:[%s3353 + $0x60] sm:$0xf]
      %v3371 = vld [vmem:[%s3353 + $0x64] sm:$0xf]
      %v3372 = vld [vmem:[%s3353 + $0x6c] sm:$0xf]
      %v3373 = vld [vmem:[%s3353 + $0x70] sm:$0xf]
      %v3374 = vld [vmem:[%s3353 + $0x78] sm:$0xf]
      %v3375 = vld [vmem:[%s3353 + $0x7c] sm:$0xf]
      %v3376 = vld [vmem:[%s3353 + $0x84] sm:$0xf]
      %v3377 = vld [vmem:[%s3353 + $0x88] sm:$0xf]
      %v3378 = vld [vmem:[%s3353 + $0x90] sm:$0xf]
      %v3379 = vld [vmem:[%s3353 + $0x94] sm:$0xf]
      %v3380 = vld [vmem:[%s3353 + $0x9c] sm:$0xf]
      %v3381 = vld [vmem:[%s3353 + $0xa0] sm:$0xf]
      %v3382 = vld [vmem:[%s3353 + $0xa8] sm:$0xf]
      %v3383 = vld [vmem:[%s3353 + $0xac] sm:$0xf]
      %v3384 = vld [vmem:[%s3353 + $0xb4] sm:$0xf]
      %v3385 = vld [vmem:[%s3353 + $0xb8] sm:$0xf]
      %s3386 = scalar_lea.vmem %s1, 384
      %v3387 = vld [vmem:[%s3386] sm:$0xf]
      %v3388 = vld [vmem:[%s3386 + $0x4] sm:$0xf]
      %v3389 = vld [vmem:[%s3386 + $0x8] sm:$0xf]
      %v3390 = vld [vmem:[%s3386 + $0xc] sm:$0xf]
      %v3391 = vld [vmem:[%s3386 + $0x10] sm:$0xf]
      %v3392 = vld [vmem:[%s3386 + $0x14] sm:$0xf]
      %v3393 = vld [vmem:[%s3386 + $0x18] sm:$0xf]
      %v3394 = vld [vmem:[%s3386 + $0x1c] sm:$0xf]
      %v3395 = vld [vmem:[%s3386 + $0x20] sm:$0xf]
      %v3396 = vld [vmem:[%s3386 + $0x24] sm:$0xf]
      %v3397 = vld [vmem:[%s3386 + $0x28] sm:$0xf]
      %v3398 = vld [vmem:[%s3386 + $0x2c] sm:$0xf]
      %v3399 = vld [vmem:[%s3386 + $0x30] sm:$0xf]
      %v3400 = vld [vmem:[%s3386 + $0x34] sm:$0xf]
      %v3401 = vld [vmem:[%s3386 + $0x38] sm:$0xf]
      %v3402 = vld [vmem:[%s3386 + $0x3c] sm:$0xf]
      %v3435 = vunpack.c.l.b16 %v3354
      %v3436 = vunpack.c.l.b16 %v3355
      %v3437 = vunpack.c.l.b16 %v3356
      %v3438 = vunpack.c.l.b16 %v3357
      %v3439 = vunpack.c.l.b16 %v3358
      %v3440 = vunpack.c.l.b16 %v3359
      %v3441 = vunpack.c.l.b16 %v3360
      %v3442 = vunpack.c.l.b16 %v3361
      %v3443 = vunpack.c.l.b16 %v3362
      %v3444 = vunpack.c.l.b16 %v3363
      %v3445 = vunpack.c.l.b16 %v3364
      %v3446 = vunpack.c.l.b16 %v3365
      %v3447 = vunpack.c.l.b16 %v3366
      %v3448 = vunpack.c.l.b16 %v3367
      %v3449 = vunpack.c.l.b16 %v3368
      %v3450 = vunpack.c.l.b16 %v3369
      %v3451 = vunpack.c.l.b16 %v3370
      %v3452 = vunpack.c.l.b16 %v3371
      %v3453 = vunpack.c.l.b16 %v3372
      %v3454 = vunpack.c.l.b16 %v3373
      %v3455 = vunpack.c.l.b16 %v3374
      %v3456 = vunpack.c.l.b16 %v3375
      %v3457 = vunpack.c.l.b16 %v3376
      %v3458 = vunpack.c.l.b16 %v3377
      %v3459 = vunpack.c.l.b16 %v3378
      %v3460 = vunpack.c.l.b16 %v3379
      %v3461 = vunpack.c.l.b16 %v3380
      %v3462 = vunpack.c.l.b16 %v3381
      %v3463 = vunpack.c.l.b16 %v3382
      %v3464 = vunpack.c.l.b16 %v3383
      %v3465 = vunpack.c.l.b16 %v3384
      %v3466 = vunpack.c.l.b16 %v3385
      %v3467 = vpack.c.b16 %v3436, %v3435
      %v3468 = vpack.c.b16 %v3438, %v3437
      %v3469 = vpack.c.b16 %v3440, %v3439
      %v3470 = vpack.c.b16 %v3442, %v3441
      %v3471 = vpack.c.b16 %v3444, %v3443
      %v3472 = vpack.c.b16 %v3446, %v3445
      %v3473 = vpack.c.b16 %v3448, %v3447
      %v3474 = vpack.c.b16 %v3450, %v3449
      %v3475 = vpack.c.b16 %v3452, %v3451
      %v3476 = vpack.c.b16 %v3454, %v3453
      %v3477 = vpack.c.b16 %v3456, %v3455
      %v3478 = vpack.c.b16 %v3458, %v3457
      %v3479 = vpack.c.b16 %v3460, %v3459
      %v3480 = vpack.c.b16 %v3462, %v3461
      %v3481 = vpack.c.b16 %v3464, %v3463
      %v3482 = vpack.c.b16 %v3466, %v3465
      %v3515 = vunpack.c.l.b16 %v3387
      %v3516 = vunpack.c.l.b16 %v3388
      %v3517 = vunpack.c.l.b16 %v3389
      %v3518 = vunpack.c.l.b16 %v3390
      %v3519 = vunpack.c.l.b16 %v3391
      %v3520 = vunpack.c.l.b16 %v3392
      %v3521 = vunpack.c.l.b16 %v3393
      %v3522 = vunpack.c.l.b16 %v3394
      %v3523 = vunpack.c.l.b16 %v3395
      %v3524 = vunpack.c.l.b16 %v3396
      %v3525 = vunpack.c.l.b16 %v3397
      %v3526 = vunpack.c.l.b16 %v3398
      %v3527 = vunpack.c.l.b16 %v3399
      %v3528 = vunpack.c.l.b16 %v3400
      %v3529 = vunpack.c.l.b16 %v3401
      %v3530 = vunpack.c.l.b16 %v3402
      %v3531 = vpack.c.b16 %v3516, %v3515
      %v3532 = vpack.c.b16 %v3518, %v3517
      %v3533 = vpack.c.b16 %v3520, %v3519
      %v3534 = vpack.c.b16 %v3522, %v3521
      %v3535 = vpack.c.b16 %v3524, %v3523
      %v3536 = vpack.c.b16 %v3526, %v3525
      %v3537 = vpack.c.b16 %v3528, %v3527
      %v3538 = vpack.c.b16 %v3530, %v3529
      %3547 = vmatprep.subr.bf16.mxu0 0
      %3548 = vmatpush1.bf16.msra.mxu0 %v3531
      %3549 = vmatprep.subr.bf16.mxu0 0
      %3550 = vmatpush1.bf16.msra.mxu0 %v3532
      %3551 = vmatprep.subr.bf16.mxu0 0
      %3552 = vmatpush1.bf16.msra.mxu0 %v3533
      %3553 = vmatprep.subr.bf16.mxu0 0
      %3554 = vmatpush1.bf16.msra.mxu0 %v3534
      %3555 = vmatprep.subr.bf16.mxu0 0
      %3556 = vmatpush1.bf16.msra.mxu0 %v3535
      %3557 = vmatprep.subr.bf16.mxu0 0
      %3558 = vmatpush1.bf16.msra.mxu0 %v3536
      %3559 = vmatprep.subr.bf16.mxu0 0
      %3560 = vmatpush1.bf16.msra.mxu0 %v3537
      %3561 = vmatprep.subr.bf16.mxu0 0
      %3562 = vmatpush1.bf16.msra.mxu0 %v3538
      %3563 = vmatprep.subr.bf16.mxu0 0
      %3564 = vmatpush1.bf16.msra.mxu0 0
      %3565 = vmatprep.subr.bf16.mxu0 0
      %3566 = vmatpush1.bf16.msra.mxu0 0
      %3567 = vmatprep.subr.bf16.mxu0 0
      %3568 = vmatpush1.bf16.msra.mxu0 0
      %3569 = vmatprep.subr.bf16.mxu0 0
      %3570 = vmatpush1.bf16.msra.mxu0 0
      %3571 = vmatprep.subr.bf16.mxu0 0
      %3572 = vmatpush1.bf16.msra.mxu0 0
      %3573 = vmatprep.subr.bf16.mxu0 0
      %3574 = vmatpush1.bf16.msra.mxu0 0
      %3575 = vmatprep.subr.bf16.mxu0 0
      %3576 = vmatpush1.bf16.msra.mxu0 0
      %3577 = vmatprep.subr.bf16.mxu0 0
      %3578 = vmatpush1.bf16.msra.mxu0 0
      %3579 = vmatprep.mubr.bf16.mxu0 0
      %3580 = vmatmul.mubr.bf16.gmra.mrb[0].mxu0 %v3467
      %v3581 = vpop.f32.mrb[0].mxu0
      %v3582 = vadd.f32 0.0, %v3581
      %v3583 = vpop.f32.mrb[0].mxu0
      %v3584 = vpop.f32.mrb[0].mxu0
      %v3585 = vadd.f32 0.0, %v3584
      %v3586 = vpop.f32.mrb[0].mxu0
      %3587 = vmatprep.mubr.bf16.mxu0 0
      %3588 = vmatmul.mubr.bf16.gmra.mrb[0].mxu0 %v3468
      %v3589 = vpop.f32.mrb[0].mxu0
      %v3590 = vadd.f32 0.0, %v3589
      %v3591 = vpop.f32.mrb[0].mxu0
      %v3592 = vpop.f32.mrb[0].mxu0
      %v3593 = vadd.f32 0.0, %v3592
      %v3594 = vpop.f32.mrb[0].mxu0
      %3595 = vmatprep.mubr.bf16.mxu0 0
      %3596 = vmatmul.mubr.bf16.gmra.mrb[0].mxu0 %v3469
      %v3597 = vpop.f32.mrb[0].mxu0
      %v3598 = vadd.f32 0.0, %v3597
      %v3599 = vpop.f32.mrb[0].mxu0
      %v3600 = vpop.f32.mrb[0].mxu0
      %v3601 = vadd.f32 0.0, %v3600
      %v3602 = vpop.f32.mrb[0].mxu0
      %3603 = vmatprep.mubr.bf16.mxu0 0
      %3604 = vmatmul.mubr.bf16.gmra.mrb[0].mxu0 %v3470
      %v3605 = vpop.f32.mrb[0].mxu0
      %v3606 = vadd.f32 0.0, %v3605
      %v3607 = vpop.f32.mrb[0].mxu0
      %v3608 = vpop.f32.mrb[0].mxu0
      %v3609 = vadd.f32 0.0, %v3608
      %v3610 = vpop.f32.mrb[0].mxu0
      %3611 = vmatprep.mubr.bf16.mxu0 0
      %3612 = vmatmul.mubr.bf16.gmra.mrb[0].mxu0 %v3471
      %v3613 = vpop.f32.mrb[0].mxu0
      %v3614 = vadd.f32 0.0, %v3613
      %v3615 = vpop.f32.mrb[0].mxu0
      %v3616 = vpop.f32.mrb[0].mxu0
      %v3617 = vadd.f32 0.0, %v3616
      %v3618 = vpop.f32.mrb[0].mxu0
      %3619 = vmatprep.mubr.bf16.mxu0 0
      %3620 = vmatmul.mubr.bf16.gmra.mrb[0].mxu0 %v3472
      %v3621 = vpop.f32.mrb[0].mxu0
      %v3622 = vadd.f32 0.0, %v3621
      %v3623 = vpop.f32.mrb[0].mxu0
      %v3624 = vpop.f32.mrb[0].mxu0
      %v3625 = vadd.f32 0.0, %v3624
      %v3626 = vpop.f32.mrb[0].mxu0
      %3627 = vmatprep.mubr.bf16.mxu0 0
      %3628 = vmatmul.mubr.bf16.gmra.mrb[0].mxu0 %v3473
      %v3629 = vpop.f32.mrb[0].mxu0
      %v3630 = vadd.f32 0.0, %v3629
      %v3631 = vpop.f32.mrb[0].mxu0
      %v3632 = vpop.f32.mrb[0].mxu0
      %v3633 = vadd.f32 0.0, %v3632
      %v3634 = vpop.f32.mrb[0].mxu0
      %3635 = vmatprep.mubr.bf16.mxu0 0
      %3636 = vmatmul.mubr.bf16.gmra.mrb[0].mxu0 %v3474
      %v3637 = vpop.f32.mrb[0].mxu0
      %v3638 = vadd.f32 0.0, %v3637
      %v3639 = vpop.f32.mrb[0].mxu0
      %v3640 = vpop.f32.mrb[0].mxu0
      %v3641 = vadd.f32 0.0, %v3640
      %v3642 = vpop.f32.mrb[0].mxu0
      %3643 = vmatprep.mubr.bf16.mxu0 0
      %3644 = vmatmul.mubr.bf16.gmra.mrb[0].mxu0 %v3475
      %v3645 = vpop.f32.mrb[0].mxu0
      %v3646 = vadd.f32 0.0, %v3645
      %v3647 = vpop.f32.mrb[0].mxu0
      %v3648 = vpop.f32.mrb[0].mxu0
      %v3649 = vadd.f32 0.0, %v3648
      %v3650 = vpop.f32.mrb[0].mxu0
      %3651 = vmatprep.mubr.bf16.mxu0 0
      %3652 = vmatmul.mubr.bf16.gmra.mrb[0].mxu0 %v3476
      %v3653 = vpop.f32.mrb[0].mxu0
      %v3654 = vadd.f32 0.0, %v3653
      %v3655 = vpop.f32.mrb[0].mxu0
      %v3656 = vpop.f32.mrb[0].mxu0
      %v3657 = vadd.f32 0.0, %v3656
      %v3658 = vpop.f32.mrb[0].mxu0
      %3659 = vmatprep.mubr.bf16.mxu0 0
      %3660 = vmatmul.mubr.bf16.gmra.mrb[0].mxu0 %v3477
      %v3661 = vpop.f32.mrb[0].mxu0
      %v3662 = vadd.f32 0.0, %v3661
      %v3663 = vpop.f32.mrb[0].mxu0
      %v3664 = vpop.f32.mrb[0].mxu0
      %v3665 = vadd.f32 0.0, %v3664
      %v3666 = vpop.f32.mrb[0].mxu0
      %3667 = vmatprep.mubr.bf16.mxu0 0
      %3668 = vmatmul.mubr.bf16.gmra.mrb[0].mxu0 %v3478
      %v3669 = vpop.f32.mrb[0].mxu0
      %v3670 = vadd.f32 0.0, %v3669
      %v3671 = vpop.f32.mrb[0].mxu0
      %v3672 = vpop.f32.mrb[0].mxu0
      %v3673 = vadd.f32 0.0, %v3672
      %v3674 = vpop.f32.mrb[0].mxu0
      %3675 = vmatprep.mubr.bf16.mxu0 0
      %3676 = vmatmul.mubr.bf16.gmra.mrb[0].mxu0 %v3479
      %v3677 = vpop.f32.mrb[0].mxu0
      %v3678 = vadd.f32 0.0, %v3677
      %v3679 = vpop.f32.mrb[0].mxu0
      %v3680 = vpop.f32.mrb[0].mxu0
      %v3681 = vadd.f32 0.0, %v3680
      %v3682 = vpop.f32.mrb[0].mxu0
      %3683 = vmatprep.mubr.bf16.mxu0 0
      %3684 = vmatmul.mubr.bf16.gmra.mrb[0].mxu0 %v3480
      %v3685 = vpop.f32.mrb[0].mxu0
      %v3686 = vadd.f32 0.0, %v3685
      %v3687 = vpop.f32.mrb[0].mxu0
      %v3688 = vpop.f32.mrb[0].mxu0
      %v3689 = vadd.f32 0.0, %v3688
      %v3690 = vpop.f32.mrb[0].mxu0
      %3691 = vmatprep.mubr.bf16.mxu0 0
      %3692 = vmatmul.mubr.bf16.gmra.mrb[0].mxu0 %v3481
      %v3693 = vpop.f32.mrb[0].mxu0
      %v3694 = vadd.f32 0.0, %v3693
      %v3695 = vpop.f32.mrb[0].mxu0
      %v3696 = vpop.f32.mrb[0].mxu0
      %v3697 = vadd.f32 0.0, %v3696
      %v3698 = vpop.f32.mrb[0].mxu0
      %3699 = vmatprep.mubr.bf16.mxu0 0
      %3700 = vmatmul.mubr.bf16.gmra.mrb[0].mxu0 %v3482
      %v3701 = vpop.f32.mrb[0].mxu0
      %v3702 = vadd.f32 0.0, %v3701
      %v3703 = vpop.f32.mrb[0].mxu0
      %v3704 = vpop.f32.mrb[0].mxu0
      %v3705 = vadd.f32 0.0, %v3704
      %v3706 = vpop.f32.mrb[0].mxu0
      %3707 = vdwg.mxu0
      %v3708 = vadd.f32 %v3321, %v3582
      %v3709 = vadd.f32 %v3322, %v3585
      %v3710 = vadd.f32 %v3323, %v3590
      %v3711 = vadd.f32 %v3324, %v3593
      %v3712 = vadd.f32 %v3325, %v3598
      %v3713 = vadd.f32 %v3326, %v3601
      %v3714 = vadd.f32 %v3327, %v3606
      %v3715 = vadd.f32 %v3328, %v3609
      %v3716 = vadd.f32 %v3329, %v3614
      %v3717 = vadd.f32 %v3330, %v3617
      %v3718 = vadd.f32 %v3331, %v3622
      %v3719 = vadd.f32 %v3332, %v3625
      %v3720 = vadd.f32 %v3333, %v3630
      %v3721 = vadd.f32 %v3334, %v3633
      %v3722 = vadd.f32 %v3335, %v3638
      %v3723 = vadd.f32 %v3336, %v3641
      %v3724 = vadd.f32 %v3337, %v3646
      %v3725 = vadd.f32 %v3338, %v3649
      %v3726 = vadd.f32 %v3339, %v3654
      %v3727 = vadd.f32 %v3340, %v3657
      %v3728 = vadd.f32 %v3341, %v3662
      %v3729 = vadd.f32 %v3342, %v3665
      %v3730 = vadd.f32 %v3343, %v3670
      %v3731 = vadd.f32 %v3344, %v3673
      %v3732 = vadd.f32 %v3345, %v3678
      %v3733 = vadd.f32 %v3346, %v3681
      %v3734 = vadd.f32 %v3347, %v3686
      %v3735 = vadd.f32 %v3348, %v3689
      %v3736 = vadd.f32 %v3349, %v3694
      %v3737 = vadd.f32 %v3350, %v3697
      %v3738 = vadd.f32 %v3351, %v3702
      %v3739 = vadd.f32 %v3352, %v3705
      %v3740 = vld [vmem:[%s3353] sm:$0xf]
      %v3741 = vld [vmem:[%s3353 + $0x4] sm:$0xf]
      %v3742 = vld [vmem:[%s3353 + $0x8] sm:$0x1]
      %v3743 = vld [vmem:[%s3353 + $0xc] sm:$0xf]
      %v3744 = vld [vmem:[%s3353 + $0x10] sm:$0xf]
      %v3745 = vld [vmem:[%s3353 + $0x14] sm:$0x1]
      %v3746 = vld [vmem:[%s3353 + $0x18] sm:$0xf]
      %v3747 = vld [vmem:[%s3353 + $0x1c] sm:$0xf]
      %v3748 = vld [vmem:[%s3353 + $0x20] sm:$0x1]
      %v3749 = vld [vmem:[%s3353 + $0x24] sm:$0xf]
      %v3750 = vld [vmem:[%s3353 + $0x28] sm:$0xf]
      %v3751 = vld [vmem:[%s3353 + $0x2c] sm:$0x1]
      %v3752 = vld [vmem:[%s3353 + $0x30] sm:$0xf]
      %v3753 = vld [vmem:[%s3353 + $0x34] sm:$0xf]
      %v3754 = vld [vmem:[%s3353 + $0x38] sm:$0x1]
      %v3755 = vld [vmem:[%s3353 + $0x3c] sm:$0xf]
      %v3756 = vld [vmem:[%s3353 + $0x40] sm:$0xf]
      %v3757 = vld [vmem:[%s3353 + $0x44] sm:$0x1]
      %v3758 = vld [vmem:[%s3353 + $0x48] sm:$0xf]
      %v3759 = vld [vmem:[%s3353 + $0x4c] sm:$0xf]
      %v3760 = vld [vmem:[%s3353 + $0x50] sm:$0x1]
      %v3761 = vld [vmem:[%s3353 + $0x54] sm:$0xf]
      %v3762 = vld [vmem:[%s3353 + $0x58] sm:$0xf]
      %v3763 = vld [vmem:[%s3353 + $0x5c] sm:$0x1]
      %v3764 = vld [vmem:[%s3353 + $0x60] sm:$0xf]
      %v3765 = vld [vmem:[%s3353 + $0x64] sm:$0xf]
      %v3766 = vld [vmem:[%s3353 + $0x68] sm:$0x1]
      %v3767 = vld [vmem:[%s3353 + $0x6c] sm:$0xf]
      %v3768 = vld [vmem:[%s3353 + $0x70] sm:$0xf]
      %v3769 = vld [vmem:[%s3353 + $0x74] sm:$0x1]
      %v3770 = vld [vmem:[%s3353 + $0x78] sm:$0xf]
      %v3771 = vld [vmem:[%s3353 + $0x7c] sm:$0xf]
      %v3772 = vld [vmem:[%s3353 + $0x80] sm:$0x1]
      %v3773 = vld [vmem:[%s3353 + $0x84] sm:$0xf]
      %v3774 = vld [vmem:[%s3353 + $0x88] sm:$0xf]
      %v3775 = vld [vmem:[%s3353 + $0x8c] sm:$0x1]
      %v3776 = vld [vmem:[%s3353 + $0x90] sm:$0xf]
      %v3777 = vld [vmem:[%s3353 + $0x94] sm:$0xf]
      %v3778 = vld [vmem:[%s3353 + $0x98] sm:$0x1]
      %v3779 = vld [vmem:[%s3353 + $0x9c] sm:$0xf]
      %v3780 = vld [vmem:[%s3353 + $0xa0] sm:$0xf]
      %v3781 = vld [vmem:[%s3353 + $0xa4] sm:$0x1]
      %v3782 = vld [vmem:[%s3353 + $0xa8] sm:$0xf]
      %v3783 = vld [vmem:[%s3353 + $0xac] sm:$0xf]
      %v3784 = vld [vmem:[%s3353 + $0xb0] sm:$0x1]
      %v3785 = vld [vmem:[%s3353 + $0xb4] sm:$0xf]
      %v3786 = vld [vmem:[%s3353 + $0xb8] sm:$0xf]
      %v3787 = vld [vmem:[%s3353 + $0xbc] sm:$0x1]
      %v3789 = vshrl.u32 %v3740, 16
      %v3791 = vrot.slane %v3789, 4
      %v3792 = vshll.u32 %v3740, 16
      %v3794 = vrot.slane %v3792, 5
      %v3795 = vor.u32 %v3791, %v3794
      %v3796 = vrot.slane %v3795, 4
      %v3798 = vshll.u32 %v3741, 16
      %v3800 = vrot.slane %v3798, 5
      %v3801 = vsel %vm249, %v3796, %v3800
      %v3802 = vshrl.u32 %v3741, 16
      %v3804 = vrot.slane %v3802, 4
      %v3805 = vor.u32 %v3804, %v3800
      %v3806 = vrot.slane %v3805, 4
      %v3808 = vshll.u32 %v3742, 16
      %v3810 = vrot.slane %v3808, 5
      %v3811 = vsel %vm249, %v3806, %v3810
      %v3813 = vshrl.u32 %v3743, 16
      %v3815 = vrot.slane %v3813, 4
      %v3816 = vshll.u32 %v3743, 16
      %v3818 = vrot.slane %v3816, 5
      %v3819 = vor.u32 %v3815, %v3818
      %v3820 = vrot.slane %v3819, 4
      %v3822 = vshll.u32 %v3744, 16
      %v3824 = vrot.slane %v3822, 5
      %v3825 = vsel %vm249, %v3820, %v3824
      %v3826 = vshrl.u32 %v3744, 16
      %v3828 = vrot.slane %v3826, 4
      %v3829 = vor.u32 %v3828, %v3824
      %v3830 = vrot.slane %v3829, 4
      %v3832 = vshll.u32 %v3745, 16
      %v3834 = vrot.slane %v3832, 5
      %v3835 = vsel %vm249, %v3830, %v3834
      %v3837 = vshrl.u32 %v3746, 16
      %v3839 = vrot.slane %v3837, 4
      %v3840 = vshll.u32 %v3746, 16
      %v3842 = vrot.slane %v3840, 5
      %v3843 = vor.u32 %v3839, %v3842
      %v3844 = vrot.slane %v3843, 4
      %v3846 = vshll.u32 %v3747, 16
      %v3848 = vrot.slane %v3846, 5
      %v3849 = vsel %vm249, %v3844, %v3848
      %v3850 = vshrl.u32 %v3747, 16
      %v3852 = vrot.slane %v3850, 4
      %v3853 = vor.u32 %v3852, %v3848
      %v3854 = vrot.slane %v3853, 4
      %v3856 = vshll.u32 %v3748, 16
      %v3858 = vrot.slane %v3856, 5
      %v3859 = vsel %vm249, %v3854, %v3858
      %v3861 = vshrl.u32 %v3749, 16
      %v3863 = vrot.slane %v3861, 4
      %v3864 = vshll.u32 %v3749, 16
      %v3866 = vrot.slane %v3864, 5
      %v3867 = vor.u32 %v3863, %v3866
      %v3868 = vrot.slane %v3867, 4
      %v3870 = vshll.u32 %v3750, 16
      %v3872 = vrot.slane %v3870, 5
      %v3873 = vsel %vm249, %v3868, %v3872
      %v3874 = vshrl.u32 %v3750, 16
      %v3876 = vrot.slane %v3874, 4
      %v3877 = vor.u32 %v3876, %v3872
      %v3878 = vrot.slane %v3877, 4
      %v3880 = vshll.u32 %v3751, 16
      %v3882 = vrot.slane %v3880, 5
      %v3883 = vsel %vm249, %v3878, %v3882
      %v3885 = vshrl.u32 %v3752, 16
      %v3887 = vrot.slane %v3885, 4
      %v3888 = vshll.u32 %v3752, 16
      %v3890 = vrot.slane %v3888, 5
      %v3891 = vor.u32 %v3887, %v3890
      %v3892 = vrot.slane %v3891, 4
      %v3894 = vshll.u32 %v3753, 16
      %v3896 = vrot.slane %v3894, 5
      %v3897 = vsel %vm249, %v3892, %v3896
      %v3898 = vshrl.u32 %v3753, 16
      %v3900 = vrot.slane %v3898, 4
      %v3901 = vor.u32 %v3900, %v3896
      %v3902 = vrot.slane %v3901, 4
      %v3904 = vshll.u32 %v3754, 16
      %v3906 = vrot.slane %v3904, 5
      %v3907 = vsel %vm249, %v3902, %v3906
      %v3909 = vshrl.u32 %v3755, 16
      %v3911 = vrot.slane %v3909, 4
      %v3912 = vshll.u32 %v3755, 16
      %v3914 = vrot.slane %v3912, 5
      %v3915 = vor.u32 %v3911, %v3914
      %v3916 = vrot.slane %v3915, 4
      %v3918 = vshll.u32 %v3756, 16
      %v3920 = vrot.slane %v3918, 5
      %v3921 = vsel %vm249, %v3916, %v3920
      %v3922 = vshrl.u32 %v3756, 16
      %v3924 = vrot.slane %v3922, 4
      %v3925 = vor.u32 %v3924, %v3920
      %v3926 = vrot.slane %v3925, 4
      %v3928 = vshll.u32 %v3757, 16
      %v3930 = vrot.slane %v3928, 5
      %v3931 = vsel %vm249, %v3926, %v3930
      %v3933 = vshrl.u32 %v3758, 16
      %v3935 = vrot.slane %v3933, 4
      %v3936 = vshll.u32 %v3758, 16
      %v3938 = vrot.slane %v3936, 5
      %v3939 = vor.u32 %v3935, %v3938
      %v3940 = vrot.slane %v3939, 4
      %v3942 = vshll.u32 %v3759, 16
      %v3944 = vrot.slane %v3942, 5
      %v3945 = vsel %vm249, %v3940, %v3944
      %v3946 = vshrl.u32 %v3759, 16
      %v3948 = vrot.slane %v3946, 4
      %v3949 = vor.u32 %v3948, %v3944
      %v3950 = vrot.slane %v3949, 4
      %v3952 = vshll.u32 %v3760, 16
      %v3954 = vrot.slane %v3952, 5
      %v3955 = vsel %vm249, %v3950, %v3954
      %v3957 = vshrl.u32 %v3761, 16
      %v3959 = vrot.slane %v3957, 4
      %v3960 = vshll.u32 %v3761, 16
      %v3962 = vrot.slane %v3960, 5
      %v3963 = vor.u32 %v3959, %v3962
      %v3964 = vrot.slane %v3963, 4
      %v3966 = vshll.u32 %v3762, 16
      %v3968 = vrot.slane %v3966, 5
      %v3969 = vsel %vm249, %v3964, %v3968
      %v3970 = vshrl.u32 %v3762, 16
      %v3972 = vrot.slane %v3970, 4
      %v3973 = vor.u32 %v3972, %v3968
      %v3974 = vrot.slane %v3973, 4
      %v3976 = vshll.u32 %v3763, 16
      %v3978 = vrot.slane %v3976, 5
      %v3979 = vsel %vm249, %v3974, %v3978
      %v3981 = vshrl.u32 %v3764, 16
      %v3983 = vrot.slane %v3981, 4
      %v3984 = vshll.u32 %v3764, 16
      %v3986 = vrot.slane %v3984, 5
      %v3987 = vor.u32 %v3983, %v3986
      %v3988 = vrot.slane %v3987, 4
      %v3990 = vshll.u32 %v3765, 16
      %v3992 = vrot.slane %v3990, 5
      %v3993 = vsel %vm249, %v3988, %v3992
      %v3994 = vshrl.u32 %v3765, 16
      %v3996 = vrot.slane %v3994, 4
      %v3997 = vor.u32 %v3996, %v3992
      %v3998 = vrot.slane %v3997, 4
      %v4000 = vshll.u32 %v3766, 16
      %v4002 = vrot.slane %v4000, 5
      %v4003 = vsel %vm249, %v3998, %v4002
      %v4005 = vshrl.u32 %v3767, 16
      %v4007 = vrot.slane %v4005, 4
      %v4008 = vshll.u32 %v3767, 16
      %v4010 = vrot.slane %v4008, 5
      %v4011 = vor.u32 %v4007, %v4010
      %v4012 = vrot.slane %v4011, 4
      %v4014 = vshll.u32 %v3768, 16
      %v4016 = vrot.slane %v4014, 5
      %v4017 = vsel %vm249, %v4012, %v4016
      %v4018 = vshrl.u32 %v3768, 16
      %v4020 = vrot.slane %v4018, 4
      %v4021 = vor.u32 %v4020, %v4016
      %v4022 = vrot.slane %v4021, 4
      %v4024 = vshll.u32 %v3769, 16
      %v4026 = vrot.slane %v4024, 5
      %v4027 = vsel %vm249, %v4022, %v4026
      %v4029 = vshrl.u32 %v3770, 16
      %v4031 = vrot.slane %v4029, 4
      %v4032 = vshll.u32 %v3770, 16
      %v4034 = vrot.slane %v4032, 5
      %v4035 = vor.u32 %v4031, %v4034
      %v4036 = vrot.slane %v4035, 4
      %v4038 = vshll.u32 %v3771, 16
      %v4040 = vrot.slane %v4038, 5
      %v4041 = vsel %vm249, %v4036, %v4040
      %v4042 = vshrl.u32 %v3771, 16
      %v4044 = vrot.slane %v4042, 4
      %v4045 = vor.u32 %v4044, %v4040
      %v4046 = vrot.slane %v4045, 4
      %v4048 = vshll.u32 %v3772, 16
      %v4050 = vrot.slane %v4048, 5
      %v4051 = vsel %vm249, %v4046, %v4050
      %v4053 = vshrl.u32 %v3773, 16
      %v4055 = vrot.slane %v4053, 4
      %v4056 = vshll.u32 %v3773, 16
      %v4058 = vrot.slane %v4056, 5
      %v4059 = vor.u32 %v4055, %v4058
      %v4060 = vrot.slane %v4059, 4
      %v4062 = vshll.u32 %v3774, 16
      %v4064 = vrot.slane %v4062, 5
      %v4065 = vsel %vm249, %v4060, %v4064
      %v4066 = vshrl.u32 %v3774, 16
      %v4068 = vrot.slane %v4066, 4
      %v4069 = vor.u32 %v4068, %v4064
      %v4070 = vrot.slane %v4069, 4
      %v4072 = vshll.u32 %v3775, 16
      %v4074 = vrot.slane %v4072, 5
      %v4075 = vsel %vm249, %v4070, %v4074
      %v4077 = vshrl.u32 %v3776, 16
      %v4079 = vrot.slane %v4077, 4
      %v4080 = vshll.u32 %v3776, 16
      %v4082 = vrot.slane %v4080, 5
      %v4083 = vor.u32 %v4079, %v4082
      %v4084 = vrot.slane %v4083, 4
      %v4086 = vshll.u32 %v3777, 16
      %v4088 = vrot.slane %v4086, 5
      %v4089 = vsel %vm249, %v4084, %v4088
      %v4090 = vshrl.u32 %v3777, 16
      %v4092 = vrot.slane %v4090, 4
      %v4093 = vor.u32 %v4092, %v4088
      %v4094 = vrot.slane %v4093, 4
      %v4096 = vshll.u32 %v3778, 16
      %v4098 = vrot.slane %v4096, 5
      %v4099 = vsel %vm249, %v4094, %v4098
      %v4101 = vshrl.u32 %v3779, 16
      %v4103 = vrot.slane %v4101, 4
      %v4104 = vshll.u32 %v3779, 16
      %v4106 = vrot.slane %v4104, 5
      %v4107 = vor.u32 %v4103, %v4106
      %v4108 = vrot.slane %v4107, 4
      %v4110 = vshll.u32 %v3780, 16
      %v4112 = vrot.slane %v4110, 5
      %v4113 = vsel %vm249, %v4108, %v4112
      %v4114 = vshrl.u32 %v3780, 16
      %v4116 = vrot.slane %v4114, 4
      %v4117 = vor.u32 %v4116, %v4112
      %v4118 = vrot.slane %v4117, 4
      %v4120 = vshll.u32 %v3781, 16
      %v4122 = vrot.slane %v4120, 5
      %v4123 = vsel %vm249, %v4118, %v4122
      %v4125 = vshrl.u32 %v3782, 16
      %v4127 = vrot.slane %v4125, 4
      %v4128 = vshll.u32 %v3782, 16
      %v4130 = vrot.slane %v4128, 5
      %v4131 = vor.u32 %v4127, %v4130
      %v4132 = vrot.slane %v4131, 4
      %v4134 = vshll.u32 %v3783, 16
      %v4136 = vrot.slane %v4134, 5
      %v4137 = vsel %vm249, %v4132, %v4136
      %v4138 = vshrl.u32 %v3783, 16
      %v4140 = vrot.slane %v4138, 4
      %v4141 = vor.u32 %v4140, %v4136
      %v4142 = vrot.slane %v4141, 4
      %v4144 = vshll.u32 %v3784, 16
      %v4146 = vrot.slane %v4144, 5
      %v4147 = vsel %vm249, %v4142, %v4146
      %v4149 = vshrl.u32 %v3785, 16
      %v4151 = vrot.slane %v4149, 4
      %v4152 = vshll.u32 %v3785, 16
      %v4154 = vrot.slane %v4152, 5
      %v4155 = vor.u32 %v4151, %v4154
      %v4156 = vrot.slane %v4155, 4
      %v4158 = vshll.u32 %v3786, 16
      %v4160 = vrot.slane %v4158, 5
      %v4161 = vsel %vm249, %v4156, %v4160
      %v4162 = vshrl.u32 %v3786, 16
      %v4164 = vrot.slane %v4162, 4
      %v4165 = vor.u32 %v4164, %v4160
      %v4166 = vrot.slane %v4165, 4
      %v4168 = vshll.u32 %v3787, 16
      %v4170 = vrot.slane %v4168, 5
      %v4171 = vsel %vm249, %v4166, %v4170
      %s4172 = scalar_lea.vmem %s1, 448
      %v4173 = vld [vmem:[%s4172] sm:$0xf]
      %v4174 = vld [vmem:[%s4172 + $0x4] sm:$0xf]
      %v4175 = vld [vmem:[%s4172 + $0x8] sm:$0xf]
      %v4176 = vld [vmem:[%s4172 + $0xc] sm:$0xf]
      %v4177 = vld [vmem:[%s4172 + $0x10] sm:$0xf]
      %v4178 = vld [vmem:[%s4172 + $0x14] sm:$0xf]
      %v4179 = vld [vmem:[%s4172 + $0x18] sm:$0xf]
      %v4180 = vld [vmem:[%s4172 + $0x1c] sm:$0xf]
      %v4181 = vld [vmem:[%s4172 + $0x20] sm:$0xf]
      %v4182 = vld [vmem:[%s4172 + $0x24] sm:$0xf]
      %v4183 = vld [vmem:[%s4172 + $0x28] sm:$0xf]
      %v4184 = vld [vmem:[%s4172 + $0x2c] sm:$0xf]
      %v4185 = vld [vmem:[%s4172 + $0x30] sm:$0xf]
      %v4186 = vld [vmem:[%s4172 + $0x34] sm:$0xf]
      %v4187 = vld [vmem:[%s4172 + $0x38] sm:$0xf]
      %v4188 = vld [vmem:[%s4172 + $0x3c] sm:$0xf]
      %v4189 = vunpack.c.l.b16 %v3801
      %v4190 = vunpack.c.l.b16 %v3811
      %v4191 = vunpack.c.l.b16 %v3825
      %v4192 = vunpack.c.l.b16 %v3835
      %v4193 = vunpack.c.l.b16 %v3849
      %v4194 = vunpack.c.l.b16 %v3859
      %v4195 = vunpack.c.l.b16 %v3873
      %v4196 = vunpack.c.l.b16 %v3883
      %v4197 = vunpack.c.l.b16 %v3897
      %v4198 = vunpack.c.l.b16 %v3907
      %v4199 = vunpack.c.l.b16 %v3921
      %v4200 = vunpack.c.l.b16 %v3931
      %v4201 = vunpack.c.l.b16 %v3945
      %v4202 = vunpack.c.l.b16 %v3955
      %v4203 = vunpack.c.l.b16 %v3969
      %v4204 = vunpack.c.l.b16 %v3979
      %v4205 = vunpack.c.l.b16 %v3993
      %v4206 = vunpack.c.l.b16 %v4003
      %v4207 = vunpack.c.l.b16 %v4017
      %v4208 = vunpack.c.l.b16 %v4027
      %v4209 = vunpack.c.l.b16 %v4041
      %v4210 = vunpack.c.l.b16 %v4051
      %v4211 = vunpack.c.l.b16 %v4065
      %v4212 = vunpack.c.l.b16 %v4075
      %v4213 = vunpack.c.l.b16 %v4089
      %v4214 = vunpack.c.l.b16 %v4099
      %v4215 = vunpack.c.l.b16 %v4113
      %v4216 = vunpack.c.l.b16 %v4123
      %v4217 = vunpack.c.l.b16 %v4137
      %v4218 = vunpack.c.l.b16 %v4147
      %v4219 = vunpack.c.l.b16 %v4161
      %v4220 = vunpack.c.l.b16 %v4171
      %v4221 = vpack.c.b16 %v4190, %v4189
      %v4222 = vpack.c.b16 %v4192, %v4191
      %v4223 = vpack.c.b16 %v4194, %v4193
      %v4224 = vpack.c.b16 %v4196, %v4195
      %v4225 = vpack.c.b16 %v4198, %v4197
      %v4226 = vpack.c.b16 %v4200, %v4199
      %v4227 = vpack.c.b16 %v4202, %v4201
      %v4228 = vpack.c.b16 %v4204, %v4203
      %v4229 = vpack.c.b16 %v4206, %v4205
      %v4230 = vpack.c.b16 %v4208, %v4207
      %v4231 = vpack.c.b16 %v4210, %v4209
      %v4232 = vpack.c.b16 %v4212, %v4211
      %v4233 = vpack.c.b16 %v4214, %v4213
      %v4234 = vpack.c.b16 %v4216, %v4215
      %v4235 = vpack.c.b16 %v4218, %v4217
      %v4236 = vpack.c.b16 %v4220, %v4219
      %v4269 = vunpack.c.l.b16 %v4173
      %v4270 = vunpack.c.l.b16 %v4174
      %v4271 = vunpack.c.l.b16 %v4175
      %v4272 = vunpack.c.l.b16 %v4176
      %v4273 = vunpack.c.l.b16 %v4177
      %v4274 = vunpack.c.l.b16 %v4178
      %v4275 = vunpack.c.l.b16 %v4179
      %v4276 = vunpack.c.l.b16 %v4180
      %v4277 = vunpack.c.l.b16 %v4181
      %v4278 = vunpack.c.l.b16 %v4182
      %v4279 = vunpack.c.l.b16 %v4183
      %v4280 = vunpack.c.l.b16 %v4184
      %v4281 = vunpack.c.l.b16 %v4185
      %v4282 = vunpack.c.l.b16 %v4186
      %v4283 = vunpack.c.l.b16 %v4187
      %v4284 = vunpack.c.l.b16 %v4188
      %v4285 = vpack.c.b16 %v4270, %v4269
      %v4286 = vpack.c.b16 %v4272, %v4271
      %v4287 = vpack.c.b16 %v4274, %v4273
      %v4288 = vpack.c.b16 %v4276, %v4275
      %v4289 = vpack.c.b16 %v4278, %v4277
      %v4290 = vpack.c.b16 %v4280, %v4279
      %v4291 = vpack.c.b16 %v4282, %v4281
      %v4292 = vpack.c.b16 %v4284, %v4283
      %4301 = vmatprep.subr.bf16.mxu0 0
      %4302 = vmatpush1.bf16.msra.mxu0 %v4285
      %4303 = vmatprep.subr.bf16.mxu0 0
      %4304 = vmatpush1.bf16.msra.mxu0 %v4286
      %4305 = vmatprep.subr.bf16.mxu0 0
      %4306 = vmatpush1.bf16.msra.mxu0 %v4287
      %4307 = vmatprep.subr.bf16.mxu0 0
      %4308 = vmatpush1.bf16.msra.mxu0 %v4288
      %4309 = vmatprep.subr.bf16.mxu0 0
      %4310 = vmatpush1.bf16.msra.mxu0 %v4289
      %4311 = vmatprep.subr.bf16.mxu0 0
      %4312 = vmatpush1.bf16.msra.mxu0 %v4290
      %4313 = vmatprep.subr.bf16.mxu0 0
      %4314 = vmatpush1.bf16.msra.mxu0 %v4291
      %4315 = vmatprep.subr.bf16.mxu0 0
      %4316 = vmatpush1.bf16.msra.mxu0 %v4292
      %4317 = vmatprep.subr.bf16.mxu0 0
      %4318 = vmatpush1.bf16.msra.mxu0 0
      %4319 = vmatprep.subr.bf16.mxu0 0
      %4320 = vmatpush1.bf16.msra.mxu0 0
      %4321 = vmatprep.subr.bf16.mxu0 0
      %4322 = vmatpush1.bf16.msra.mxu0 0
      %4323 = vmatprep.subr.bf16.mxu0 0
      %4324 = vmatpush1.bf16.msra.mxu0 0
      %4325 = vmatprep.subr.bf16.mxu0 0
      %4326 = vmatpush1.bf16.msra.mxu0 0
      %4327 = vmatprep.subr.bf16.mxu0 0
      %4328 = vmatpush1.bf16.msra.mxu0 0
      %4329 = vmatprep.subr.bf16.mxu0 0
      %4330 = vmatpush1.bf16.msra.mxu0 0
      %4331 = vmatprep.subr.bf16.mxu0 0
      %4332 = vmatpush1.bf16.msra.mxu0 0
      %4333 = vmatprep.mubr.bf16.mxu0 0
      %4334 = vmatmul.mubr.bf16.gmra.mrb[0].mxu0 %v4221
      %v4335 = vpop.f32.mrb[0].mxu0
      %v4336 = vadd.f32 0.0, %v4335
      %v4337 = vpop.f32.mrb[0].mxu0
      %v4338 = vpop.f32.mrb[0].mxu0
      %v4339 = vadd.f32 0.0, %v4338
      %v4340 = vpop.f32.mrb[0].mxu0
      %4341 = vmatprep.mubr.bf16.mxu0 0
      %4342 = vmatmul.mubr.bf16.gmra.mrb[0].mxu0 %v4222
      %v4343 = vpop.f32.mrb[0].mxu0
      %v4344 = vadd.f32 0.0, %v4343
      %v4345 = vpop.f32.mrb[0].mxu0
      %v4346 = vpop.f32.mrb[0].mxu0
      %v4347 = vadd.f32 0.0, %v4346
      %v4348 = vpop.f32.mrb[0].mxu0
      %4349 = vmatprep.mubr.bf16.mxu0 0
      %4350 = vmatmul.mubr.bf16.gmra.mrb[0].mxu0 %v4223
      %v4351 = vpop.f32.mrb[0].mxu0
      %v4352 = vadd.f32 0.0, %v4351
      %v4353 = vpop.f32.mrb[0].mxu0
      %v4354 = vpop.f32.mrb[0].mxu0
      %v4355 = vadd.f32 0.0, %v4354
      %v4356 = vpop.f32.mrb[0].mxu0
      %4357 = vmatprep.mubr.bf16.mxu0 0
      %4358 = vmatmul.mubr.bf16.gmra.mrb[0].mxu0 %v4224
      %v4359 = vpop.f32.mrb[0].mxu0
      %v4360 = vadd.f32 0.0, %v4359
      %v4361 = vpop.f32.mrb[0].mxu0
      %v4362 = vpop.f32.mrb[0].mxu0
      %v4363 = vadd.f32 0.0, %v4362
      %v4364 = vpop.f32.mrb[0].mxu0
      %4365 = vmatprep.mubr.bf16.mxu0 0
      %4366 = vmatmul.mubr.bf16.gmra.mrb[0].mxu0 %v4225
      %v4367 = vpop.f32.mrb[0].mxu0
      %v4368 = vadd.f32 0.0, %v4367
      %v4369 = vpop.f32.mrb[0].mxu0
      %v4370 = vpop.f32.mrb[0].mxu0
      %v4371 = vadd.f32 0.0, %v4370
      %v4372 = vpop.f32.mrb[0].mxu0
      %4373 = vmatprep.mubr.bf16.mxu0 0
      %4374 = vmatmul.mubr.bf16.gmra.mrb[0].mxu0 %v4226
      %v4375 = vpop.f32.mrb[0].mxu0
      %v4376 = vadd.f32 0.0, %v4375
      %v4377 = vpop.f32.mrb[0].mxu0
      %v4378 = vpop.f32.mrb[0].mxu0
      %v4379 = vadd.f32 0.0, %v4378
      %v4380 = vpop.f32.mrb[0].mxu0
      %4381 = vmatprep.mubr.bf16.mxu0 0
      %4382 = vmatmul.mubr.bf16.gmra.mrb[0].mxu0 %v4227
      %v4383 = vpop.f32.mrb[0].mxu0
      %v4384 = vadd.f32 0.0, %v4383
      %v4385 = vpop.f32.mrb[0].mxu0
      %v4386 = vpop.f32.mrb[0].mxu0
      %v4387 = vadd.f32 0.0, %v4386
      %v4388 = vpop.f32.mrb[0].mxu0
      %4389 = vmatprep.mubr.bf16.mxu0 0
      %4390 = vmatmul.mubr.bf16.gmra.mrb[0].mxu0 %v4228
      %v4391 = vpop.f32.mrb[0].mxu0
      %v4392 = vadd.f32 0.0, %v4391
      %v4393 = vpop.f32.mrb[0].mxu0
      %v4394 = vpop.f32.mrb[0].mxu0
      %v4395 = vadd.f32 0.0, %v4394
      %v4396 = vpop.f32.mrb[0].mxu0
      %4397 = vmatprep.mubr.bf16.mxu0 0
      %4398 = vmatmul.mubr.bf16.gmra.mrb[0].mxu0 %v4229
      %v4399 = vpop.f32.mrb[0].mxu0
      %v4400 = vadd.f32 0.0, %v4399
      %v4401 = vpop.f32.mrb[0].mxu0
      %v4402 = vpop.f32.mrb[0].mxu0
      %v4403 = vadd.f32 0.0, %v4402
      %v4404 = vpop.f32.mrb[0].mxu0
      %4405 = vmatprep.mubr.bf16.mxu0 0
      %4406 = vmatmul.mubr.bf16.gmra.mrb[0].mxu0 %v4230
      %v4407 = vpop.f32.mrb[0].mxu0
      %v4408 = vadd.f32 0.0, %v4407
      %v4409 = vpop.f32.mrb[0].mxu0
      %v4410 = vpop.f32.mrb[0].mxu0
      %v4411 = vadd.f32 0.0, %v4410
      %v4412 = vpop.f32.mrb[0].mxu0
      %4413 = vmatprep.mubr.bf16.mxu0 0
      %4414 = vmatmul.mubr.bf16.gmra.mrb[0].mxu0 %v4231
      %v4415 = vpop.f32.mrb[0].mxu0
      %v4416 = vadd.f32 0.0, %v4415
      %v4417 = vpop.f32.mrb[0].mxu0
      %v4418 = vpop.f32.mrb[0].mxu0
      %v4419 = vadd.f32 0.0, %v4418
      %v4420 = vpop.f32.mrb[0].mxu0
      %4421 = vmatprep.mubr.bf16.mxu0 0
      %4422 = vmatmul.mubr.bf16.gmra.mrb[0].mxu0 %v4232
      %v4423 = vpop.f32.mrb[0].mxu0
      %v4424 = vadd.f32 0.0, %v4423
      %v4425 = vpop.f32.mrb[0].mxu0
      %v4426 = vpop.f32.mrb[0].mxu0
      %v4427 = vadd.f32 0.0, %v4426
      %v4428 = vpop.f32.mrb[0].mxu0
      %4429 = vmatprep.mubr.bf16.mxu0 0
      %4430 = vmatmul.mubr.bf16.gmra.mrb[0].mxu0 %v4233
      %v4431 = vpop.f32.mrb[0].mxu0
      %v4432 = vadd.f32 0.0, %v4431
      %v4433 = vpop.f32.mrb[0].mxu0
      %v4434 = vpop.f32.mrb[0].mxu0
      %v4435 = vadd.f32 0.0, %v4434
      %v4436 = vpop.f32.mrb[0].mxu0
      %4437 = vmatprep.mubr.bf16.mxu0 0
      %4438 = vmatmul.mubr.bf16.gmra.mrb[0].mxu0 %v4234
      %v4439 = vpop.f32.mrb[0].mxu0
      %v4440 = vadd.f32 0.0, %v4439
      %v4441 = vpop.f32.mrb[0].mxu0
      %v4442 = vpop.f32.mrb[0].mxu0
      %v4443 = vadd.f32 0.0, %v4442
      %v4444 = vpop.f32.mrb[0].mxu0
      %4445 = vmatprep.mubr.bf16.mxu0 0
      %4446 = vmatmul.mubr.bf16.gmra.mrb[0].mxu0 %v4235
      %v4447 = vpop.f32.mrb[0].mxu0
      %v4448 = vadd.f32 0.0, %v4447
      %v4449 = vpop.f32.mrb[0].mxu0
      %v4450 = vpop.f32.mrb[0].mxu0
      %v4451 = vadd.f32 0.0, %v4450
      %v4452 = vpop.f32.mrb[0].mxu0
      %4453 = vmatprep.mubr.bf16.mxu0 0
      %4454 = vmatmul.mubr.bf16.gmra.mrb[0].mxu0 %v4236
      %v4455 = vpop.f32.mrb[0].mxu0
      %v4456 = vadd.f32 0.0, %v4455
      %v4457 = vpop.f32.mrb[0].mxu0
      %v4458 = vpop.f32.mrb[0].mxu0
      %v4459 = vadd.f32 0.0, %v4458
      %v4460 = vpop.f32.mrb[0].mxu0
      %4461 = vdwg.mxu0
      %v4462 = vadd.f32 %v3708, %v4336
      %v4463 = vadd.f32 %v3709, %v4339
      %v4464 = vadd.f32 %v3710, %v4344
      %v4465 = vadd.f32 %v3711, %v4347
      %v4466 = vadd.f32 %v3712, %v4352
      %v4467 = vadd.f32 %v3713, %v4355
      %v4468 = vadd.f32 %v3714, %v4360
      %v4469 = vadd.f32 %v3715, %v4363
      %v4470 = vadd.f32 %v3716, %v4368
      %v4471 = vadd.f32 %v3717, %v4371
      %v4472 = vadd.f32 %v3718, %v4376
      %v4473 = vadd.f32 %v3719, %v4379
      %v4474 = vadd.f32 %v3720, %v4384
      %v4475 = vadd.f32 %v3721, %v4387
      %v4476 = vadd.f32 %v3722, %v4392
      %v4477 = vadd.f32 %v3723, %v4395
      %v4478 = vadd.f32 %v3724, %v4400
      %v4479 = vadd.f32 %v3725, %v4403
      %v4480 = vadd.f32 %v3726, %v4408
      %v4481 = vadd.f32 %v3727, %v4411
      %v4482 = vadd.f32 %v3728, %v4416
      %v4483 = vadd.f32 %v3729, %v4419
      %v4484 = vadd.f32 %v3730, %v4424
      %v4485 = vadd.f32 %v3731, %v4427
      %v4486 = vadd.f32 %v3732, %v4432
      %v4487 = vadd.f32 %v3733, %v4435
      %v4488 = vadd.f32 %v3734, %v4440
      %v4489 = vadd.f32 %v3735, %v4443
      %v4490 = vadd.f32 %v3736, %v4448
      %v4491 = vadd.f32 %v3737, %v4451
      %v4492 = vadd.f32 %v3738, %v4456
      %v4493 = vadd.f32 %v3739, %v4459
      %v4494 = vld [vmem:[%s3353] sm:$0xe]
      %v4495 = vld [vmem:[%s3353 + $0xc] sm:$0xe]
      %v4496 = vld [vmem:[%s3353 + $0x18] sm:$0xe]
      %v4497 = vld [vmem:[%s3353 + $0x24] sm:$0xe]
      %v4498 = vld [vmem:[%s3353 + $0x30] sm:$0xe]
      %v4499 = vld [vmem:[%s3353 + $0x3c] sm:$0xe]
      %v4500 = vld [vmem:[%s3353 + $0x48] sm:$0xe]
      %v4501 = vld [vmem:[%s3353 + $0x54] sm:$0xe]
      %v4502 = vld [vmem:[%s3353 + $0x60] sm:$0xe]
      %v4503 = vld [vmem:[%s3353 + $0x6c] sm:$0xe]
      %v4504 = vld [vmem:[%s3353 + $0x78] sm:$0xe]
      %v4505 = vld [vmem:[%s3353 + $0x84] sm:$0xe]
      %v4506 = vld [vmem:[%s3353 + $0x90] sm:$0xe]
      %v4507 = vld [vmem:[%s3353 + $0x9c] sm:$0xe]
      %v4508 = vld [vmem:[%s3353 + $0xa8] sm:$0xe]
      %v4509 = vld [vmem:[%s3353 + $0xb4] sm:$0xe]
      %v4558 = vrot.slane %v4494, 5
      %v4559 = vrot.slane %v4558, 4
      %v4560 = vrot.slane %v3741, 5
      %v4561 = vsel %vm1279, %v4559, %v4560
      %v4562 = vrot.slane %v4560, 4
      %v4563 = vrot.slane %v3742, 5
      %v4564 = vsel %vm1279, %v4562, %v4563
      %v4565 = vrot.slane %v4495, 5
      %v4566 = vrot.slane %v4565, 4
      %v4567 = vrot.slane %v3744, 5
      %v4568 = vsel %vm1279, %v4566, %v4567
      %v4569 = vrot.slane %v4567, 4
      %v4570 = vrot.slane %v3745, 5
      %v4571 = vsel %vm1279, %v4569, %v4570
      %v4572 = vrot.slane %v4496, 5
      %v4573 = vrot.slane %v4572, 4
      %v4574 = vrot.slane %v3747, 5
      %v4575 = vsel %vm1279, %v4573, %v4574
      %v4576 = vrot.slane %v4574, 4
      %v4577 = vrot.slane %v3748, 5
      %v4578 = vsel %vm1279, %v4576, %v4577
      %v4579 = vrot.slane %v4497, 5
      %v4580 = vrot.slane %v4579, 4
      %v4581 = vrot.slane %v3750, 5
      %v4582 = vsel %vm1279, %v4580, %v4581
      %v4583 = vrot.slane %v4581, 4
      %v4584 = vrot.slane %v3751, 5
      %v4585 = vsel %vm1279, %v4583, %v4584
      %v4586 = vrot.slane %v4498, 5
      %v4587 = vrot.slane %v4586, 4
      %v4588 = vrot.slane %v3753, 5
      %v4589 = vsel %vm1279, %v4587, %v4588
      %v4590 = vrot.slane %v4588, 4
      %v4591 = vrot.slane %v3754, 5
      %v4592 = vsel %vm1279, %v4590, %v4591
      %v4593 = vrot.slane %v4499, 5
      %v4594 = vrot.slane %v4593, 4
      %v4595 = vrot.slane %v3756, 5
      %v4596 = vsel %vm1279, %v4594, %v4595
      %v4597 = vrot.slane %v4595, 4
      %v4598 = vrot.slane %v3757, 5
      %v4599 = vsel %vm1279, %v4597, %v4598
      %v4600 = vrot.slane %v4500, 5
      %v4601 = vrot.slane %v4600, 4
      %v4602 = vrot.slane %v3759, 5
      %v4603 = vsel %vm1279, %v4601, %v4602
      %v4604 = vrot.slane %v4602, 4
      %v4605 = vrot.slane %v3760, 5
      %v4606 = vsel %vm1279, %v4604, %v4605
      %v4607 = vrot.slane %v4501, 5
      %v4608 = vrot.slane %v4607, 4
      %v4609 = vrot.slane %v3762, 5
      %v4610 = vsel %vm1279, %v4608, %v4609
      %v4611 = vrot.slane %v4609, 4
      %v4612 = vrot.slane %v3763, 5
      %v4613 = vsel %vm1279, %v4611, %v4612
      %v4614 = vrot.slane %v4502, 5
      %v4615 = vrot.slane %v4614, 4
      %v4616 = vrot.slane %v3765, 5
      %v4617 = vsel %vm1279, %v4615, %v4616
      %v4618 = vrot.slane %v4616, 4
      %v4619 = vrot.slane %v3766, 5
      %v4620 = vsel %vm1279, %v4618, %v4619
      %v4621 = vrot.slane %v4503, 5
      %v4622 = vrot.slane %v4621, 4
      %v4623 = vrot.slane %v3768, 5
      %v4624 = vsel %vm1279, %v4622, %v4623
      %v4625 = vrot.slane %v4623, 4
      %v4626 = vrot.slane %v3769, 5
      %v4627 = vsel %vm1279, %v4625, %v4626
      %v4628 = vrot.slane %v4504, 5
      %v4629 = vrot.slane %v4628, 4
      %v4630 = vrot.slane %v3771, 5
      %v4631 = vsel %vm1279, %v4629, %v4630
      %v4632 = vrot.slane %v4630, 4
      %v4633 = vrot.slane %v3772, 5
      %v4634 = vsel %vm1279, %v4632, %v4633
      %v4635 = vrot.slane %v4505, 5
      %v4636 = vrot.slane %v4635, 4
      %v4637 = vrot.slane %v3774, 5
      %v4638 = vsel %vm1279, %v4636, %v4637
      %v4639 = vrot.slane %v4637, 4
      %v4640 = vrot.slane %v3775, 5
      %v4641 = vsel %vm1279, %v4639, %v4640
      %v4642 = vrot.slane %v4506, 5
      %v4643 = vrot.slane %v4642, 4
      %v4644 = vrot.slane %v3777, 5
      %v4645 = vsel %vm1279, %v4643, %v4644
      %v4646 = vrot.slane %v4644, 4
      %v4647 = vrot.slane %v3778, 5
      %v4648 = vsel %vm1279, %v4646, %v4647
      %v4649 = vrot.slane %v4507, 5
      %v4650 = vrot.slane %v4649, 4
      %v4651 = vrot.slane %v3780, 5
      %v4652 = vsel %vm1279, %v4650, %v4651
      %v4653 = vrot.slane %v4651, 4
      %v4654 = vrot.slane %v3781, 5
      %v4655 = vsel %vm1279, %v4653, %v4654
      %v4656 = vrot.slane %v4508, 5
      %v4657 = vrot.slane %v4656, 4
      %v4658 = vrot.slane %v3783, 5
      %v4659 = vsel %vm1279, %v4657, %v4658
      %v4660 = vrot.slane %v4658, 4
      %v4661 = vrot.slane %v3784, 5
      %v4662 = vsel %vm1279, %v4660, %v4661
      %v4663 = vrot.slane %v4509, 5
      %v4664 = vrot.slane %v4663, 4
      %v4665 = vrot.slane %v3786, 5
      %v4666 = vsel %vm1279, %v4664, %v4665
      %v4667 = vrot.slane %v4665, 4
      %v4668 = vrot.slane %v3787, 5
      %v4669 = vsel %vm1279, %v4667, %v4668
      %s4670 = scalar_lea.vmem %s1, 512
      %v4671 = vld [vmem:[%s4670] sm:$0xf]
      %v4672 = vld [vmem:[%s4670 + $0x4] sm:$0xf]
      %v4673 = vld [vmem:[%s4670 + $0x8] sm:$0xf]
      %v4674 = vld [vmem:[%s4670 + $0xc] sm:$0xf]
      %v4675 = vld [vmem:[%s4670 + $0x10] sm:$0xf]
      %v4676 = vld [vmem:[%s4670 + $0x14] sm:$0xf]
      %v4677 = vld [vmem:[%s4670 + $0x18] sm:$0xf]
      %v4678 = vld [vmem:[%s4670 + $0x1c] sm:$0xf]
      %v4679 = vld [vmem:[%s4670 + $0x20] sm:$0xf]
      %v4680 = vld [vmem:[%s4670 + $0x24] sm:$0xf]
      %v4681 = vld [vmem:[%s4670 + $0x28] sm:$0xf]
      %v4682 = vld [vmem:[%s4670 + $0x2c] sm:$0xf]
      %v4683 = vld [vmem:[%s4670 + $0x30] sm:$0xf]
      %v4684 = vld [vmem:[%s4670 + $0x34] sm:$0xf]
      %v4685 = vld [vmem:[%s4670 + $0x38] sm:$0xf]
      %v4686 = vld [vmem:[%s4670 + $0x3c] sm:$0xf]
      %v4687 = vunpack.c.l.b16 %v4561
      %v4688 = vunpack.c.l.b16 %v4564
      %v4689 = vunpack.c.l.b16 %v4568
      %v4690 = vunpack.c.l.b16 %v4571
      %v4691 = vunpack.c.l.b16 %v4575
      %v4692 = vunpack.c.l.b16 %v4578
      %v4693 = vunpack.c.l.b16 %v4582
      %v4694 = vunpack.c.l.b16 %v4585
      %v4695 = vunpack.c.l.b16 %v4589
      %v4696 = vunpack.c.l.b16 %v4592
      %v4697 = vunpack.c.l.b16 %v4596
      %v4698 = vunpack.c.l.b16 %v4599
      %v4699 = vunpack.c.l.b16 %v4603
      %v4700 = vunpack.c.l.b16 %v4606
      %v4701 = vunpack.c.l.b16 %v4610
      %v4702 = vunpack.c.l.b16 %v4613
      %v4703 = vunpack.c.l.b16 %v4617
      %v4704 = vunpack.c.l.b16 %v4620
      %v4705 = vunpack.c.l.b16 %v4624
      %v4706 = vunpack.c.l.b16 %v4627
      %v4707 = vunpack.c.l.b16 %v4631
      %v4708 = vunpack.c.l.b16 %v4634
      %v4709 = vunpack.c.l.b16 %v4638
      %v4710 = vunpack.c.l.b16 %v4641
      %v4711 = vunpack.c.l.b16 %v4645
      %v4712 = vunpack.c.l.b16 %v4648
      %v4713 = vunpack.c.l.b16 %v4652
      %v4714 = vunpack.c.l.b16 %v4655
      %v4715 = vunpack.c.l.b16 %v4659
      %v4716 = vunpack.c.l.b16 %v4662
      %v4717 = vunpack.c.l.b16 %v4666
      %v4718 = vunpack.c.l.b16 %v4669
      %v4719 = vpack.c.b16 %v4688, %v4687
      %v4720 = vpack.c.b16 %v4690, %v4689
      %v4721 = vpack.c.b16 %v4692, %v4691
      %v4722 = vpack.c.b16 %v4694, %v4693
      %v4723 = vpack.c.b16 %v4696, %v4695
      %v4724 = vpack.c.b16 %v4698, %v4697
      %v4725 = vpack.c.b16 %v4700, %v4699
      %v4726 = vpack.c.b16 %v4702, %v4701
      %v4727 = vpack.c.b16 %v4704, %v4703
      %v4728 = vpack.c.b16 %v4706, %v4705
      %v4729 = vpack.c.b16 %v4708, %v4707
      %v4730 = vpack.c.b16 %v4710, %v4709
      %v4731 = vpack.c.b16 %v4712, %v4711
      %v4732 = vpack.c.b16 %v4714, %v4713
      %v4733 = vpack.c.b16 %v4716, %v4715
      %v4734 = vpack.c.b16 %v4718, %v4717
      %v4767 = vunpack.c.l.b16 %v4671
      %v4768 = vunpack.c.l.b16 %v4672
      %v4769 = vunpack.c.l.b16 %v4673
      %v4770 = vunpack.c.l.b16 %v4674
      %v4771 = vunpack.c.l.b16 %v4675
      %v4772 = vunpack.c.l.b16 %v4676
      %v4773 = vunpack.c.l.b16 %v4677
      %v4774 = vunpack.c.l.b16 %v4678
      %v4775 = vunpack.c.l.b16 %v4679
      %v4776 = vunpack.c.l.b16 %v4680
      %v4777 = vunpack.c.l.b16 %v4681
      %v4778 = vunpack.c.l.b16 %v4682
      %v4779 = vunpack.c.l.b16 %v4683
      %v4780 = vunpack.c.l.b16 %v4684
      %v4781 = vunpack.c.l.b16 %v4685
      %v4782 = vunpack.c.l.b16 %v4686
      %v4783 = vpack.c.b16 %v4768, %v4767
      %v4784 = vpack.c.b16 %v4770, %v4769
      %v4785 = vpack.c.b16 %v4772, %v4771
      %v4786 = vpack.c.b16 %v4774, %v4773
      %v4787 = vpack.c.b16 %v4776, %v4775
      %v4788 = vpack.c.b16 %v4778, %v4777
      %v4789 = vpack.c.b16 %v4780, %v4779
      %v4790 = vpack.c.b16 %v4782, %v4781
      %4799 = vmatprep.subr.bf16.mxu0 0
      %4800 = vmatpush1.bf16.msra.mxu0 %v4783
      %4801 = vmatprep.subr.bf16.mxu0 0
      %4802 = vmatpush1.bf16.msra.mxu0 %v4784
      %4803 = vmatprep.subr.bf16.mxu0 0
      %4804 = vmatpush1.bf16.msra.mxu0 %v4785
      %4805 = vmatprep.subr.bf16.mxu0 0
      %4806 = vmatpush1.bf16.msra.mxu0 %v4786
      %4807 = vmatprep.subr.bf16.mxu0 0
      %4808 = vmatpush1.bf16.msra.mxu0 %v4787
      %4809 = vmatprep.subr.bf16.mxu0 0
      %4810 = vmatpush1.bf16.msra.mxu0 %v4788
      %4811 = vmatprep.subr.bf16.mxu0 0
      %4812 = vmatpush1.bf16.msra.mxu0 %v4789
      %4813 = vmatprep.subr.bf16.mxu0 0
      %4814 = vmatpush1.bf16.msra.mxu0 %v4790
      %4815 = vmatprep.subr.bf16.mxu0 0
      %4816 = vmatpush1.bf16.msra.mxu0 0
      %4817 = vmatprep.subr.bf16.mxu0 0
      %4818 = vmatpush1.bf16.msra.mxu0 0
      %4819 = vmatprep.subr.bf16.mxu0 0
      %4820 = vmatpush1.bf16.msra.mxu0 0
      %4821 = vmatprep.subr.bf16.mxu0 0
      %4822 = vmatpush1.bf16.msra.mxu0 0
      %4823 = vmatprep.subr.bf16.mxu0 0
      %4824 = vmatpush1.bf16.msra.mxu0 0
      %4825 = vmatprep.subr.bf16.mxu0 0
      %4826 = vmatpush1.bf16.msra.mxu0 0
      %4827 = vmatprep.subr.bf16.mxu0 0
      %4828 = vmatpush1.bf16.msra.mxu0 0
      %4829 = vmatprep.subr.bf16.mxu0 0
      %4830 = vmatpush1.bf16.msra.mxu0 0
      %4831 = vmatprep.mubr.bf16.mxu0 0
      %4832 = vmatmul.mubr.bf16.gmra.mrb[0].mxu0 %v4719
      %v4833 = vpop.f32.mrb[0].mxu0
      %v4834 = vadd.f32 0.0, %v4833
      %v4835 = vpop.f32.mrb[0].mxu0
      %v4836 = vpop.f32.mrb[0].mxu0
      %v4837 = vadd.f32 0.0, %v4836
      %v4838 = vpop.f32.mrb[0].mxu0
      %4839 = vmatprep.mubr.bf16.mxu0 0
      %4840 = vmatmul.mubr.bf16.gmra.mrb[0].mxu0 %v4720
      %v4841 = vpop.f32.mrb[0].mxu0
      %v4842 = vadd.f32 0.0, %v4841
      %v4843 = vpop.f32.mrb[0].mxu0
      %v4844 = vpop.f32.mrb[0].mxu0
      %v4845 = vadd.f32 0.0, %v4844
      %v4846 = vpop.f32.mrb[0].mxu0
      %4847 = vmatprep.mubr.bf16.mxu0 0
      %4848 = vmatmul.mubr.bf16.gmra.mrb[0].mxu0 %v4721
      %v4849 = vpop.f32.mrb[0].mxu0
      %v4850 = vadd.f32 0.0, %v4849
      %v4851 = vpop.f32.mrb[0].mxu0
      %v4852 = vpop.f32.mrb[0].mxu0
      %v4853 = vadd.f32 0.0, %v4852
      %v4854 = vpop.f32.mrb[0].mxu0
      %4855 = vmatprep.mubr.bf16.mxu0 0
      %4856 = vmatmul.mubr.bf16.gmra.mrb[0].mxu0 %v4722
      %v4857 = vpop.f32.mrb[0].mxu0
      %v4858 = vadd.f32 0.0, %v4857
      %v4859 = vpop.f32.mrb[0].mxu0
      %v4860 = vpop.f32.mrb[0].mxu0
      %v4861 = vadd.f32 0.0, %v4860
      %v4862 = vpop.f32.mrb[0].mxu0
      %4863 = vmatprep.mubr.bf16.mxu0 0
      %4864 = vmatmul.mubr.bf16.gmra.mrb[0].mxu0 %v4723
      %v4865 = vpop.f32.mrb[0].mxu0
      %v4866 = vadd.f32 0.0, %v4865
      %v4867 = vpop.f32.mrb[0].mxu0
      %v4868 = vpop.f32.mrb[0].mxu0
      %v4869 = vadd.f32 0.0, %v4868
      %v4870 = vpop.f32.mrb[0].mxu0
      %4871 = vmatprep.mubr.bf16.mxu0 0
      %4872 = vmatmul.mubr.bf16.gmra.mrb[0].mxu0 %v4724
      %v4873 = vpop.f32.mrb[0].mxu0
      %v4874 = vadd.f32 0.0, %v4873
      %v4875 = vpop.f32.mrb[0].mxu0
      %v4876 = vpop.f32.mrb[0].mxu0
      %v4877 = vadd.f32 0.0, %v4876
      %v4878 = vpop.f32.mrb[0].mxu0
      %4879 = vmatprep.mubr.bf16.mxu0 0
      %4880 = vmatmul.mubr.bf16.gmra.mrb[0].mxu0 %v4725
      %v4881 = vpop.f32.mrb[0].mxu0
      %v4882 = vadd.f32 0.0, %v4881
      %v4883 = vpop.f32.mrb[0].mxu0
      %v4884 = vpop.f32.mrb[0].mxu0
      %v4885 = vadd.f32 0.0, %v4884
      %v4886 = vpop.f32.mrb[0].mxu0
      %4887 = vmatprep.mubr.bf16.mxu0 0
      %4888 = vmatmul.mubr.bf16.gmra.mrb[0].mxu0 %v4726
      %v4889 = vpop.f32.mrb[0].mxu0
      %v4890 = vadd.f32 0.0, %v4889
      %v4891 = vpop.f32.mrb[0].mxu0
      %v4892 = vpop.f32.mrb[0].mxu0
      %v4893 = vadd.f32 0.0, %v4892
      %v4894 = vpop.f32.mrb[0].mxu0
      %4895 = vmatprep.mubr.bf16.mxu0 0
      %4896 = vmatmul.mubr.bf16.gmra.mrb[0].mxu0 %v4727
      %v4897 = vpop.f32.mrb[0].mxu0
      %v4898 = vadd.f32 0.0, %v4897
      %v4899 = vpop.f32.mrb[0].mxu0
      %v4900 = vpop.f32.mrb[0].mxu0
      %v4901 = vadd.f32 0.0, %v4900
      %v4902 = vpop.f32.mrb[0].mxu0
      %4903 = vmatprep.mubr.bf16.mxu0 0
      %4904 = vmatmul.mubr.bf16.gmra.mrb[0].mxu0 %v4728
      %v4905 = vpop.f32.mrb[0].mxu0
      %v4906 = vadd.f32 0.0, %v4905
      %v4907 = vpop.f32.mrb[0].mxu0
      %v4908 = vpop.f32.mrb[0].mxu0
      %v4909 = vadd.f32 0.0, %v4908
      %v4910 = vpop.f32.mrb[0].mxu0
      %4911 = vmatprep.mubr.bf16.mxu0 0
      %4912 = vmatmul.mubr.bf16.gmra.mrb[0].mxu0 %v4729
      %v4913 = vpop.f32.mrb[0].mxu0
      %v4914 = vadd.f32 0.0, %v4913
      %v4915 = vpop.f32.mrb[0].mxu0
      %v4916 = vpop.f32.mrb[0].mxu0
      %v4917 = vadd.f32 0.0, %v4916
      %v4918 = vpop.f32.mrb[0].mxu0
      %4919 = vmatprep.mubr.bf16.mxu0 0
      %4920 = vmatmul.mubr.bf16.gmra.mrb[0].mxu0 %v4730
      %v4921 = vpop.f32.mrb[0].mxu0
      %v4922 = vadd.f32 0.0, %v4921
      %v4923 = vpop.f32.mrb[0].mxu0
      %v4924 = vpop.f32.mrb[0].mxu0
      %v4925 = vadd.f32 0.0, %v4924
      %v4926 = vpop.f32.mrb[0].mxu0
      %4927 = vmatprep.mubr.bf16.mxu0 0
      %4928 = vmatmul.mubr.bf16.gmra.mrb[0].mxu0 %v4731
      %v4929 = vpop.f32.mrb[0].mxu0
      %v4930 = vadd.f32 0.0, %v4929
      %v4931 = vpop.f32.mrb[0].mxu0
      %v4932 = vpop.f32.mrb[0].mxu0
      %v4933 = vadd.f32 0.0, %v4932
      %v4934 = vpop.f32.mrb[0].mxu0
      %4935 = vmatprep.mubr.bf16.mxu0 0
      %4936 = vmatmul.mubr.bf16.gmra.mrb[0].mxu0 %v4732
      %v4937 = vpop.f32.mrb[0].mxu0
      %v4938 = vadd.f32 0.0, %v4937
      %v4939 = vpop.f32.mrb[0].mxu0
      %v4940 = vpop.f32.mrb[0].mxu0
      %v4941 = vadd.f32 0.0, %v4940
      %v4942 = vpop.f32.mrb[0].mxu0
      %4943 = vmatprep.mubr.bf16.mxu0 0
      %4944 = vmatmul.mubr.bf16.gmra.mrb[0].mxu0 %v4733
      %v4945 = vpop.f32.mrb[0].mxu0
      %v4946 = vadd.f32 0.0, %v4945
      %v4947 = vpop.f32.mrb[0].mxu0
      %v4948 = vpop.f32.mrb[0].mxu0
      %v4949 = vadd.f32 0.0, %v4948
      %v4950 = vpop.f32.mrb[0].mxu0
      %4951 = vmatprep.mubr.bf16.mxu0 0
      %4952 = vmatmul.mubr.bf16.gmra.mrb[0].mxu0 %v4734
      %v4953 = vpop.f32.mrb[0].mxu0
      %v4954 = vadd.f32 0.0, %v4953
      %v4955 = vpop.f32.mrb[0].mxu0
      %v4956 = vpop.f32.mrb[0].mxu0
      %v4957 = vadd.f32 0.0, %v4956
      %v4958 = vpop.f32.mrb[0].mxu0
      %4959 = vdwg.mxu0
      %v4960 = vadd.f32 %v4462, %v4834
      %v4961 = vadd.f32 %v4463, %v4837
      %v4962 = vadd.f32 %v4464, %v4842
      %v4963 = vadd.f32 %v4465, %v4845
      %v4964 = vadd.f32 %v4466, %v4850
      %v4965 = vadd.f32 %v4467, %v4853
      %v4966 = vadd.f32 %v4468, %v4858
      %v4967 = vadd.f32 %v4469, %v4861
      %v4968 = vadd.f32 %v4470, %v4866
      %v4969 = vadd.f32 %v4471, %v4869
      %v4970 = vadd.f32 %v4472, %v4874
      %v4971 = vadd.f32 %v4473, %v4877
      %v4972 = vadd.f32 %v4474, %v4882
      %v4973 = vadd.f32 %v4475, %v4885
      %v4974 = vadd.f32 %v4476, %v4890
      %v4975 = vadd.f32 %v4477, %v4893
      %v4976 = vadd.f32 %v4478, %v4898
      %v4977 = vadd.f32 %v4479, %v4901
      %v4978 = vadd.f32 %v4480, %v4906
      %v4979 = vadd.f32 %v4481, %v4909
      %v4980 = vadd.f32 %v4482, %v4914
      %v4981 = vadd.f32 %v4483, %v4917
      %v4982 = vadd.f32 %v4484, %v4922
      %v4983 = vadd.f32 %v4485, %v4925
      %v4984 = vadd.f32 %v4486, %v4930
      %v4985 = vadd.f32 %v4487, %v4933
      %v4986 = vadd.f32 %v4488, %v4938
      %v4987 = vadd.f32 %v4489, %v4941
      %v4988 = vadd.f32 %v4490, %v4946
      %v4989 = vadd.f32 %v4491, %v4949
      %v4990 = vadd.f32 %v4492, %v4954
      %v4991 = vadd.f32 %v4493, %v4957
      %4992 = vst [vmem:[%s177] sm:$0xff] %v4960
      %4993 = vst [vmem:[%s177 + $0x8] sm:$0xff] %v4961
      %4994 = vst [vmem:[%s177 + $0x10] sm:$0xff] %v4962
      %4995 = vst [vmem:[%s177 + $0x18] sm:$0xff] %v4963
      %4996 = vst [vmem:[%s177 + $0x20] sm:$0xff] %v4964
      %4997 = vst [vmem:[%s177 + $0x28] sm:$0xff] %v4965
      %4998 = vst [vmem:[%s177 + $0x30] sm:$0xff] %v4966
      %4999 = vst [vmem:[%s177 + $0x38] sm:$0xff] %v4967
      %5000 = vst [vmem:[%s177 + $0x40] sm:$0xff] %v4968
      %5001 = vst [vmem:[%s177 + $0x48] sm:$0xff] %v4969
      %5002 = vst [vmem:[%s177 + $0x50] sm:$0xff] %v4970
      %5003 = vst [vmem:[%s177 + $0x58] sm:$0xff] %v4971
      %5004 = vst [vmem:[%s177 + $0x60] sm:$0xff] %v4972
      %5005 = vst [vmem:[%s177 + $0x68] sm:$0xff] %v4973
      %5006 = vst [vmem:[%s177 + $0x70] sm:$0xff] %v4974
      %5007 = vst [vmem:[%s177 + $0x78] sm:$0xff] %v4975
      %5008 = vst [vmem:[%s177 + $0x80] sm:$0xff] %v4976
      %5009 = vst [vmem:[%s177 + $0x88] sm:$0xff] %v4977
      %5010 = vst [vmem:[%s177 + $0x90] sm:$0xff] %v4978
      %5011 = vst [vmem:[%s177 + $0x98] sm:$0xff] %v4979
      %5012 = vst [vmem:[%s177 + $0xa0] sm:$0xff] %v4980
      %5013 = vst [vmem:[%s177 + $0xa8] sm:$0xff] %v4981
      %5014 = vst [vmem:[%s177 + $0xb0] sm:$0xff] %v4982
      %5015 = vst [vmem:[%s177 + $0xb8] sm:$0xff] %v4983
      %5016 = vst [vmem:[%s177 + $0xc0] sm:$0xff] %v4984
      %5017 = vst [vmem:[%s177 + $0xc8] sm:$0xff] %v4985
      %5018 = vst [vmem:[%s177 + $0xd0] sm:$0xff] %v4986
      %5019 = vst [vmem:[%s177 + $0xd8] sm:$0xff] %v4987
      %5020 = vst [vmem:[%s177 + $0xe0] sm:$0xff] %v4988
      %5021 = vst [vmem:[%s177 + $0xe8] sm:$0xff] %v4989
      %5022 = vst [vmem:[%s177 + $0xf0] sm:$0xff] %v4990
      %5023 = vst [vmem:[%s177 + $0xf8] sm:$0xff] %v4991
      %v5024 = vadd.f32 %v4960, %v4961
      %v5025 = vadd.f32 %v5024, %v4962
      %v5026 = vadd.f32 %v5025, %v4963
      %v5027 = vadd.f32 %v5026, %v4964
      %v5028 = vadd.f32 %v5027, %v4965
      %v5029 = vadd.f32 %v5028, %v4966
      %v5030 = vadd.f32 %v5029, %v4967
      %v5031 = vadd.f32 %v5030, %v4968
      %v5032 = vadd.f32 %v5031, %v4969
      %v5033 = vadd.f32 %v5032, %v4970
      %v5034 = vadd.f32 %v5033, %v4971
      %v5035 = vadd.f32 %v5034, %v4972
      %v5036 = vadd.f32 %v5035, %v4973
      %v5037 = vadd.f32 %v5036, %v4974
      %v5038 = vadd.f32 %v5037, %v4975
      %v5039 = vadd.f32 %v5038, %v4976
      %v5040 = vadd.f32 %v5039, %v4977
      %v5041 = vadd.f32 %v5040, %v4978
      %v5042 = vadd.f32 %v5041, %v4979
      %v5043 = vadd.f32 %v5042, %v4980
      %v5044 = vadd.f32 %v5043, %v4981
      %v5045 = vadd.f32 %v5044, %v4982
      %v5046 = vadd.f32 %v5045, %v4983
      %v5047 = vadd.f32 %v5046, %v4984
      %v5048 = vadd.f32 %v5047, %v4985
      %v5049 = vadd.f32 %v5048, %v4986
      %v5050 = vadd.f32 %v5049, %v4987
      %v5051 = vadd.f32 %v5050, %v4988
      %v5052 = vadd.f32 %v5051, %v4989
      %v5053 = vadd.f32 %v5052, %v4990
      %v5054 = vadd.f32 %v5053, %v4991
      %v5055 = vrot.slane %v5054, 4
      %v5056 = vadd.f32 %v5054, %v5055
      %v5057 = vrot.slane %v5056, 2
      %v5058 = vadd.f32 %v5056, %v5057
      %v5059 = vrot.slane %v5058, 1
      %v5060 = vadd.f32 %v5058, %v5059
      %v5061 = vmul.f32 %v4960, %v4960
      %v5062 = vmul.f32 %v4961, %v4961
      %v5063 = vmul.f32 %v4962, %v4962
      %v5064 = vmul.f32 %v4963, %v4963
      %v5065 = vmul.f32 %v4964, %v4964
      %v5066 = vmul.f32 %v4965, %v4965
      %v5067 = vmul.f32 %v4966, %v4966
      %v5068 = vmul.f32 %v4967, %v4967
      %v5069 = vmul.f32 %v4968, %v4968
      %v5070 = vmul.f32 %v4969, %v4969
      %v5071 = vmul.f32 %v4970, %v4970
      %v5072 = vmul.f32 %v4971, %v4971
      %v5073 = vmul.f32 %v4972, %v4972
      %v5074 = vmul.f32 %v4973, %v4973
      %v5075 = vmul.f32 %v4974, %v4974
      %v5076 = vmul.f32 %v4975, %v4975
      %v5077 = vmul.f32 %v4976, %v4976
      %v5078 = vmul.f32 %v4977, %v4977
      %v5079 = vmul.f32 %v4978, %v4978
      %v5080 = vmul.f32 %v4979, %v4979
      %v5081 = vmul.f32 %v4980, %v4980
      %v5082 = vmul.f32 %v4981, %v4981
      %v5083 = vmul.f32 %v4982, %v4982
      %v5084 = vmul.f32 %v4983, %v4983
      %v5085 = vmul.f32 %v4984, %v4984
      %v5086 = vmul.f32 %v4985, %v4985
      %v5087 = vmul.f32 %v4986, %v4986
      %v5088 = vmul.f32 %v4987, %v4987
      %v5089 = vmul.f32 %v4988, %v4988
      %v5090 = vmul.f32 %v4989, %v4989
      %v5091 = vmul.f32 %v4990, %v4990
      %v5092 = vmul.f32 %v4991, %v4991
      %v5093 = vadd.f32 %v5061, %v5062
      %v5094 = vadd.f32 %v5093, %v5063
      %v5095 = vadd.f32 %v5094, %v5064
      %v5096 = vadd.f32 %v5095, %v5065
      %v5097 = vadd.f32 %v5096, %v5066
      %v5098 = vadd.f32 %v5097, %v5067
      %v5099 = vadd.f32 %v5098, %v5068
      %v5100 = vadd.f32 %v5099, %v5069
      %v5101 = vadd.f32 %v5100, %v5070
      %v5102 = vadd.f32 %v5101, %v5071
      %v5103 = vadd.f32 %v5102, %v5072
      %v5104 = vadd.f32 %v5103, %v5073
      %v5105 = vadd.f32 %v5104, %v5074
      %v5106 = vadd.f32 %v5105, %v5075
      %v5107 = vadd.f32 %v5106, %v5076
      %v5108 = vadd.f32 %v5107, %v5077
      %v5109 = vadd.f32 %v5108, %v5078
      %v5110 = vadd.f32 %v5109, %v5079
      %v5111 = vadd.f32 %v5110, %v5080
      %v5112 = vadd.f32 %v5111, %v5081
      %v5113 = vadd.f32 %v5112, %v5082
      %v5114 = vadd.f32 %v5113, %v5083
      %v5115 = vadd.f32 %v5114, %v5084
      %v5116 = vadd.f32 %v5115, %v5085
      %v5117 = vadd.f32 %v5116, %v5086
      %v5118 = vadd.f32 %v5117, %v5087
      %v5119 = vadd.f32 %v5118, %v5088
      %v5120 = vadd.f32 %v5119, %v5089
      %v5121 = vadd.f32 %v5120, %v5090
      %v5122 = vadd.f32 %v5121, %v5091
      %v5123 = vadd.f32 %v5122, %v5092
      %v5124 = vrot.slane %v5123, 4
      %v5125 = vadd.f32 %v5123, %v5124
      %v5126 = vrot.slane %v5125, 2
      %v5127 = vadd.f32 %v5125, %v5126
      %v5128 = vrot.slane %v5127, 1
      %v5129 = vadd.f32 %v5127, %v5128
      %vm5130 = vcmask 1040384
      %v5131 = vsel %vm5130, %v5060, %v5129
      %5132 = vst [vmem:[%s181] sm:$0x3] %v5131
      %p5133 = scmp.lt.s32.totalorder %s15, 1
      %s5134 = scalar_select %p5133, %s15, 1
      %s5135 = smul.addr %s5134, 32
      %s5136 = smul.addr %s5135, 8
      %s5137 = scalar_lea.vmem %s2, %s5136
      %p5138 = scmp.lt.s32.totalorder %s15, 1
      %s5139 = scalar_select %p5138, %s15, 1
      %s5140 = smul.addr %s5139, 2
      %s5141 = scalar_lea.vmem %s3, %s5140
      // Predicated region
      $region29: #{basic_block_forward.4} parent=27 // pred_check
        %p5142 = pneg %p80
      $region30: #{basic_block_forward.4} parent=27 // pred_check_branch
        %5144 = sbr.rel (%p5142) target = $region32
      $region31: #{basic_block_forward.4} parent=27 // pred_region
        _
      $region32: #{basic_block_forward.4} parent=27 // pred_fallthru
        _
      // Predicated region
      $region33: #{basic_block_forward.4} parent=27 // pred_check
        %p5145 = pneg %p106
      $region34: #{basic_block_forward.4} parent=27 // pred_check_branch
        %5147 = sbr.rel (%p5145) target = $region36
      $region35: #{basic_block_forward.4} parent=27 // pred_region
        _
      $region36: #{basic_block_forward.4} parent=27 // pred_fallthru
        _
    $region28: #{basic_block_forward.4} parent=5 // pred_fallthru
      _
    %p5148 = scmp.le.s32.totalorder 2, %s10
    // Predicated region
    $region37: #{basic_block_forward.4} parent=5 // pred_check
      %p5149 = pneg %p5148
    $region38: #{basic_block_forward.4} parent=5 // pred_check_branch
      %5151 = sbr.rel (%p5149) target = $region40
    $region39: #{basic_block_forward.4} parent=5 // pred_region
      %s5152 = ssub.s32 %s10, 2
      // Predicated region
      $region41: #{basic_block_forward.4} parent=39 // pred_check
        %p5153 = pneg %p86
      $region42: #{basic_block_forward.4} parent=39 // pred_check_branch
        %5155 = sbr.rel (%p5153) target = $region44
      $region43: #{basic_block_forward.4} parent=39 // pred_region
        %p5156 = scmp.lt.s32.totalorder %s16, 1
        %s5157 = scalar_select %p5156, %s16, 1
        %s5158 = smul.addr %s5157, 32
        %s5159 = smul.addr %s5158, 8
        %s5160 = scalar_lea.vmem %s2, %s5159
      $region44: #{basic_block_forward.4} parent=39 // pred_fallthru
        _
      // Predicated region
      $region45: #{basic_block_forward.4} parent=39 // pred_check
        %p5161 = pneg %p112
      $region46: #{basic_block_forward.4} parent=39 // pred_check_branch
        %5163 = sbr.rel (%p5161) target = $region48
      $region47: #{basic_block_forward.4} parent=39 // pred_region
        %p5164 = scmp.lt.s32.totalorder %s16, 1
        %s5165 = scalar_select %p5164, %s16, 1
        %s5166 = smul.addr %s5165, 2
        %s5167 = scalar_lea.vmem %s3, %s5166
      $region48: #{basic_block_forward.4} parent=39 // pred_fallthru
        _
    $region40: #{basic_block_forward.4} parent=5 // pred_fallthru
      _
  $region6: #{basic_block_forward.4} parent=0 // loop_footer
    %s14 = sadd.s32 1, %s10
  $region7: #{basic_block_forward.4} parent=0 // loop_footer_branch
    %9 = sbr.rel target = $region3
  $region8: #{basic_block_forward.4} parent=0 // loop_exit
    _

</llo_original>
